<compile_context>
chip_gen: v6e
topology: v6e:2x2x1
jax: 0.10.0
libtpu: 0.0.40
codegen_flags: <defaults>
</compile_context>

<pallas_src>
import jax
import jax.numpy as jnp
from jax.experimental import pallas as pl
from jax.experimental.pallas import tpu as pltpu


def _critic_head_kernel(x_ref, w1_ref, b1_ref, w2_ref, b2_ref, w3t_ref, b3_ref,
                        out_ref, acc_ref):
    """Fused relu(fc1) -> relu(fc2) -> fc3. Grid = (batch tiles, fc1-K tiles)."""
    k = pl.program_id(1)

    @pl.when(k == 0)
    def _():
        # Seed the accumulator with the fc1 bias (broadcast over the batch).
        acc_ref[...] = jnp.broadcast_to(b1_ref[...], acc_ref.shape)

    # fc1 partial product over the K = 512*4*4 reduction axis (MXU, f32 acc).
    acc_ref[...] += jnp.dot(x_ref[...], w1_ref[...],
                            preferred_element_type=jnp.float32)

    @pl.when(k == pl.num_programs(1) - 1)
    def _():
        h1 = jnp.maximum(acc_ref[...], 0.0)                         # relu(fc1)
        h2 = jnp.maximum(
            jnp.dot(h1, w2_ref[...], preferred_element_type=jnp.float32)
            + b2_ref[...], 0.0)                                      # relu(fc2)
        # fc3 has one output unit: lane reduction instead of a 1-lane matmul.
        fc3 = jnp.sum(h2 * w3t_ref[...], axis=-1, keepdims=True) + b3_ref[...]
        out_ref[...] = fc3.astype(out_ref.dtype)


def critic_head(x, w1, b1, w2, b2, w3, b3, *, tile_k=2048):
    """x: (B, K) flattened features; returns fc3 output (B, 1)."""
    B, K = x.shape
    N1 = w1.shape[1]
    N2 = w2.shape[1]

    # Batch tile: full batch if small, else a 128-row (MXU-friendly) tile.
    tb = B if B <= 128 else 128

    # Largest K tile that divides K (keeps per-step VMEM ~10 MiB at 2048).
    if K % tile_k != 0:
        for cand in (2048, 1024, 512, 256, 128):
            if K % cand == 0:
                tile_k = cand
                break
        else:
            tile_k = K

    grid = (pl.cdiv(B, tb), K // tile_k)

    return pl.pallas_call(
        _critic_head_kernel,
        out_shape=jax.ShapeDtypeStruct((B, 1), x.dtype),
        grid_spec=pltpu.PrefetchScalarGridSpec(
            num_scalar_prefetch=0,
            grid=grid,
            in_specs=[
                pl.BlockSpec((tb, tile_k), lambda i, k: (i, k)),   # x
                pl.BlockSpec((tile_k, N1), lambda i, k: (k, 0)),   # w1
                pl.BlockSpec((1, N1), lambda i, k: (0, 0)),        # b1
                pl.BlockSpec((N1, N2), lambda i, k: (0, 0)),       # w2
                pl.BlockSpec((1, N2), lambda i, k: (0, 0)),        # b2
                pl.BlockSpec((1, N2), lambda i, k: (0, 0)),        # w3^T
                pl.BlockSpec((1, 1), lambda i, k: (0, 0)),         # b3
            ],
            out_specs=pl.BlockSpec((tb, 1), lambda i, k: (i, 0)),
            scratch_shapes=[pltpu.VMEM((tb, N1), jnp.float32)],    # fc1 acc
        ),
        compiler_params=pltpu.CompilerParams(
            dimension_semantics=("parallel", "arbitrary"),
            vmem_limit_bytes=32 << 20,
        ),
    )(
        x,
        w1,
        b1.reshape(1, N1),
        w2,
        b2.reshape(1, N2),
        w3.reshape(1, N2),   # (N2, 1) column vector -> lane-dense (1, N2) row
        b3.reshape(1, 1),
    )


def critic_forward(feat, w1, b1, w2, b2, w3, b3, output_layer="fc3"):
    """Forward of Critic, starting from the resnet18 feature map.

    feat: (B, 512, 4, 4) -- output of the frozen `self.features` backbone.
    """
    # TODO(synk): the pretrained resnet18 feature extractor itself is not
    # reproduced here (frozen, pretrained weights unavailable in-script).
    x = feat.reshape(feat.shape[0], -1)
    if output_layer == "feature":
        return x
    # TODO(synk): the original `torch.cat(x, dim=1)` on a single 2-D tensor is
    # a bug/no-op in the PyTorch source; treated as identity.
    fc3 = critic_head(x, w1, b1, w2, b2, w3, b3)
    if output_layer == "fc3_softmax":
        return jax.nn.softmax(fc3, axis=-1)
    return fc3


def critic_head_reference(x, w1, b1, w2, b2, w3, b3):
    """Pure-JAX reference for the MLP head."""
    h1 = jnp.maximum(x @ w1 + b1, 0.0)
    h2 = jnp.maximum(h1 @ w2 + b2, 0.0)
    return h2 @ w3 + b3


if __name__ == "__main__":
    key = jax.random.PRNGKey(0)
    ks = jax.random.split(key, 7)

    B = 2
    C, Hf, Wf = 512, 4, 4          # resnet18 feature map implied by fc1 (512*4*4)
    K = C * Hf * Wf                # 8192
    N1 = N2 = 512

    feat = jax.random.normal(ks[0], (B, C, Hf, Wf), dtype=jnp.float32)
    w1 = 0.02 * jax.random.normal(ks[1], (K, N1), dtype=jnp.float32)
    b1 = 0.02 * jax.random.normal(ks[2], (N1,), dtype=jnp.float32)
    w2 = 0.02 * jax.random.normal(ks[3], (N1, N2), dtype=jnp.float32)
    b2 = 0.02 * jax.random.normal(ks[4], (N2,), dtype=jnp.float32)
    w3 = 0.02 * jax.random.normal(ks[5], (N2, 1), dtype=jnp.float32)
    b3 = 0.02 * jax.random.normal(ks[6], (1,), dtype=jnp.float32)

    # Main path: fc3
    out = critic_forward(feat, w1, b1, w2, b2, w3, b3, output_layer="fc3")
    out = jax.block_until_ready(out)
    assert out.shape == (B, 1)

    ref = critic_head_reference(feat.reshape(B, -1), w1, b1, w2, b2, w3, b3)
    rel_err = float(jnp.max(jnp.abs(out - ref))
                    / jnp.maximum(jnp.max(jnp.abs(ref)), 1e-6))
    assert rel_err < 2e-2, f"mismatch vs reference: rel_err={rel_err}"

    # Other output_layer options exercised once each.
    sm = jax.block_until_ready(
        critic_forward(feat, w1, b1, w2, b2, w3, b3, output_layer="fc3_softmax"))
    assert sm.shape == (B, 1)
    fvec = critic_forward(feat, w1, b1, w2, b2, w3, b3, output_layer="feature")
    assert fvec.shape == (B, K)

    print("KERNEL_OK")
</pallas_src>

<mosaic_0001>
module attributes {stable_mosaic.version = 11 : i64} {
  func.func @_critic_head_kernel(%arg0: i32, %arg1: i32, %arg2: memref<2x2048xf32, #tpu.memory_space<vmem>>, %arg3: memref<2048x512xf32, #tpu.memory_space<vmem>>, %arg4: memref<1x512xf32, #tpu.memory_space<vmem>>, %arg5: memref<512x512xf32, #tpu.memory_space<vmem>>, %arg6: memref<1x512xf32, #tpu.memory_space<vmem>>, %arg7: memref<1x512xf32, #tpu.memory_space<vmem>>, %arg8: memref<1x1xf32, #tpu.memory_space<vmem>>, %arg9: memref<2x1xf32, #tpu.memory_space<vmem>>, %arg10: memref<2x512xf32, #tpu.memory_space<vmem>>) attributes {dimension_semantics = [#tpu.dimension_semantics<parallel>, #tpu.dimension_semantics<arbitrary>], iteration_bounds = array<i64: 1, 4>, scalar_prefetch = 0 : i64, scratch_operands = 1 : i64, tpu.core_type = #tpu.core_type<tc>, window_params = [{transform_indices = @transform_0, window_bounds = array<i64: 2, 2048>}, {transform_indices = @transform_1, window_bounds = array<i64: 2048, 512>}, {pipeline_mode = #tpu.pipeline_mode<synchronous>, transform_indices = @transform_2, window_bounds = array<i64: 1, 512>}, {pipeline_mode = #tpu.pipeline_mode<synchronous>, transform_indices = @transform_3, window_bounds = array<i64: 512, 512>}, {pipeline_mode = #tpu.pipeline_mode<synchronous>, transform_indices = @transform_4, window_bounds = array<i64: 1, 512>}, {pipeline_mode = #tpu.pipeline_mode<synchronous>, transform_indices = @transform_5, window_bounds = array<i64: 1, 512>}, {pipeline_mode = #tpu.pipeline_mode<synchronous>, transform_indices = @transform_6, window_bounds = array<i64: 1, 1>}, {transform_indices = @transform_7, window_bounds = array<i64: 2, 1>}]} {
    %c0_i32 = arith.constant 0 : i32
    %0 = arith.cmpi eq, %arg1, %c0_i32 : i32
    %1 = arith.extui %0 : i1 to i32
    %c0_i32_0 = arith.constant 0 : i32
    %2 = arith.cmpi ne, %1, %c0_i32_0 : i32
    scf.if %2 {
      %c0_9 = arith.constant 0 : index
      %c0_10 = arith.constant 0 : index
      %12 = vector.load %arg4[%c0_9, %c0_10] : memref<1x512xf32, #tpu.memory_space<vmem>>, vector<1x512xf32>
      %13 = vector.shape_cast %12 : vector<1x512xf32> to vector<1x512xf32>
      %14 = vector.broadcast %13 : vector<1x512xf32> to vector<2x512xf32>
      %c0_11 = arith.constant 0 : index
      %c0_12 = arith.constant 0 : index
      %15 = vector.load %arg10[%c0_11, %c0_12] : memref<2x512xf32, #tpu.memory_space<vmem>>, vector<2x512xf32>
      tpu.vector_store %arg10[%c0_11, %c0_12], %14 {strides = array<i32>} : memref<2x512xf32, #tpu.memory_space<vmem>>, vector<2x512xf32>,
    } else {
    }
    %c0 = arith.constant 0 : index
    %c0_1 = arith.constant 0 : index
    %3 = vector.load %arg10[%c0, %c0_1] : memref<2x512xf32, #tpu.memory_space<vmem>>, vector<2x512xf32>
    %c0_2 = arith.constant 0 : index
    %c0_3 = arith.constant 0 : index
    %4 = vector.load %arg2[%c0_2, %c0_3] : memref<2x2048xf32, #tpu.memory_space<vmem>>, vector<2x2048xf32>
    %c0_4 = arith.constant 0 : index
    %c0_5 = arith.constant 0 : index
    %5 = vector.load %arg3[%c0_4, %c0_5] : memref<2048x512xf32, #tpu.memory_space<vmem>>, vector<2048x512xf32>
    %cst = arith.constant dense<0.000000e+00> : vector<2x512xf32>
    %6 = tpu.matmul %4, %5, %cst {dimension_numbers = #tpu.dot_dimension_numbers<[1], [0], [0], [1], [0, 0, 1, 1], [], []>} : vector<2x2048xf32>, vector<2048x512xf32>, vector<2x512xf32> -> vector<2x512xf32>
    %7 = arith.addf %3, %6 : vector<2x512xf32>
    %c0_6 = arith.constant 0 : index
    %c0_7 = arith.constant 0 : index
    %8 = vector.load %arg10[%c0_6, %c0_7] : memref<2x512xf32, #tpu.memory_space<vmem>>, vector<2x512xf32>
    tpu.vector_store %arg10[%c0_6, %c0_7], %7 {strides = array<i32>} : memref<2x512xf32, #tpu.memory_space<vmem>>, vector<2x512xf32>,
    %c3_i32 = arith.constant 3 : i32
    %9 = arith.cmpi eq, %arg1, %c3_i32 : i32
    %10 = arith.extui %9 : i1 to i32
    %c0_i32_8 = arith.constant 0 : i32
    %11 = arith.cmpi ne, %10, %c0_i32_8 : i32
    scf.if %11 {
      %c0_9 = arith.constant 0 : index
      %c0_10 = arith.constant 0 : index
      %12 = vector.load %arg10[%c0_9, %c0_10] : memref<2x512xf32, #tpu.memory_space<vmem>>, vector<2x512xf32>
      %cst_11 = arith.constant 0.000000e+00 : f32
      %13 = vector.broadcast %cst_11 : f32 to vector<2x512xf32>
      %14 = arith.maximumf %12, %13 : vector<2x512xf32>
      %c0_12 = arith.constant 0 : index
      %c0_13 = arith.constant 0 : index
      %15 = vector.load %arg5[%c0_12, %c0_13] : memref<512x512xf32, #tpu.memory_space<vmem>>, vector<512x512xf32>
      %cst_14 = arith.constant dense<0.000000e+00> : vector<2x512xf32>
      %16 = tpu.matmul %14, %15, %cst_14 {dimension_numbers = #tpu.dot_dimension_numbers<[1], [0], [0], [1], [0, 0, 1, 1], [], []>} : vector<2x512xf32>, vector<512x512xf32>, vector<2x512xf32> -> vector<2x512xf32>
      %c0_15 = arith.constant 0 : index
      %c0_16 = arith.constant 0 : index
      %17 = vector.load %arg6[%c0_15, %c0_16] : memref<1x512xf32, #tpu.memory_space<vmem>>, vector<1x512xf32>
      %18 = vector.broadcast %17 : vector<1x512xf32> to vector<2x512xf32>
      %19 = arith.addf %16, %18 : vector<2x512xf32>
      %cst_17 = arith.constant 0.000000e+00 : f32
      %20 = vector.broadcast %cst_17 : f32 to vector<2x512xf32>
      %21 = arith.maximumf %19, %20 : vector<2x512xf32>
      %c0_18 = arith.constant 0 : index
      %c0_19 = arith.constant 0 : index
      %22 = vector.load %arg7[%c0_18, %c0_19] : memref<1x512xf32, #tpu.memory_space<vmem>>, vector<1x512xf32>
      %23 = vector.broadcast %22 : vector<1x512xf32> to vector<2x512xf32>
      %24 = arith.mulf %21, %23 : vector<2x512xf32>
      %cst_20 = arith.constant dense<0.000000e+00> : vector<2xf32>
      %25 = vector.multi_reduction <add>, %24, %cst_20 [1] : vector<2x512xf32> to vector<2xf32>
      %26 = vector.shape_cast %25 : vector<2xf32> to vector<2x1xf32>
      %c0_21 = arith.constant 0 : index
      %c0_22 = arith.constant 0 : index
      %27 = vector.load %arg8[%c0_21, %c0_22] : memref<1x1xf32, #tpu.memory_space<vmem>>, vector<1x1xf32>
      %28 = vector.broadcast %27 : vector<1x1xf32> to vector<2x1xf32>
      %29 = arith.addf %26, %28 : vector<2x1xf32>
      %c0_23 = arith.constant 0 : index
      %c0_24 = arith.constant 0 : index
      %30 = vector.load %arg9[%c0_23, %c0_24] : memref<2x1xf32, #tpu.memory_space<vmem>>, vector<2x1xf32>
      tpu.vector_store %arg9[%c0_23, %c0_24], %29 {strides = array<i32>} : memref<2x1xf32, #tpu.memory_space<vmem>>, vector<2x1xf32>,
    } else {
    }
    return
  }
  func.func @transform_0(%arg0: i32, %arg1: i32) -> (i32, i32) {
    %c0_i32 = arith.constant 0 : i32
    return %arg0, %arg1 : i32, i32
  }
  func.func @transform_1(%arg0: i32, %arg1: i32) -> (i32, i32) {
    %c0_i32 = arith.constant 0 : i32
    %c0_i32_0 = arith.constant 0 : i32
    return %arg1, %c0_i32 : i32, i32
  }
  func.func @transform_2(%arg0: i32, %arg1: i32) -> (i32, i32) {
    %c0_i32 = arith.constant 0 : i32
    %c0_i32_0 = arith.constant 0 : i32
    %c0_i32_1 = arith.constant 0 : i32
    return %c0_i32, %c0_i32_0 : i32, i32
  }
  func.func @transform_3(%arg0: i32, %arg1: i32) -> (i32, i32) {
    %c0_i32 = arith.constant 0 : i32
    %c0_i32_0 = arith.constant 0 : i32
    %c0_i32_1 = arith.constant 0 : i32
    return %c0_i32, %c0_i32_0 : i32, i32
  }
  func.func @transform_4(%arg0: i32, %arg1: i32) -> (i32, i32) {
    %c0_i32 = arith.constant 0 : i32
    %c0_i32_0 = arith.constant 0 : i32
    %c0_i32_1 = arith.constant 0 : i32
    return %c0_i32, %c0_i32_0 : i32, i32
  }
  func.func @transform_5(%arg0: i32, %arg1: i32) -> (i32, i32) {
    %c0_i32 = arith.constant 0 : i32
    %c0_i32_0 = arith.constant 0 : i32
    %c0_i32_1 = arith.constant 0 : i32
    return %c0_i32, %c0_i32_0 : i32, i32
  }
  func.func @transform_6(%arg0: i32, %arg1: i32) -> (i32, i32) {
    %c0_i32 = arith.constant 0 : i32
    %c0_i32_0 = arith.constant 0 : i32
    %c0_i32_1 = arith.constant 0 : i32
    return %c0_i32, %c0_i32_0 : i32, i32
  }
  func.func @transform_7(%arg0: i32, %arg1: i32) -> (i32, i32) {
    %c0_i32 = arith.constant 0 : i32
    %c0_i32_0 = arith.constant 0 : i32
    return %arg0, %c0_i32 : i32, i32
  }
}

</mosaic_0001>

<llo_original>
// kernel: tpu_custom_call.1
$region0: #{tpu_custom_call.1}
  #allocation0 [shape = 'u32[]', space=smem, size = 0x4, offset = 0x4, fixed_abs, tag = 'smem constant byte address 0x4 - core index']
  #allocation1 [shape = 'u32[144,128]{1,0:T(1,128)}', space=vmem, size = 0x12000, scoped, tag = 'internal scratch']
  #allocation2 [shape = 'f32[2,512]{1,0:T(2,128)}', space=vmem, size = 0x1000, scoped, tag = 'scratch operand']
  #allocation3 [shape = 'f32[1,1]{1,0:T(1,128)S(1)}', space=vmem, size = 0x200, scoped, tag = 'scoped memory for tpu_custom_call.1']
  %s0 = inlined_call_operand.hbm [shape: f32[2,8192], index: 0, kind: input, shape index: {}]
  %s1 = inlined_call_operand.hbm [shape: f32[8192,512], index: 1, kind: input, shape index: {}]
  %s2 = inlined_call_operand.hbm [shape: f32[1,512], index: 2, kind: input, shape index: {}]
  %s3 = inlined_call_operand.hbm [shape: f32[512,512], index: 3, kind: input, shape index: {}]
  %s4 = inlined_call_operand.hbm [shape: f32[1,512], index: 4, kind: input, shape index: {}]
  %s5 = inlined_call_operand.hbm [shape: f32[1,512], index: 5, kind: input, shape index: {}]
  %s6 = inlined_call_operand.<no memory space> [shape: f32[1,1], index: 6, kind: input, shape index: {}]
  %s7 = inlined_call_operand.vmem [shape: f32[2,1], index: 7, kind: output, shape index: {}]
  %s8 = sld [smem:[#allocation0]]
  $region93: #{tpu_custom_call.1} parent=0
    _
  %s10 = ssub.s32 1, %s8
  %s11 = scalar_select 0, %s10, %s8
  %v12 = vstv %s6
  %13 = vst [vmem:[#allocation3] sm:$0x1] %v12
  $region1: #{tpu_custom_call.1} parent=0
    #allocation4 [shape = 'u8[32768]{0}', space=vmem, size = 0x8000, scoped, tag = 'input window, operand 0']
    #allocation5 [shape = 's32[2]{0}', space=sflag, size = 0x8, scoped, tag = 'scoped memory for tpu_custom_call.1']
    #allocation6 [shape = 'u8[8388608]{0}', space=vmem, size = 0x800000, scoped, tag = 'input window, operand 1']
    #allocation7 [shape = 's32[2]{0}', space=sflag, size = 0x8, scoped, tag = 'scoped memory for tpu_custom_call.1']
    #allocation8 [shape = 'u8[2048]{0}', space=vmem, size = 0x800, scoped, tag = 'input window, operand 2, single buffered']
    #allocation9 [shape = 'u8[1048576]{0}', space=vmem, size = 0x100000, scoped, tag = 'input window, operand 3, single buffered']
    #allocation10 [shape = 's32[1]{0}', space=sflag, size = 0x4, scoped, tag = 'scoped memory for tpu_custom_call.1']
    #allocation11 [shape = 'u8[2048]{0}', space=vmem, size = 0x800, scoped, tag = 'input window, operand 4, single buffered']
    #allocation12 [shape = 'u8[2048]{0}', space=vmem, size = 0x800, scoped, tag = 'input window, operand 5, single buffered']
    #allocation13 [shape = 's32[1]{0}', space=sflag, size = 0x4, scoped, tag = 'scoped memory for tpu_custom_call.1']
    %14 = vsyncpa [#allocation5], 0
    %s15 = scalar_lea.sflag [#allocation5], 1
    %16 = vsyncpa %s15, 0
    %17 = vsyncpa [#allocation7], 0
    %s18 = scalar_lea.sflag [#allocation7], 1
    %19 = vsyncpa %s18, 0
    %20 = vsyncpa [#allocation10], 0
    %21 = vsyncpa [#allocation13], 0
    loop: start=0, step=1, limit=6
    $region2: #{tpu_custom_call.1} parent=1 // loop_pre_header
      _
    $region3: #{tpu_custom_call.1} parent=1 // loop_header
      %s23 = sphi 0, %s27
      %p24 = scmp.ge.s32.totalorder %s23, 6
      %s30 = sphi 0, %s42
      %s31 = sphi 0, %s38
      %s32 = sphi 0, %s30
      %s33 = sphi 0, %s31
      %s34 = sphi 0, %s32
      %s35 = sphi 0, %s33
      %s47 = sphi 0, %s49
      %s50 = sphi 0, %s47
      %s51 = sphi 0, %s50
      %s67 = sphi 0, %s51
      %s73 = sphi 0, %s75
      %s76 = sphi 0, %s73
      %s77 = sphi 0, %s76
      %s93 = sphi 0, %s77
      %s97 = sphi 0, %s97
      %s99 = sphi 0, %s97
      %s100 = sphi 0, %s99
      %s114 = sphi 0, %s100
      %s118 = sphi 0, %s118
      %s120 = sphi 0, %s118
      %s121 = sphi 0, %s120
      %s135 = sphi 0, %s121
      %s139 = sphi 0, %s139
      %s141 = sphi 0, %s139
      %s142 = sphi 0, %s141
      %s156 = sphi 0, %s142
      %s160 = sphi 0, %s160
      %s162 = sphi 0, %s160
      %s163 = sphi 0, %s162
      %s177 = sphi 0, %s163
      %s181 = sphi 0, %s181
      %s183 = sphi 0, %s181
      %s184 = sphi 0, %s183
      %s198 = sphi 0, %s184
      %s204 = sphi 0, %s206
      %s207 = sphi 0, %s204
      %s208 = sphi 0, %s207
      %s224 = sphi 0, %s208
    $region4: #{tpu_custom_call.1} parent=1 // loop_header_branch
      %26 = sbr.rel (%p24) target = $region8
    $region5: #{tpu_custom_call.1} parent=1 // loop_body
      %s28 = ssub.s32 %s23, 1
      %s29 = ssub.s32 %s23, 2
      %s36 = sadd.s32 1, %s31
      %p37 = scmp.ge.s32.totalorder %s36, 4
      %s38 = scalar_select %p37, 0, %s36
      %s39 = sadd.s32 1, %s30
      %s40 = scalar_select %p37, %s39, %s30
      %p41 = scmp.ge.s32.totalorder %s40, 1
      %s42 = scalar_select %p41, 0, %s40
      %s43 = ssub.s32 %s30, %s42
      %s44 = ssub.s32 %s31, %s38
      %s45 = sor.u32 %s43, %s44
      %p46 = scmp.eq.s32.totalorder %s45, 0
      %s48 = sadd.s32 %s47, 1
      %s49 = scalar_select %p46, %s47, %s48
      %p52 = pneg %p46
      %p53 = scmp.eq.s32.totalorder %s23, 3
      %p54 = por %p52, %p53
      %p55 = scmp.ne.s32.totalorder %s47, %s50
      %p56 = scmp.eq.s32.totalorder %s23, 0
      %p57 = por %p55, %p56
      %p58 = scmp.ne.s32.totalorder %s47, %s50
      %p59 = scmp.eq.s32.totalorder %s28, 3
      %p60 = por %p58, %p59
      %p61 = scmp.ne.s32.totalorder %s50, %s51
      %p62 = scmp.eq.s32.totalorder %s28, 0
      %p63 = por %p61, %p62
      %p64 = scmp.ne.s32.totalorder %s50, %s51
      %p65 = scmp.eq.s32.totalorder %s29, 3
      %p66 = por %p64, %p65
      %p68 = scmp.ne.s32.totalorder %s51, %s67
      %p69 = scmp.eq.s32.totalorder %s29, 0
      %p70 = por %p68, %p69
      %s71 = ssub.s32 %s31, %s38
      %p72 = scmp.eq.s32.totalorder %s71, 0
      %s74 = sadd.s32 %s73, 1
      %s75 = scalar_select %p72, %s73, %s74
      %p78 = pneg %p72
      %p79 = scmp.eq.s32.totalorder %s23, 3
      %p80 = por %p78, %p79
      %p81 = scmp.ne.s32.totalorder %s73, %s76
      %p82 = scmp.eq.s32.totalorder %s23, 0
      %p83 = por %p81, %p82
      %p84 = scmp.ne.s32.totalorder %s73, %s76
      %p85 = scmp.eq.s32.totalorder %s28, 3
      %p86 = por %p84, %p85
      %p87 = scmp.ne.s32.totalorder %s76, %s77
      %p88 = scmp.eq.s32.totalorder %s28, 0
      %p89 = por %p87, %p88
      %p90 = scmp.ne.s32.totalorder %s76, %s77
      %p91 = scmp.eq.s32.totalorder %s29, 3
      %p92 = por %p90, %p91
      %p94 = scmp.ne.s32.totalorder %s77, %s93
      %p95 = scmp.eq.s32.totalorder %s29, 0
      %p96 = por %p94, %p95
      %s98 = sadd.s32 %s97, 1
      %p101 = scmp.eq.s32.totalorder %s23, 3
      %p102 = scmp.ne.s32.totalorder %s97, %s99
      %p103 = scmp.eq.s32.totalorder %s23, 0
      %p104 = por %p102, %p103
      %p105 = scmp.ne.s32.totalorder %s97, %s99
      %p106 = scmp.eq.s32.totalorder %s28, 3
      %p107 = por %p105, %p106
      %p108 = scmp.ne.s32.totalorder %s99, %s100
      %p109 = scmp.eq.s32.totalorder %s28, 0
      %p110 = por %p108, %p109
      %p111 = scmp.ne.s32.totalorder %s99, %s100
      %p112 = scmp.eq.s32.totalorder %s29, 3
      %p113 = por %p111, %p112
      %p115 = scmp.ne.s32.totalorder %s100, %s114
      %p116 = scmp.eq.s32.totalorder %s29, 0
      %p117 = por %p115, %p116
      %s119 = sadd.s32 %s118, 1
      %p122 = scmp.eq.s32.totalorder %s23, 3
      %p123 = scmp.ne.s32.totalorder %s118, %s120
      %p124 = scmp.eq.s32.totalorder %s23, 0
      %p125 = por %p123, %p124
      %p126 = scmp.ne.s32.totalorder %s118, %s120
      %p127 = scmp.eq.s32.totalorder %s28, 3
      %p128 = por %p126, %p127
      %p129 = scmp.ne.s32.totalorder %s120, %s121
      %p130 = scmp.eq.s32.totalorder %s28, 0
      %p131 = por %p129, %p130
      %p132 = scmp.ne.s32.totalorder %s120, %s121
      %p133 = scmp.eq.s32.totalorder %s29, 3
      %p134 = por %p132, %p133
      %p136 = scmp.ne.s32.totalorder %s121, %s135
      %p137 = scmp.eq.s32.totalorder %s29, 0
      %p138 = por %p136, %p137
      %s140 = sadd.s32 %s139, 1
      %p143 = scmp.eq.s32.totalorder %s23, 3
      %p144 = scmp.ne.s32.totalorder %s139, %s141
      %p145 = scmp.eq.s32.totalorder %s23, 0
      %p146 = por %p144, %p145
      %p147 = scmp.ne.s32.totalorder %s139, %s141
      %p148 = scmp.eq.s32.totalorder %s28, 3
      %p149 = por %p147, %p148
      %p150 = scmp.ne.s32.totalorder %s141, %s142
      %p151 = scmp.eq.s32.totalorder %s28, 0
      %p152 = por %p150, %p151
      %p153 = scmp.ne.s32.totalorder %s141, %s142
      %p154 = scmp.eq.s32.totalorder %s29, 3
      %p155 = por %p153, %p154
      %p157 = scmp.ne.s32.totalorder %s142, %s156
      %p158 = scmp.eq.s32.totalorder %s29, 0
      %p159 = por %p157, %p158
      %s161 = sadd.s32 %s160, 1
      %p164 = scmp.eq.s32.totalorder %s23, 3
      %p165 = scmp.ne.s32.totalorder %s160, %s162
      %p166 = scmp.eq.s32.totalorder %s23, 0
      %p167 = por %p165, %p166
      %p168 = scmp.ne.s32.totalorder %s160, %s162
      %p169 = scmp.eq.s32.totalorder %s28, 3
      %p170 = por %p168, %p169
      %p171 = scmp.ne.s32.totalorder %s162, %s163
      %p172 = scmp.eq.s32.totalorder %s28, 0
      %p173 = por %p171, %p172
      %p174 = scmp.ne.s32.totalorder %s162, %s163
      %p175 = scmp.eq.s32.totalorder %s29, 3
      %p176 = por %p174, %p175
      %p178 = scmp.ne.s32.totalorder %s163, %s177
      %p179 = scmp.eq.s32.totalorder %s29, 0
      %p180 = por %p178, %p179
      %s182 = sadd.s32 %s181, 1
      %p185 = scmp.eq.s32.totalorder %s23, 3
      %p186 = scmp.ne.s32.totalorder %s181, %s183
      %p187 = scmp.eq.s32.totalorder %s23, 0
      %p188 = por %p186, %p187
      %p189 = scmp.ne.s32.totalorder %s181, %s183
      %p190 = scmp.eq.s32.totalorder %s28, 3
      %p191 = por %p189, %p190
      %p192 = scmp.ne.s32.totalorder %s183, %s184
      %p193 = scmp.eq.s32.totalorder %s28, 0
      %p194 = por %p192, %p193
      %p195 = scmp.ne.s32.totalorder %s183, %s184
      %p196 = scmp.eq.s32.totalorder %s29, 3
      %p197 = por %p195, %p196
      %p199 = scmp.ne.s32.totalorder %s184, %s198
      %p200 = scmp.eq.s32.totalorder %s29, 0
      %p201 = por %p199, %p200
      %s202 = ssub.s32 %s30, %s42
      %p203 = scmp.eq.s32.totalorder %s202, 0
      %s205 = sadd.s32 %s204, 1
      %s206 = scalar_select %p203, %s204, %s205
      %p209 = pneg %p203
      %p210 = scmp.eq.s32.totalorder %s23, 3
      %p211 = por %p209, %p210
      %p212 = scmp.ne.s32.totalorder %s204, %s207
      %p213 = scmp.eq.s32.totalorder %s23, 0
      %p214 = por %p212, %p213
      %p215 = scmp.ne.s32.totalorder %s204, %s207
      %p216 = scmp.eq.s32.totalorder %s28, 3
      %p217 = por %p215, %p216
      %p218 = scmp.ne.s32.totalorder %s207, %s208
      %p219 = scmp.eq.s32.totalorder %s28, 0
      %p220 = por %p218, %p219
      %p221 = scmp.ne.s32.totalorder %s207, %s208
      %p222 = scmp.eq.s32.totalorder %s29, 3
      %p223 = por %p221, %p222
      %p225 = scmp.ne.s32.totalorder %s208, %s224
      %p226 = scmp.eq.s32.totalorder %s29, 0
      %p227 = por %p225, %p226
      %p228 = scmp.le.s32.totalorder 1, %s23
      %p229 = scmp.lt.s32.totalorder %s23, 5
      %p230 = pnand %p228, %p229
      %p231 = pneg %p230
      // Predicated region
      $region9: #{tpu_custom_call.1} parent=5 // pred_check
        _
      $region10: #{tpu_custom_call.1} parent=5 // pred_check_branch
        %233 = sbr.rel (%p230) target = $region12
      $region11: #{tpu_custom_call.1} parent=5 // pred_region
        %s234 = ssub.s32 %s23, 1
        // Predicated region
        $region13: #{tpu_custom_call.1} parent=11 // pred_check
          %p235 = pneg %p110
        $region14: #{tpu_custom_call.1} parent=11 // pred_check_branch
          %237 = sbr.rel (%p235) target = $region16
        $region15: #{tpu_custom_call.1} parent=11 // pred_region
          %s239 = ssub.s32 64, 64
          %240 = vsyncadd [#allocation7], %s239
          %s242 = sshll.u32 [#allocation8], 4
          %s243 = int_to_ptr.vmem [resolvable:$true] %s242
          %245 = dma.hbm_to_vmem [thread:$0]  %s2, 64, %s243, [#allocation7]
        $region16: #{tpu_custom_call.1} parent=11 // pred_fallthru
          _
        // Predicated region
        $region17: #{tpu_custom_call.1} parent=11 // pred_check
          %p246 = pneg %p131
        $region18: #{tpu_custom_call.1} parent=11 // pred_check_branch
          %248 = sbr.rel (%p246) target = $region20
        $region19: #{tpu_custom_call.1} parent=11 // pred_region
          %s250 = ssub.s32 32768, 32768
          %251 = vsyncadd [#allocation10], %s250
          %s252 = sshll.u32 [#allocation9], 4
          %s253 = int_to_ptr.vmem [resolvable:$true] %s252
          %258 = dma.hbm_to_vmem [thread:$0]  %s3, 32768, %s253, [#allocation10], 512, 512, 32
        $region20: #{tpu_custom_call.1} parent=11 // pred_fallthru
          _
        // Predicated region
        $region21: #{tpu_custom_call.1} parent=11 // pred_check
          %p259 = pneg %p152
        $region22: #{tpu_custom_call.1} parent=11 // pred_check_branch
          %261 = sbr.rel (%p259) target = $region24
        $region23: #{tpu_custom_call.1} parent=11 // pred_region
          %s263 = ssub.s32 64, 64
          %264 = vsyncadd [#allocation10], %s263
          %s266 = sshll.u32 [#allocation11], 4
          %s267 = int_to_ptr.vmem [resolvable:$true] %s266
          %269 = dma.hbm_to_vmem [thread:$0]  %s4, 64, %s267, [#allocation10]
        $region24: #{tpu_custom_call.1} parent=11 // pred_fallthru
          _
        // Predicated region
        $region25: #{tpu_custom_call.1} parent=11 // pred_check
          %p270 = pneg %p173
        $region26: #{tpu_custom_call.1} parent=11 // pred_check_branch
          %272 = sbr.rel (%p270) target = $region28
        $region27: #{tpu_custom_call.1} parent=11 // pred_region
          %s274 = ssub.s32 64, 64
          %275 = vsyncadd [#allocation13], %s274
          %s277 = sshll.u32 [#allocation12], 4
          %s278 = int_to_ptr.vmem [resolvable:$true] %s277
          %280 = dma.hbm_to_vmem [thread:$0]  %s5, 64, %s278, [#allocation13]
        $region28: #{tpu_custom_call.1} parent=11 // pred_fallthru
          _
        // Predicated region
        $region29: #{tpu_custom_call.1} parent=11 // pred_check
          %p281 = pneg %p194
        $region30: #{tpu_custom_call.1} parent=11 // pred_check_branch
          %283 = sbr.rel (%p281) target = $region32
        $region31: #{tpu_custom_call.1} parent=11 // pred_region
          _
        $region32: #{tpu_custom_call.1} parent=11 // pred_fallthru
          _
      $region12: #{tpu_custom_call.1} parent=5 // pred_fallthru
        _
      %p284 = scmp.lt.s32.totalorder %s23, 4
      // Predicated region
      $region33: #{tpu_custom_call.1} parent=5 // pred_check
        %p285 = pneg %p284
      $region34: #{tpu_custom_call.1} parent=5 // pred_check_branch
        %287 = sbr.rel (%p285) target = $region36
      $region35: #{tpu_custom_call.1} parent=5 // pred_region
        // Predicated region
        $region37: #{tpu_custom_call.1} parent=35 // pred_check
          %p288 = pneg %p57
        $region38: #{tpu_custom_call.1} parent=35 // pred_check_branch
          %290 = sbr.rel (%p288) target = $region40
        $region39: #{tpu_custom_call.1} parent=35 // pred_region
          %s291 = sand.u32 %s47, 1
          %s292 = scalar_lea.sflag [#allocation5], %s291
          %s293 = sand.u32 %s47, 1
          %s294 = smul.addr %s293, 32
          %s295 = scalar_lea.vmem [#allocation4], %s294
          %s296 = smul.u32 16, %s31
          %s298 = ssub.s32 512, 512
          %299 = vsyncadd %s292, %s298
          %s300 = smul.addr %s30, 64
          %s301 = sadd.s32 %s296, %s300
          %s302 = smul.addr %s301, 32
          %s303 = scalar_lea.hbm %s0, %s302
          %s305 = sshll.u32 %s295, 4
          %s306 = int_to_ptr.vmem [resolvable:$true] %s305
          %308 = dma.hbm_to_vmem [thread:$0]  %s303, 512, %s306, %s292
        $region40: #{tpu_custom_call.1} parent=35 // pred_fallthru
          _
        // Predicated region
        $region41: #{tpu_custom_call.1} parent=35 // pred_check
          %p309 = pneg %p83
        $region42: #{tpu_custom_call.1} parent=35 // pred_check_branch
          %311 = sbr.rel (%p309) target = $region44
        $region43: #{tpu_custom_call.1} parent=35 // pred_region
          %s312 = sand.u32 %s23, 1
          %s313 = scalar_lea.sflag [#allocation7], %s312
          %s314 = sand.u32 %s73, 1
          %s315 = smul.addr %s314, 8192
          %s316 = scalar_lea.vmem [#allocation6], %s315
          %s317 = smul.u32 256, %s31
          %s319 = ssub.s32 131072, 131072
          %320 = vsyncadd %s313, %s319
          %s321 = smul.addr %s317, 4
          %s322 = smul.addr %s321, 128
          %s323 = scalar_lea.hbm %s1, %s322
          %s324 = sshll.u32 %s316, 4
          %s325 = int_to_ptr.vmem [resolvable:$true] %s324
          %330 = dma.hbm_to_vmem [thread:$0]  %s323, 131072, %s325, %s313, 512, 512, 32
        $region44: #{tpu_custom_call.1} parent=35 // pred_fallthru
          _
      $region36: #{tpu_custom_call.1} parent=5 // pred_fallthru
        _
      %p331 = scmp.le.s32.totalorder 1, %s23
      %p332 = scmp.lt.s32.totalorder %s23, 5
      %p333 = pnand %p331, %p332
      %p334 = pneg %p333
      // Predicated region
      $region45: #{tpu_custom_call.1} parent=5 // pred_check
        _
      $region46: #{tpu_custom_call.1} parent=5 // pred_check_branch
        %336 = sbr.rel (%p333) target = $region48
      $region47: #{tpu_custom_call.1} parent=5 // pred_region
        %s337 = ssub.s32 %s23, 1
        %s338 = sand.u32 %s50, 1
        %s339 = scalar_lea.sflag [#allocation5], %s338
        %s340 = sand.u32 %s50, 1
        %s341 = smul.addr %s340, 32
        %s342 = scalar_lea.vmem [#allocation4], %s341
        // Predicated region
        $region49: #{tpu_custom_call.1} parent=47 // pred_check
          %p343 = pneg %p63
        $region50: #{tpu_custom_call.1} parent=47 // pred_check_branch
          %345 = sbr.rel (%p343) target = $region52
        $region51: #{tpu_custom_call.1} parent=47 // pred_region
          %346 = dma.done %s339, 512
        $region52: #{tpu_custom_call.1} parent=47 // pred_fallthru
          _
        %s347 = sand.u32 %s28, 1
        %s348 = scalar_lea.sflag [#allocation7], %s347
        %s349 = sand.u32 %s76, 1
        %s350 = smul.addr %s349, 8192
        %s351 = scalar_lea.vmem [#allocation6], %s350
        // Predicated region
        $region53: #{tpu_custom_call.1} parent=47 // pred_check
          %p352 = pneg %p89
        $region54: #{tpu_custom_call.1} parent=47 // pred_check_branch
          %354 = sbr.rel (%p352) target = $region56
        $region55: #{tpu_custom_call.1} parent=47 // pred_region
          %355 = dma.done %s348, 131072
        $region56: #{tpu_custom_call.1} parent=47 // pred_fallthru
          _
        // Predicated region
        $region57: #{tpu_custom_call.1} parent=47 // pred_check
          %p356 = pneg %p110
        $region58: #{tpu_custom_call.1} parent=47 // pred_check_branch
          %358 = sbr.rel (%p356) target = $region60
        $region59: #{tpu_custom_call.1} parent=47 // pred_region
          %359 = dma.done [#allocation7], 64
        $region60: #{tpu_custom_call.1} parent=47 // pred_fallthru
          _
        // Predicated region
        $region61: #{tpu_custom_call.1} parent=47 // pred_check
          %p360 = pneg %p131
        $region62: #{tpu_custom_call.1} parent=47 // pred_check_branch
          %362 = sbr.rel (%p360) target = $region64
        $region63: #{tpu_custom_call.1} parent=47 // pred_region
          %363 = dma.done [#allocation10], 32768
        $region64: #{tpu_custom_call.1} parent=47 // pred_fallthru
          _
        // Predicated region
        $region65: #{tpu_custom_call.1} parent=47 // pred_check
          %p364 = pneg %p152
        $region66: #{tpu_custom_call.1} parent=47 // pred_check_branch
          %366 = sbr.rel (%p364) target = $region68
        $region67: #{tpu_custom_call.1} parent=47 // pred_region
          %367 = dma.done [#allocation10], 64
        $region68: #{tpu_custom_call.1} parent=47 // pred_fallthru
          _
        // Predicated region
        $region69: #{tpu_custom_call.1} parent=47 // pred_check
          %p368 = pneg %p173
        $region70: #{tpu_custom_call.1} parent=47 // pred_check_branch
          %370 = sbr.rel (%p368) target = $region72
        $region71: #{tpu_custom_call.1} parent=47 // pred_region
          %371 = dma.done [#allocation13], 64
        $region72: #{tpu_custom_call.1} parent=47 // pred_fallthru
          _
        %s372 = sand.u32 %s50, 1
        %s373 = scalar_lea.sflag [#allocation5], %s372
        %s374 = sand.u32 %s50, 1
        %s375 = smul.addr %s374, 32
        %s376 = scalar_lea.vmem [#allocation4], %s375
        %p377 = pneg %p63
        %p378 = pneg %p60
        %s379 = sand.u32 %s28, 1
        %s380 = scalar_lea.sflag [#allocation7], %s379
        %s381 = sand.u32 %s76, 1
        %s382 = smul.addr %s381, 8192
        %s383 = scalar_lea.vmem [#allocation6], %s382
        %p384 = pneg %p89
        %p385 = pneg %p86
        %p386 = pneg %p110
        %p387 = pneg %p107
        %p388 = pneg %p131
        %p389 = pneg %p128
        %p390 = pneg %p152
        %p391 = pneg %p149
        %p392 = pneg %p173
        %p393 = pneg %p170
        %p394 = pneg %p194
        %p395 = pneg %p191
        %p396 = pneg %p220
        %p397 = pneg %p217
        %p398 = scmp.lt.s32.totalorder %s32, 0
        %s399 = scalar_select %p398, %s32, 0
        %s400 = smul.addr %s399, 2
        %s401 = scalar_lea.vmem %s7, %s400
        %s402 = smul.u32 16, %s33
        %s403 = smul.u32 256, %s33
        %p404 = scmp.lt.s32.totalorder %s32, 0
        %s405 = scalar_select %p404, %s32, 0
        %s406 = smul.addr %s405, 2
        %s407 = scalar_lea.vmem %s7, %s406
        %p408 = scmp.eq.s32.totalorder %s33, 0
        // Predicated region
        $region73: #{tpu_custom_call.1} parent=47 // pred_check
          %p409 = pneg %p408
        $region74: #{tpu_custom_call.1} parent=47 // pred_check_branch
          %411 = sbr.rel (%p409) target = $region76
        $region75: #{tpu_custom_call.1} parent=47 // pred_region
          %v412 = vld [vmem:[#allocation8] sm:$0xf]
          %v414 = vlaneseq
          %v415 = vshrl.u32 %v414, 7
          %v416 = vsub.s32 0, %v415
          %v417 = vrot.slane %v412, %v416
          %v418 = vlaneseq
          %v419 = vshrl.u32 %v418, 7
          %v420 = vsub.s32 1, %v419
          %v421 = vrot.slane %v412, %v420
          %v422 = vlaneseq
          %v423 = vshrl.u32 %v422, 7
          %v424 = vsub.s32 2, %v423
          %v425 = vrot.slane %v412, %v424
          %v426 = vlaneseq
          %v427 = vshrl.u32 %v426, 7
          %v428 = vsub.s32 3, %v427
          %v429 = vrot.slane %v412, %v428
          %v430 = vcombine.low %v417, %v421
          %v431 = vcombine.low %v425, %v429
          %v433 = vunpack.c.l.s4 1983009808
          %v434 = vunpack.c.0.s8 %v433
          %v435 = vlaneseq
          %v436 = vshrl.u32 %v435, 7
          %v437 = vsub.s32 %v434, %v436
          %v438 = vrot.slane %v430, %v437
          %v440 = vunpack.c.l.s4 1983009808
          %v441 = vunpack.c.0.s8 %v440
          %v442 = vlaneseq
          %v443 = vshrl.u32 %v442, 7
          %v444 = vsub.s32 %v441, %v443
          %v445 = vrot.slane %v431, %v444
          %v446 = vcombine.low %v438, %v445
          %448 = vst [vmem:[#allocation2] sm:$0xff] %v446
        $region76: #{tpu_custom_call.1} parent=47 // pred_fallthru
          _
        %v449 = vld [vmem:[#allocation2] sm:$0xff]
        %v450 = vld [vmem:[%s342] sm:$0xff]
        %v451 = vld [vmem:[%s342 + $0x8] sm:$0xff]
        %v452 = vld [vmem:[%s342 + $0x10] sm:$0xff]
        %v453 = vld [vmem:[%s342 + $0x18] sm:$0xff]
        %v454 = vld [vmem:[%s351] sm:$0xff]
        %v455 = vld [vmem:[%s351 + $0x8] sm:$0xff]
        %v456 = vld [vmem:[%s351 + $0x10] sm:$0xff]
        %v457 = vld [vmem:[%s351 + $0x18] sm:$0xff]
        %v458 = vld [vmem:[%s351 + $0x20] sm:$0xff]
        %v459 = vld [vmem:[%s351 + $0x28] sm:$0xff]
        %v460 = vld [vmem:[%s351 + $0x30] sm:$0xff]
        %v461 = vld [vmem:[%s351 + $0x38] sm:$0xff]
        %v462 = vld [vmem:[%s351 + $0x40] sm:$0xff]
        %v463 = vld [vmem:[%s351 + $0x48] sm:$0xff]
        %v464 = vld [vmem:[%s351 + $0x50] sm:$0xff]
        %v465 = vld [vmem:[%s351 + $0x58] sm:$0xff]
        %v466 = vld [vmem:[%s351 + $0x60] sm:$0xff]
        %v467 = vld [vmem:[%s351 + $0x68] sm:$0xff]
        %v468 = vld [vmem:[%s351 + $0x70] sm:$0xff]
        %v469 = vld [vmem:[%s351 + $0x78] sm:$0xff]
        %v470 = vld [vmem:[%s351 + $0x80] sm:$0xff]
        %v471 = vld [vmem:[%s351 + $0x88] sm:$0xff]
        %v472 = vld [vmem:[%s351 + $0x90] sm:$0xff]
        %v473 = vld [vmem:[%s351 + $0x98] sm:$0xff]
        %v474 = vld [vmem:[%s351 + $0xa0] sm:$0xff]
        %v475 = vld [vmem:[%s351 + $0xa8] sm:$0xff]
        %v476 = vld [vmem:[%s351 + $0xb0] sm:$0xff]
        %v477 = vld [vmem:[%s351 + $0xb8] sm:$0xff]
        %v478 = vld [vmem:[%s351 + $0xc0] sm:$0xff]
        %v479 = vld [vmem:[%s351 + $0xc8] sm:$0xff]
        %v480 = vld [vmem:[%s351 + $0xd0] sm:$0xff]
        %v481 = vld [vmem:[%s351 + $0xd8] sm:$0xff]
        %v482 = vld [vmem:[%s351 + $0xe0] sm:$0xff]
        %v483 = vld [vmem:[%s351 + $0xe8] sm:$0xff]
        %v484 = vld [vmem:[%s351 + $0xf0] sm:$0xff]
        %v485 = vld [vmem:[%s351 + $0xf8] sm:$0xff]
        %v486 = vld [vmem:[%s351 + $0x100] sm:$0xff]
        %v487 = vld [vmem:[%s351 + $0x108] sm:$0xff]
        %v488 = vld [vmem:[%s351 + $0x110] sm:$0xff]
        %v489 = vld [vmem:[%s351 + $0x118] sm:$0xff]
        %v490 = vld [vmem:[%s351 + $0x120] sm:$0xff]
        %v491 = vld [vmem:[%s351 + $0x128] sm:$0xff]
        %v492 = vld [vmem:[%s351 + $0x130] sm:$0xff]
        %v493 = vld [vmem:[%s351 + $0x138] sm:$0xff]
        %v494 = vld [vmem:[%s351 + $0x140] sm:$0xff]
        %v495 = vld [vmem:[%s351 + $0x148] sm:$0xff]
        %v496 = vld [vmem:[%s351 + $0x150] sm:$0xff]
        %v497 = vld [vmem:[%s351 + $0x158] sm:$0xff]
        %v498 = vld [vmem:[%s351 + $0x160] sm:$0xff]
        %v499 = vld [vmem:[%s351 + $0x168] sm:$0xff]
        %v500 = vld [vmem:[%s351 + $0x170] sm:$0xff]
        %v501 = vld [vmem:[%s351 + $0x178] sm:$0xff]
        %v502 = vld [vmem:[%s351 + $0x180] sm:$0xff]
        %v503 = vld [vmem:[%s351 + $0x188] sm:$0xff]
        %v504 = vld [vmem:[%s351 + $0x190] sm:$0xff]
        %v505 = vld [vmem:[%s351 + $0x198] sm:$0xff]
        %v506 = vld [vmem:[%s351 + $0x1a0] sm:$0xff]
        %v507 = vld [vmem:[%s351 + $0x1a8] sm:$0xff]
        %v508 = vld [vmem:[%s351 + $0x1b0] sm:$0xff]
        %v509 = vld [vmem:[%s351 + $0x1b8] sm:$0xff]
        %v510 = vld [vmem:[%s351 + $0x1c0] sm:$0xff]
        %v511 = vld [vmem:[%s351 + $0x1c8] sm:$0xff]
        %v512 = vld [vmem:[%s351 + $0x1d0] sm:$0xff]
        %v513 = vld [vmem:[%s351 + $0x1d8] sm:$0xff]
        %v514 = vld [vmem:[%s351 + $0x1e0] sm:$0xff]
        %v515 = vld [vmem:[%s351 + $0x1e8] sm:$0xff]
        %v516 = vld [vmem:[%s351 + $0x1f0] sm:$0xff]
        %v517 = vld [vmem:[%s351 + $0x1f8] sm:$0xff]
        %v518 = vld [vmem:[%s351 + $0x200] sm:$0xff]
        %v519 = vld [vmem:[%s351 + $0x208] sm:$0xff]
        %v520 = vld [vmem:[%s351 + $0x210] sm:$0xff]
        %v521 = vld [vmem:[%s351 + $0x218] sm:$0xff]
        %v522 = vld [vmem:[%s351 + $0x220] sm:$0xff]
        %v523 = vld [vmem:[%s351 + $0x228] sm:$0xff]
        %v524 = vld [vmem:[%s351 + $0x230] sm:$0xff]
        %v525 = vld [vmem:[%s351 + $0x238] sm:$0xff]
        %v526 = vld [vmem:[%s351 + $0x240] sm:$0xff]
        %v527 = vld [vmem:[%s351 + $0x248] sm:$0xff]
        %v528 = vld [vmem:[%s351 + $0x250] sm:$0xff]
        %v529 = vld [vmem:[%s351 + $0x258] sm:$0xff]
        %v530 = vld [vmem:[%s351 + $0x260] sm:$0xff]
        %v531 = vld [vmem:[%s351 + $0x268] sm:$0xff]
        %v532 = vld [vmem:[%s351 + $0x270] sm:$0xff]
        %v533 = vld [vmem:[%s351 + $0x278] sm:$0xff]
        %v534 = vld [vmem:[%s351 + $0x280] sm:$0xff]
        %v535 = vld [vmem:[%s351 + $0x288] sm:$0xff]
        %v536 = vld [vmem:[%s351 + $0x290] sm:$0xff]
        %v537 = vld [vmem:[%s351 + $0x298] sm:$0xff]
        %v538 = vld [vmem:[%s351 + $0x2a0] sm:$0xff]
        %v539 = vld [vmem:[%s351 + $0x2a8] sm:$0xff]
        %v540 = vld [vmem:[%s351 + $0x2b0] sm:$0xff]
        %v541 = vld [vmem:[%s351 + $0x2b8] sm:$0xff]
        %v542 = vld [vmem:[%s351 + $0x2c0] sm:$0xff]
        %v543 = vld [vmem:[%s351 + $0x2c8] sm:$0xff]
        %v544 = vld [vmem:[%s351 + $0x2d0] sm:$0xff]
        %v545 = vld [vmem:[%s351 + $0x2d8] sm:$0xff]
        %v546 = vld [vmem:[%s351 + $0x2e0] sm:$0xff]
        %v547 = vld [vmem:[%s351 + $0x2e8] sm:$0xff]
        %v548 = vld [vmem:[%s351 + $0x2f0] sm:$0xff]
        %v549 = vld [vmem:[%s351 + $0x2f8] sm:$0xff]
        %v550 = vld [vmem:[%s351 + $0x300] sm:$0xff]
        %v551 = vld [vmem:[%s351 + $0x308] sm:$0xff]
        %v552 = vld [vmem:[%s351 + $0x310] sm:$0xff]
        %v553 = vld [vmem:[%s351 + $0x318] sm:$0xff]
        %v554 = vld [vmem:[%s351 + $0x320] sm:$0xff]
        %v555 = vld [vmem:[%s351 + $0x328] sm:$0xff]
        %v556 = vld [vmem:[%s351 + $0x330] sm:$0xff]
        %v557 = vld [vmem:[%s351 + $0x338] sm:$0xff]
        %v558 = vld [vmem:[%s351 + $0x340] sm:$0xff]
        %v559 = vld [vmem:[%s351 + $0x348] sm:$0xff]
        %v560 = vld [vmem:[%s351 + $0x350] sm:$0xff]
        %v561 = vld [vmem:[%s351 + $0x358] sm:$0xff]
        %v562 = vld [vmem:[%s351 + $0x360] sm:$0xff]
        %v563 = vld [vmem:[%s351 + $0x368] sm:$0xff]
        %v564 = vld [vmem:[%s351 + $0x370] sm:$0xff]
        %v565 = vld [vmem:[%s351 + $0x378] sm:$0xff]
        %v566 = vld [vmem:[%s351 + $0x380] sm:$0xff]
        %v567 = vld [vmem:[%s351 + $0x388] sm:$0xff]
        %v568 = vld [vmem:[%s351 + $0x390] sm:$0xff]
        %v569 = vld [vmem:[%s351 + $0x398] sm:$0xff]
        %v570 = vld [vmem:[%s351 + $0x3a0] sm:$0xff]
        %v571 = vld [vmem:[%s351 + $0x3a8] sm:$0xff]
        %v572 = vld [vmem:[%s351 + $0x3b0] sm:$0xff]
        %v573 = vld [vmem:[%s351 + $0x3b8] sm:$0xff]
        %v574 = vld [vmem:[%s351 + $0x3c0] sm:$0xff]
        %v575 = vld [vmem:[%s351 + $0x3c8] sm:$0xff]
        %v576 = vld [vmem:[%s351 + $0x3d0] sm:$0xff]
        %v577 = vld [vmem:[%s351 + $0x3d8] sm:$0xff]
        %v578 = vld [vmem:[%s351 + $0x3e0] sm:$0xff]
        %v579 = vld [vmem:[%s351 + $0x3e8] sm:$0xff]
        %v580 = vld [vmem:[%s351 + $0x3f0] sm:$0xff]
        %v581 = vld [vmem:[%s351 + $0x3f8] sm:$0xff]
        %v582 = vld [vmem:[%s351 + $0x400] sm:$0xff]
        %v583 = vld [vmem:[%s351 + $0x408] sm:$0xff]
        %v584 = vld [vmem:[%s351 + $0x410] sm:$0xff]
        %v585 = vld [vmem:[%s351 + $0x418] sm:$0xff]
        %v586 = vld [vmem:[%s351 + $0x420] sm:$0xff]
        %v587 = vld [vmem:[%s351 + $0x428] sm:$0xff]
        %v588 = vld [vmem:[%s351 + $0x430] sm:$0xff]
        %v589 = vld [vmem:[%s351 + $0x438] sm:$0xff]
        %v590 = vld [vmem:[%s351 + $0x440] sm:$0xff]
        %v591 = vld [vmem:[%s351 + $0x448] sm:$0xff]
        %v592 = vld [vmem:[%s351 + $0x450] sm:$0xff]
        %v593 = vld [vmem:[%s351 + $0x458] sm:$0xff]
        %v594 = vld [vmem:[%s351 + $0x460] sm:$0xff]
        %v595 = vld [vmem:[%s351 + $0x468] sm:$0xff]
        %v596 = vld [vmem:[%s351 + $0x470] sm:$0xff]
        %v597 = vld [vmem:[%s351 + $0x478] sm:$0xff]
        %v598 = vld [vmem:[%s351 + $0x480] sm:$0xff]
        %v599 = vld [vmem:[%s351 + $0x488] sm:$0xff]
        %v600 = vld [vmem:[%s351 + $0x490] sm:$0xff]
        %v601 = vld [vmem:[%s351 + $0x498] sm:$0xff]
        %v602 = vld [vmem:[%s351 + $0x4a0] sm:$0xff]
        %v603 = vld [vmem:[%s351 + $0x4a8] sm:$0xff]
        %v604 = vld [vmem:[%s351 + $0x4b0] sm:$0xff]
        %v605 = vld [vmem:[%s351 + $0x4b8] sm:$0xff]
        %v606 = vld [vmem:[%s351 + $0x4c0] sm:$0xff]
        %v607 = vld [vmem:[%s351 + $0x4c8] sm:$0xff]
        %v608 = vld [vmem:[%s351 + $0x4d0] sm:$0xff]
        %v609 = vld [vmem:[%s351 + $0x4d8] sm:$0xff]
        %v610 = vld [vmem:[%s351 + $0x4e0] sm:$0xff]
        %v611 = vld [vmem:[%s351 + $0x4e8] sm:$0xff]
        %v612 = vld [vmem:[%s351 + $0x4f0] sm:$0xff]
        %v613 = vld [vmem:[%s351 + $0x4f8] sm:$0xff]
        %v614 = vld [vmem:[%s351 + $0x500] sm:$0xff]
        %v615 = vld [vmem:[%s351 + $0x508] sm:$0xff]
        %v616 = vld [vmem:[%s351 + $0x510] sm:$0xff]
        %v617 = vld [vmem:[%s351 + $0x518] sm:$0xff]
        %v618 = vld [vmem:[%s351 + $0x520] sm:$0xff]
        %v619 = vld [vmem:[%s351 + $0x528] sm:$0xff]
        %v620 = vld [vmem:[%s351 + $0x530] sm:$0xff]
        %v621 = vld [vmem:[%s351 + $0x538] sm:$0xff]
        %v622 = vld [vmem:[%s351 + $0x540] sm:$0xff]
        %v623 = vld [vmem:[%s351 + $0x548] sm:$0xff]
        %v624 = vld [vmem:[%s351 + $0x550] sm:$0xff]
        %v625 = vld [vmem:[%s351 + $0x558] sm:$0xff]
        %v626 = vld [vmem:[%s351 + $0x560] sm:$0xff]
        %v627 = vld [vmem:[%s351 + $0x568] sm:$0xff]
        %v628 = vld [vmem:[%s351 + $0x570] sm:$0xff]
        %v629 = vld [vmem:[%s351 + $0x578] sm:$0xff]
        %v630 = vld [vmem:[%s351 + $0x580] sm:$0xff]
        %v631 = vld [vmem:[%s351 + $0x588] sm:$0xff]
        %v632 = vld [vmem:[%s351 + $0x590] sm:$0xff]
        %v633 = vld [vmem:[%s351 + $0x598] sm:$0xff]
        %v634 = vld [vmem:[%s351 + $0x5a0] sm:$0xff]
        %v635 = vld [vmem:[%s351 + $0x5a8] sm:$0xff]
        %v636 = vld [vmem:[%s351 + $0x5b0] sm:$0xff]
        %v637 = vld [vmem:[%s351 + $0x5b8] sm:$0xff]
        %v638 = vld [vmem:[%s351 + $0x5c0] sm:$0xff]
        %v639 = vld [vmem:[%s351 + $0x5c8] sm:$0xff]
        %v640 = vld [vmem:[%s351 + $0x5d0] sm:$0xff]
        %v641 = vld [vmem:[%s351 + $0x5d8] sm:$0xff]
        %v642 = vld [vmem:[%s351 + $0x5e0] sm:$0xff]
        %v643 = vld [vmem:[%s351 + $0x5e8] sm:$0xff]
        %v644 = vld [vmem:[%s351 + $0x5f0] sm:$0xff]
        %v645 = vld [vmem:[%s351 + $0x5f8] sm:$0xff]
        %v646 = vld [vmem:[%s351 + $0x600] sm:$0xff]
        %v647 = vld [vmem:[%s351 + $0x608] sm:$0xff]
        %v648 = vld [vmem:[%s351 + $0x610] sm:$0xff]
        %v649 = vld [vmem:[%s351 + $0x618] sm:$0xff]
        %v650 = vld [vmem:[%s351 + $0x620] sm:$0xff]
        %v651 = vld [vmem:[%s351 + $0x628] sm:$0xff]
        %v652 = vld [vmem:[%s351 + $0x630] sm:$0xff]
        %v653 = vld [vmem:[%s351 + $0x638] sm:$0xff]
        %v654 = vld [vmem:[%s351 + $0x640] sm:$0xff]
        %v655 = vld [vmem:[%s351 + $0x648] sm:$0xff]
        %v656 = vld [vmem:[%s351 + $0x650] sm:$0xff]
        %v657 = vld [vmem:[%s351 + $0x658] sm:$0xff]
        %v658 = vld [vmem:[%s351 + $0x660] sm:$0xff]
        %v659 = vld [vmem:[%s351 + $0x668] sm:$0xff]
        %v660 = vld [vmem:[%s351 + $0x670] sm:$0xff]
        %v661 = vld [vmem:[%s351 + $0x678] sm:$0xff]
        %v662 = vld [vmem:[%s351 + $0x680] sm:$0xff]
        %v663 = vld [vmem:[%s351 + $0x688] sm:$0xff]
        %v664 = vld [vmem:[%s351 + $0x690] sm:$0xff]
        %v665 = vld [vmem:[%s351 + $0x698] sm:$0xff]
        %v666 = vld [vmem:[%s351 + $0x6a0] sm:$0xff]
        %v667 = vld [vmem:[%s351 + $0x6a8] sm:$0xff]
        %v668 = vld [vmem:[%s351 + $0x6b0] sm:$0xff]
        %v669 = vld [vmem:[%s351 + $0x6b8] sm:$0xff]
        %v670 = vld [vmem:[%s351 + $0x6c0] sm:$0xff]
        %v671 = vld [vmem:[%s351 + $0x6c8] sm:$0xff]
        %v672 = vld [vmem:[%s351 + $0x6d0] sm:$0xff]
        %v673 = vld [vmem:[%s351 + $0x6d8] sm:$0xff]
        %v674 = vld [vmem:[%s351 + $0x6e0] sm:$0xff]
        %v675 = vld [vmem:[%s351 + $0x6e8] sm:$0xff]
        %v676 = vld [vmem:[%s351 + $0x6f0] sm:$0xff]
        %v677 = vld [vmem:[%s351 + $0x6f8] sm:$0xff]
        %v678 = vld [vmem:[%s351 + $0x700] sm:$0xff]
        %v679 = vld [vmem:[%s351 + $0x708] sm:$0xff]
        %v680 = vld [vmem:[%s351 + $0x710] sm:$0xff]
        %v681 = vld [vmem:[%s351 + $0x718] sm:$0xff]
        %v682 = vld [vmem:[%s351 + $0x720] sm:$0xff]
        %v683 = vld [vmem:[%s351 + $0x728] sm:$0xff]
        %v684 = vld [vmem:[%s351 + $0x730] sm:$0xff]
        %v685 = vld [vmem:[%s351 + $0x738] sm:$0xff]
        %v686 = vld [vmem:[%s351 + $0x740] sm:$0xff]
        %v687 = vld [vmem:[%s351 + $0x748] sm:$0xff]
        %v688 = vld [vmem:[%s351 + $0x750] sm:$0xff]
        %v689 = vld [vmem:[%s351 + $0x758] sm:$0xff]
        %v690 = vld [vmem:[%s351 + $0x760] sm:$0xff]
        %v691 = vld [vmem:[%s351 + $0x768] sm:$0xff]
        %v692 = vld [vmem:[%s351 + $0x770] sm:$0xff]
        %v693 = vld [vmem:[%s351 + $0x778] sm:$0xff]
        %v694 = vld [vmem:[%s351 + $0x780] sm:$0xff]
        %v695 = vld [vmem:[%s351 + $0x788] sm:$0xff]
        %v696 = vld [vmem:[%s351 + $0x790] sm:$0xff]
        %v697 = vld [vmem:[%s351 + $0x798] sm:$0xff]
        %v698 = vld [vmem:[%s351 + $0x7a0] sm:$0xff]
        %v699 = vld [vmem:[%s351 + $0x7a8] sm:$0xff]
        %v700 = vld [vmem:[%s351 + $0x7b0] sm:$0xff]
        %v701 = vld [vmem:[%s351 + $0x7b8] sm:$0xff]
        %v702 = vld [vmem:[%s351 + $0x7c0] sm:$0xff]
        %v703 = vld [vmem:[%s351 + $0x7c8] sm:$0xff]
        %v704 = vld [vmem:[%s351 + $0x7d0] sm:$0xff]
        %v705 = vld [vmem:[%s351 + $0x7d8] sm:$0xff]
        %v706 = vld [vmem:[%s351 + $0x7e0] sm:$0xff]
        %v707 = vld [vmem:[%s351 + $0x7e8] sm:$0xff]
        %v708 = vld [vmem:[%s351 + $0x7f0] sm:$0xff]
        %v709 = vld [vmem:[%s351 + $0x7f8] sm:$0xff]
        %v710 = vld [vmem:[%s351 + $0x800] sm:$0xff]
        %v711 = vld [vmem:[%s351 + $0x808] sm:$0xff]
        %v712 = vld [vmem:[%s351 + $0x810] sm:$0xff]
        %v713 = vld [vmem:[%s351 + $0x818] sm:$0xff]
        %v714 = vld [vmem:[%s351 + $0x820] sm:$0xff]
        %v715 = vld [vmem:[%s351 + $0x828] sm:$0xff]
        %v716 = vld [vmem:[%s351 + $0x830] sm:$0xff]
        %v717 = vld [vmem:[%s351 + $0x838] sm:$0xff]
        %v718 = vld [vmem:[%s351 + $0x840] sm:$0xff]
        %v719 = vld [vmem:[%s351 + $0x848] sm:$0xff]
        %v720 = vld [vmem:[%s351 + $0x850] sm:$0xff]
        %v721 = vld [vmem:[%s351 + $0x858] sm:$0xff]
        %v722 = vld [vmem:[%s351 + $0x860] sm:$0xff]
        %v723 = vld [vmem:[%s351 + $0x868] sm:$0xff]
        %v724 = vld [vmem:[%s351 + $0x870] sm:$0xff]
        %v725 = vld [vmem:[%s351 + $0x878] sm:$0xff]
        %v726 = vld [vmem:[%s351 + $0x880] sm:$0xff]
        %v727 = vld [vmem:[%s351 + $0x888] sm:$0xff]
        %v728 = vld [vmem:[%s351 + $0x890] sm:$0xff]
        %v729 = vld [vmem:[%s351 + $0x898] sm:$0xff]
        %v730 = vld [vmem:[%s351 + $0x8a0] sm:$0xff]
        %v731 = vld [vmem:[%s351 + $0x8a8] sm:$0xff]
        %v732 = vld [vmem:[%s351 + $0x8b0] sm:$0xff]
        %v733 = vld [vmem:[%s351 + $0x8b8] sm:$0xff]
        %v734 = vld [vmem:[%s351 + $0x8c0] sm:$0xff]
        %v735 = vld [vmem:[%s351 + $0x8c8] sm:$0xff]
        %v736 = vld [vmem:[%s351 + $0x8d0] sm:$0xff]
        %v737 = vld [vmem:[%s351 + $0x8d8] sm:$0xff]
        %v738 = vld [vmem:[%s351 + $0x8e0] sm:$0xff]
        %v739 = vld [vmem:[%s351 + $0x8e8] sm:$0xff]
        %v740 = vld [vmem:[%s351 + $0x8f0] sm:$0xff]
        %v741 = vld [vmem:[%s351 + $0x8f8] sm:$0xff]
        %v742 = vld [vmem:[%s351 + $0x900] sm:$0xff]
        %v743 = vld [vmem:[%s351 + $0x908] sm:$0xff]
        %v744 = vld [vmem:[%s351 + $0x910] sm:$0xff]
        %v745 = vld [vmem:[%s351 + $0x918] sm:$0xff]
        %v746 = vld [vmem:[%s351 + $0x920] sm:$0xff]
        %v747 = vld [vmem:[%s351 + $0x928] sm:$0xff]
        %v748 = vld [vmem:[%s351 + $0x930] sm:$0xff]
        %v749 = vld [vmem:[%s351 + $0x938] sm:$0xff]
        %v750 = vld [vmem:[%s351 + $0x940] sm:$0xff]
        %v751 = vld [vmem:[%s351 + $0x948] sm:$0xff]
        %v752 = vld [vmem:[%s351 + $0x950] sm:$0xff]
        %v753 = vld [vmem:[%s351 + $0x958] sm:$0xff]
        %v754 = vld [vmem:[%s351 + $0x960] sm:$0xff]
        %v755 = vld [vmem:[%s351 + $0x968] sm:$0xff]
        %v756 = vld [vmem:[%s351 + $0x970] sm:$0xff]
        %v757 = vld [vmem:[%s351 + $0x978] sm:$0xff]
        %v758 = vld [vmem:[%s351 + $0x980] sm:$0xff]
        %v759 = vld [vmem:[%s351 + $0x988] sm:$0xff]
        %v760 = vld [vmem:[%s351 + $0x990] sm:$0xff]
        %v761 = vld [vmem:[%s351 + $0x998] sm:$0xff]
        %v762 = vld [vmem:[%s351 + $0x9a0] sm:$0xff]
        %v763 = vld [vmem:[%s351 + $0x9a8] sm:$0xff]
        %v764 = vld [vmem:[%s351 + $0x9b0] sm:$0xff]
        %v765 = vld [vmem:[%s351 + $0x9b8] sm:$0xff]
        %v766 = vld [vmem:[%s351 + $0x9c0] sm:$0xff]
        %v767 = vld [vmem:[%s351 + $0x9c8] sm:$0xff]
        %v768 = vld [vmem:[%s351 + $0x9d0] sm:$0xff]
        %v769 = vld [vmem:[%s351 + $0x9d8] sm:$0xff]
        %v770 = vld [vmem:[%s351 + $0x9e0] sm:$0xff]
        %v771 = vld [vmem:[%s351 + $0x9e8] sm:$0xff]
        %v772 = vld [vmem:[%s351 + $0x9f0] sm:$0xff]
        %v773 = vld [vmem:[%s351 + $0x9f8] sm:$0xff]
        %v774 = vld [vmem:[%s351 + $0xa00] sm:$0xff]
        %v775 = vld [vmem:[%s351 + $0xa08] sm:$0xff]
        %v776 = vld [vmem:[%s351 + $0xa10] sm:$0xff]
        %v777 = vld [vmem:[%s351 + $0xa18] sm:$0xff]
        %v778 = vld [vmem:[%s351 + $0xa20] sm:$0xff]
        %v779 = vld [vmem:[%s351 + $0xa28] sm:$0xff]
        %v780 = vld [vmem:[%s351 + $0xa30] sm:$0xff]
        %v781 = vld [vmem:[%s351 + $0xa38] sm:$0xff]
        %v782 = vld [vmem:[%s351 + $0xa40] sm:$0xff]
        %v783 = vld [vmem:[%s351 + $0xa48] sm:$0xff]
        %v784 = vld [vmem:[%s351 + $0xa50] sm:$0xff]
        %v785 = vld [vmem:[%s351 + $0xa58] sm:$0xff]
        %v786 = vld [vmem:[%s351 + $0xa60] sm:$0xff]
        %v787 = vld [vmem:[%s351 + $0xa68] sm:$0xff]
        %v788 = vld [vmem:[%s351 + $0xa70] sm:$0xff]
        %v789 = vld [vmem:[%s351 + $0xa78] sm:$0xff]
        %v790 = vld [vmem:[%s351 + $0xa80] sm:$0xff]
        %v791 = vld [vmem:[%s351 + $0xa88] sm:$0xff]
        %v792 = vld [vmem:[%s351 + $0xa90] sm:$0xff]
        %v793 = vld [vmem:[%s351 + $0xa98] sm:$0xff]
        %v794 = vld [vmem:[%s351 + $0xaa0] sm:$0xff]
        %v795 = vld [vmem:[%s351 + $0xaa8] sm:$0xff]
        %v796 = vld [vmem:[%s351 + $0xab0] sm:$0xff]
        %v797 = vld [vmem:[%s351 + $0xab8] sm:$0xff]
        %v798 = vld [vmem:[%s351 + $0xac0] sm:$0xff]
        %v799 = vld [vmem:[%s351 + $0xac8] sm:$0xff]
        %v800 = vld [vmem:[%s351 + $0xad0] sm:$0xff]
        %v801 = vld [vmem:[%s351 + $0xad8] sm:$0xff]
        %v802 = vld [vmem:[%s351 + $0xae0] sm:$0xff]
        %v803 = vld [vmem:[%s351 + $0xae8] sm:$0xff]
        %v804 = vld [vmem:[%s351 + $0xaf0] sm:$0xff]
        %v805 = vld [vmem:[%s351 + $0xaf8] sm:$0xff]
        %v806 = vld [vmem:[%s351 + $0xb00] sm:$0xff]
        %v807 = vld [vmem:[%s351 + $0xb08] sm:$0xff]
        %v808 = vld [vmem:[%s351 + $0xb10] sm:$0xff]
        %v809 = vld [vmem:[%s351 + $0xb18] sm:$0xff]
        %v810 = vld [vmem:[%s351 + $0xb20] sm:$0xff]
        %v811 = vld [vmem:[%s351 + $0xb28] sm:$0xff]
        %v812 = vld [vmem:[%s351 + $0xb30] sm:$0xff]
        %v813 = vld [vmem:[%s351 + $0xb38] sm:$0xff]
        %v814 = vld [vmem:[%s351 + $0xb40] sm:$0xff]
        %v815 = vld [vmem:[%s351 + $0xb48] sm:$0xff]
        %v816 = vld [vmem:[%s351 + $0xb50] sm:$0xff]
        %v817 = vld [vmem:[%s351 + $0xb58] sm:$0xff]
        %v818 = vld [vmem:[%s351 + $0xb60] sm:$0xff]
        %v819 = vld [vmem:[%s351 + $0xb68] sm:$0xff]
        %v820 = vld [vmem:[%s351 + $0xb70] sm:$0xff]
        %v821 = vld [vmem:[%s351 + $0xb78] sm:$0xff]
        %v822 = vld [vmem:[%s351 + $0xb80] sm:$0xff]
        %v823 = vld [vmem:[%s351 + $0xb88] sm:$0xff]
        %v824 = vld [vmem:[%s351 + $0xb90] sm:$0xff]
        %v825 = vld [vmem:[%s351 + $0xb98] sm:$0xff]
        %v826 = vld [vmem:[%s351 + $0xba0] sm:$0xff]
        %v827 = vld [vmem:[%s351 + $0xba8] sm:$0xff]
        %v828 = vld [vmem:[%s351 + $0xbb0] sm:$0xff]
        %v829 = vld [vmem:[%s351 + $0xbb8] sm:$0xff]
        %v830 = vld [vmem:[%s351 + $0xbc0] sm:$0xff]
        %v831 = vld [vmem:[%s351 + $0xbc8] sm:$0xff]
        %v832 = vld [vmem:[%s351 + $0xbd0] sm:$0xff]
        %v833 = vld [vmem:[%s351 + $0xbd8] sm:$0xff]
        %v834 = vld [vmem:[%s351 + $0xbe0] sm:$0xff]
        %v835 = vld [vmem:[%s351 + $0xbe8] sm:$0xff]
        %v836 = vld [vmem:[%s351 + $0xbf0] sm:$0xff]
        %v837 = vld [vmem:[%s351 + $0xbf8] sm:$0xff]
        %v838 = vld [vmem:[%s351 + $0xc00] sm:$0xff]
        %v839 = vld [vmem:[%s351 + $0xc08] sm:$0xff]
        %v840 = vld [vmem:[%s351 + $0xc10] sm:$0xff]
        %v841 = vld [vmem:[%s351 + $0xc18] sm:$0xff]
        %v842 = vld [vmem:[%s351 + $0xc20] sm:$0xff]
        %v843 = vld [vmem:[%s351 + $0xc28] sm:$0xff]
        %v844 = vld [vmem:[%s351 + $0xc30] sm:$0xff]
        %v845 = vld [vmem:[%s351 + $0xc38] sm:$0xff]
        %v846 = vld [vmem:[%s351 + $0xc40] sm:$0xff]
        %v847 = vld [vmem:[%s351 + $0xc48] sm:$0xff]
        %v848 = vld [vmem:[%s351 + $0xc50] sm:$0xff]
        %v849 = vld [vmem:[%s351 + $0xc58] sm:$0xff]
        %v850 = vld [vmem:[%s351 + $0xc60] sm:$0xff]
        %v851 = vld [vmem:[%s351 + $0xc68] sm:$0xff]
        %v852 = vld [vmem:[%s351 + $0xc70] sm:$0xff]
        %v853 = vld [vmem:[%s351 + $0xc78] sm:$0xff]
        %v854 = vld [vmem:[%s351 + $0xc80] sm:$0xff]
        %v855 = vld [vmem:[%s351 + $0xc88] sm:$0xff]
        %v856 = vld [vmem:[%s351 + $0xc90] sm:$0xff]
        %v857 = vld [vmem:[%s351 + $0xc98] sm:$0xff]
        %v858 = vld [vmem:[%s351 + $0xca0] sm:$0xff]
        %v859 = vld [vmem:[%s351 + $0xca8] sm:$0xff]
        %v860 = vld [vmem:[%s351 + $0xcb0] sm:$0xff]
        %v861 = vld [vmem:[%s351 + $0xcb8] sm:$0xff]
        %v862 = vld [vmem:[%s351 + $0xcc0] sm:$0xff]
        %v863 = vld [vmem:[%s351 + $0xcc8] sm:$0xff]
        %v864 = vld [vmem:[%s351 + $0xcd0] sm:$0xff]
        %v865 = vld [vmem:[%s351 + $0xcd8] sm:$0xff]
        %v866 = vld [vmem:[%s351 + $0xce0] sm:$0xff]
        %v867 = vld [vmem:[%s351 + $0xce8] sm:$0xff]
        %v868 = vld [vmem:[%s351 + $0xcf0] sm:$0xff]
        %v869 = vld [vmem:[%s351 + $0xcf8] sm:$0xff]
        %v870 = vld [vmem:[%s351 + $0xd00] sm:$0xff]
        %v871 = vld [vmem:[%s351 + $0xd08] sm:$0xff]
        %v872 = vld [vmem:[%s351 + $0xd10] sm:$0xff]
        %v873 = vld [vmem:[%s351 + $0xd18] sm:$0xff]
        %v874 = vld [vmem:[%s351 + $0xd20] sm:$0xff]
        %v875 = vld [vmem:[%s351 + $0xd28] sm:$0xff]
        %v876 = vld [vmem:[%s351 + $0xd30] sm:$0xff]
        %v877 = vld [vmem:[%s351 + $0xd38] sm:$0xff]
        %v878 = vld [vmem:[%s351 + $0xd40] sm:$0xff]
        %v879 = vld [vmem:[%s351 + $0xd48] sm:$0xff]
        %v880 = vld [vmem:[%s351 + $0xd50] sm:$0xff]
        %v881 = vld [vmem:[%s351 + $0xd58] sm:$0xff]
        %v882 = vld [vmem:[%s351 + $0xd60] sm:$0xff]
        %v883 = vld [vmem:[%s351 + $0xd68] sm:$0xff]
        %v884 = vld [vmem:[%s351 + $0xd70] sm:$0xff]
        %v885 = vld [vmem:[%s351 + $0xd78] sm:$0xff]
        %v886 = vld [vmem:[%s351 + $0xd80] sm:$0xff]
        %v887 = vld [vmem:[%s351 + $0xd88] sm:$0xff]
        %v888 = vld [vmem:[%s351 + $0xd90] sm:$0xff]
        %v889 = vld [vmem:[%s351 + $0xd98] sm:$0xff]
        %v890 = vld [vmem:[%s351 + $0xda0] sm:$0xff]
        %v891 = vld [vmem:[%s351 + $0xda8] sm:$0xff]
        %v892 = vld [vmem:[%s351 + $0xdb0] sm:$0xff]
        %v893 = vld [vmem:[%s351 + $0xdb8] sm:$0xff]
        %v894 = vld [vmem:[%s351 + $0xdc0] sm:$0xff]
        %v895 = vld [vmem:[%s351 + $0xdc8] sm:$0xff]
        %v896 = vld [vmem:[%s351 + $0xdd0] sm:$0xff]
        %v897 = vld [vmem:[%s351 + $0xdd8] sm:$0xff]
        %v898 = vld [vmem:[%s351 + $0xde0] sm:$0xff]
        %v899 = vld [vmem:[%s351 + $0xde8] sm:$0xff]
        %v900 = vld [vmem:[%s351 + $0xdf0] sm:$0xff]
        %v901 = vld [vmem:[%s351 + $0xdf8] sm:$0xff]
        %v902 = vld [vmem:[%s351 + $0xe00] sm:$0xff]
        %v903 = vld [vmem:[%s351 + $0xe08] sm:$0xff]
        %v904 = vld [vmem:[%s351 + $0xe10] sm:$0xff]
        %v905 = vld [vmem:[%s351 + $0xe18] sm:$0xff]
        %v906 = vld [vmem:[%s351 + $0xe20] sm:$0xff]
        %v907 = vld [vmem:[%s351 + $0xe28] sm:$0xff]
        %v908 = vld [vmem:[%s351 + $0xe30] sm:$0xff]
        %v909 = vld [vmem:[%s351 + $0xe38] sm:$0xff]
        %v910 = vld [vmem:[%s351 + $0xe40] sm:$0xff]
        %v911 = vld [vmem:[%s351 + $0xe48] sm:$0xff]
        %v912 = vld [vmem:[%s351 + $0xe50] sm:$0xff]
        %v913 = vld [vmem:[%s351 + $0xe58] sm:$0xff]
        %v914 = vld [vmem:[%s351 + $0xe60] sm:$0xff]
        %v915 = vld [vmem:[%s351 + $0xe68] sm:$0xff]
        %v916 = vld [vmem:[%s351 + $0xe70] sm:$0xff]
        %v917 = vld [vmem:[%s351 + $0xe78] sm:$0xff]
        %v918 = vld [vmem:[%s351 + $0xe80] sm:$0xff]
        %v919 = vld [vmem:[%s351 + $0xe88] sm:$0xff]
        %v920 = vld [vmem:[%s351 + $0xe90] sm:$0xff]
        %v921 = vld [vmem:[%s351 + $0xe98] sm:$0xff]
        %v922 = vld [vmem:[%s351 + $0xea0] sm:$0xff]
        %v923 = vld [vmem:[%s351 + $0xea8] sm:$0xff]
        %v924 = vld [vmem:[%s351 + $0xeb0] sm:$0xff]
        %v925 = vld [vmem:[%s351 + $0xeb8] sm:$0xff]
        %v926 = vld [vmem:[%s351 + $0xec0] sm:$0xff]
        %v927 = vld [vmem:[%s351 + $0xec8] sm:$0xff]
        %v928 = vld [vmem:[%s351 + $0xed0] sm:$0xff]
        %v929 = vld [vmem:[%s351 + $0xed8] sm:$0xff]
        %v930 = vld [vmem:[%s351 + $0xee0] sm:$0xff]
        %v931 = vld [vmem:[%s351 + $0xee8] sm:$0xff]
        %v932 = vld [vmem:[%s351 + $0xef0] sm:$0xff]
        %v933 = vld [vmem:[%s351 + $0xef8] sm:$0xff]
        %v934 = vld [vmem:[%s351 + $0xf00] sm:$0xff]
        %v935 = vld [vmem:[%s351 + $0xf08] sm:$0xff]
        %v936 = vld [vmem:[%s351 + $0xf10] sm:$0xff]
        %v937 = vld [vmem:[%s351 + $0xf18] sm:$0xff]
        %v938 = vld [vmem:[%s351 + $0xf20] sm:$0xff]
        %v939 = vld [vmem:[%s351 + $0xf28] sm:$0xff]
        %v940 = vld [vmem:[%s351 + $0xf30] sm:$0xff]
        %v941 = vld [vmem:[%s351 + $0xf38] sm:$0xff]
        %v942 = vld [vmem:[%s351 + $0xf40] sm:$0xff]
        %v943 = vld [vmem:[%s351 + $0xf48] sm:$0xff]
        %v944 = vld [vmem:[%s351 + $0xf50] sm:$0xff]
        %v945 = vld [vmem:[%s351 + $0xf58] sm:$0xff]
        %v946 = vld [vmem:[%s351 + $0xf60] sm:$0xff]
        %v947 = vld [vmem:[%s351 + $0xf68] sm:$0xff]
        %v948 = vld [vmem:[%s351 + $0xf70] sm:$0xff]
        %v949 = vld [vmem:[%s351 + $0xf78] sm:$0xff]
        %v950 = vld [vmem:[%s351 + $0xf80] sm:$0xff]
        %v951 = vld [vmem:[%s351 + $0xf88] sm:$0xff]
        %v952 = vld [vmem:[%s351 + $0xf90] sm:$0xff]
        %v953 = vld [vmem:[%s351 + $0xf98] sm:$0xff]
        %v954 = vld [vmem:[%s351 + $0xfa0] sm:$0xff]
        %v955 = vld [vmem:[%s351 + $0xfa8] sm:$0xff]
        %v956 = vld [vmem:[%s351 + $0xfb0] sm:$0xff]
        %v957 = vld [vmem:[%s351 + $0xfb8] sm:$0xff]
        %v958 = vld [vmem:[%s351 + $0xfc0] sm:$0xff]
        %v959 = vld [vmem:[%s351 + $0xfc8] sm:$0xff]
        %v960 = vld [vmem:[%s351 + $0xfd0] sm:$0xff]
        %v961 = vld [vmem:[%s351 + $0xfd8] sm:$0xff]
        %v962 = vld [vmem:[%s351 + $0xfe0] sm:$0xff]
        %v963 = vld [vmem:[%s351 + $0xfe8] sm:$0xff]
        %v964 = vld [vmem:[%s351 + $0xff0] sm:$0xff]
        %v965 = vld [vmem:[%s351 + $0xff8] sm:$0xff]
        %v966 = vld [vmem:[%s351 + $0x1000] sm:$0xff]
        %v967 = vld [vmem:[%s351 + $0x1008] sm:$0xff]
        %v968 = vld [vmem:[%s351 + $0x1010] sm:$0xff]
        %v969 = vld [vmem:[%s351 + $0x1018] sm:$0xff]
        %v970 = vld [vmem:[%s351 + $0x1020] sm:$0xff]
        %v971 = vld [vmem:[%s351 + $0x1028] sm:$0xff]
        %v972 = vld [vmem:[%s351 + $0x1030] sm:$0xff]
        %v973 = vld [vmem:[%s351 + $0x1038] sm:$0xff]
        %v974 = vld [vmem:[%s351 + $0x1040] sm:$0xff]
        %v975 = vld [vmem:[%s351 + $0x1048] sm:$0xff]
        %v976 = vld [vmem:[%s351 + $0x1050] sm:$0xff]
        %v977 = vld [vmem:[%s351 + $0x1058] sm:$0xff]
        %v978 = vld [vmem:[%s351 + $0x1060] sm:$0xff]
        %v979 = vld [vmem:[%s351 + $0x1068] sm:$0xff]
        %v980 = vld [vmem:[%s351 + $0x1070] sm:$0xff]
        %v981 = vld [vmem:[%s351 + $0x1078] sm:$0xff]
        %v982 = vld [vmem:[%s351 + $0x1080] sm:$0xff]
        %v983 = vld [vmem:[%s351 + $0x1088] sm:$0xff]
        %v984 = vld [vmem:[%s351 + $0x1090] sm:$0xff]
        %v985 = vld [vmem:[%s351 + $0x1098] sm:$0xff]
        %v986 = vld [vmem:[%s351 + $0x10a0] sm:$0xff]
        %v987 = vld [vmem:[%s351 + $0x10a8] sm:$0xff]
        %v988 = vld [vmem:[%s351 + $0x10b0] sm:$0xff]
        %v989 = vld [vmem:[%s351 + $0x10b8] sm:$0xff]
        %v990 = vld [vmem:[%s351 + $0x10c0] sm:$0xff]
        %v991 = vld [vmem:[%s351 + $0x10c8] sm:$0xff]
        %v992 = vld [vmem:[%s351 + $0x10d0] sm:$0xff]
        %v993 = vld [vmem:[%s351 + $0x10d8] sm:$0xff]
        %v994 = vld [vmem:[%s351 + $0x10e0] sm:$0xff]
        %v995 = vld [vmem:[%s351 + $0x10e8] sm:$0xff]
        %v996 = vld [vmem:[%s351 + $0x10f0] sm:$0xff]
        %v997 = vld [vmem:[%s351 + $0x10f8] sm:$0xff]
        %v998 = vld [vmem:[%s351 + $0x1100] sm:$0xff]
        %v999 = vld [vmem:[%s351 + $0x1108] sm:$0xff]
        %v1000 = vld [vmem:[%s351 + $0x1110] sm:$0xff]
        %v1001 = vld [vmem:[%s351 + $0x1118] sm:$0xff]
        %v1002 = vld [vmem:[%s351 + $0x1120] sm:$0xff]
        %v1003 = vld [vmem:[%s351 + $0x1128] sm:$0xff]
        %v1004 = vld [vmem:[%s351 + $0x1130] sm:$0xff]
        %v1005 = vld [vmem:[%s351 + $0x1138] sm:$0xff]
        %v1006 = vld [vmem:[%s351 + $0x1140] sm:$0xff]
        %v1007 = vld [vmem:[%s351 + $0x1148] sm:$0xff]
        %v1008 = vld [vmem:[%s351 + $0x1150] sm:$0xff]
        %v1009 = vld [vmem:[%s351 + $0x1158] sm:$0xff]
        %v1010 = vld [vmem:[%s351 + $0x1160] sm:$0xff]
        %v1011 = vld [vmem:[%s351 + $0x1168] sm:$0xff]
        %v1012 = vld [vmem:[%s351 + $0x1170] sm:$0xff]
        %v1013 = vld [vmem:[%s351 + $0x1178] sm:$0xff]
        %v1014 = vld [vmem:[%s351 + $0x1180] sm:$0xff]
        %v1015 = vld [vmem:[%s351 + $0x1188] sm:$0xff]
        %v1016 = vld [vmem:[%s351 + $0x1190] sm:$0xff]
        %v1017 = vld [vmem:[%s351 + $0x1198] sm:$0xff]
        %v1018 = vld [vmem:[%s351 + $0x11a0] sm:$0xff]
        %v1019 = vld [vmem:[%s351 + $0x11a8] sm:$0xff]
        %v1020 = vld [vmem:[%s351 + $0x11b0] sm:$0xff]
        %v1021 = vld [vmem:[%s351 + $0x11b8] sm:$0xff]
        %v1022 = vld [vmem:[%s351 + $0x11c0] sm:$0xff]
        %v1023 = vld [vmem:[%s351 + $0x11c8] sm:$0xff]
        %v1024 = vld [vmem:[%s351 + $0x11d0] sm:$0xff]
        %v1025 = vld [vmem:[%s351 + $0x11d8] sm:$0xff]
        %v1026 = vld [vmem:[%s351 + $0x11e0] sm:$0xff]
        %v1027 = vld [vmem:[%s351 + $0x11e8] sm:$0xff]
        %v1028 = vld [vmem:[%s351 + $0x11f0] sm:$0xff]
        %v1029 = vld [vmem:[%s351 + $0x11f8] sm:$0xff]
        %v1030 = vld [vmem:[%s351 + $0x1200] sm:$0xff]
        %v1031 = vld [vmem:[%s351 + $0x1208] sm:$0xff]
        %v1032 = vld [vmem:[%s351 + $0x1210] sm:$0xff]
        %v1033 = vld [vmem:[%s351 + $0x1218] sm:$0xff]
        %v1034 = vld [vmem:[%s351 + $0x1220] sm:$0xff]
        %v1035 = vld [vmem:[%s351 + $0x1228] sm:$0xff]
        %v1036 = vld [vmem:[%s351 + $0x1230] sm:$0xff]
        %v1037 = vld [vmem:[%s351 + $0x1238] sm:$0xff]
        %v1038 = vld [vmem:[%s351 + $0x1240] sm:$0xff]
        %v1039 = vld [vmem:[%s351 + $0x1248] sm:$0xff]
        %v1040 = vld [vmem:[%s351 + $0x1250] sm:$0xff]
        %v1041 = vld [vmem:[%s351 + $0x1258] sm:$0xff]
        %v1042 = vld [vmem:[%s351 + $0x1260] sm:$0xff]
        %v1043 = vld [vmem:[%s351 + $0x1268] sm:$0xff]
        %v1044 = vld [vmem:[%s351 + $0x1270] sm:$0xff]
        %v1045 = vld [vmem:[%s351 + $0x1278] sm:$0xff]
        %v1046 = vld [vmem:[%s351 + $0x1280] sm:$0xff]
        %v1047 = vld [vmem:[%s351 + $0x1288] sm:$0xff]
        %v1048 = vld [vmem:[%s351 + $0x1290] sm:$0xff]
        %v1049 = vld [vmem:[%s351 + $0x1298] sm:$0xff]
        %v1050 = vld [vmem:[%s351 + $0x12a0] sm:$0xff]
        %v1051 = vld [vmem:[%s351 + $0x12a8] sm:$0xff]
        %v1052 = vld [vmem:[%s351 + $0x12b0] sm:$0xff]
        %v1053 = vld [vmem:[%s351 + $0x12b8] sm:$0xff]
        %v1054 = vld [vmem:[%s351 + $0x12c0] sm:$0xff]
        %v1055 = vld [vmem:[%s351 + $0x12c8] sm:$0xff]
        %v1056 = vld [vmem:[%s351 + $0x12d0] sm:$0xff]
        %v1057 = vld [vmem:[%s351 + $0x12d8] sm:$0xff]
        %v1058 = vld [vmem:[%s351 + $0x12e0] sm:$0xff]
        %v1059 = vld [vmem:[%s351 + $0x12e8] sm:$0xff]
        %v1060 = vld [vmem:[%s351 + $0x12f0] sm:$0xff]
        %v1061 = vld [vmem:[%s351 + $0x12f8] sm:$0xff]
        %v1062 = vld [vmem:[%s351 + $0x1300] sm:$0xff]
        %v1063 = vld [vmem:[%s351 + $0x1308] sm:$0xff]
        %v1064 = vld [vmem:[%s351 + $0x1310] sm:$0xff]
        %v1065 = vld [vmem:[%s351 + $0x1318] sm:$0xff]
        %v1066 = vld [vmem:[%s351 + $0x1320] sm:$0xff]
        %v1067 = vld [vmem:[%s351 + $0x1328] sm:$0xff]
        %v1068 = vld [vmem:[%s351 + $0x1330] sm:$0xff]
        %v1069 = vld [vmem:[%s351 + $0x1338] sm:$0xff]
        %v1070 = vld [vmem:[%s351 + $0x1340] sm:$0xff]
        %v1071 = vld [vmem:[%s351 + $0x1348] sm:$0xff]
        %v1072 = vld [vmem:[%s351 + $0x1350] sm:$0xff]
        %v1073 = vld [vmem:[%s351 + $0x1358] sm:$0xff]
        %v1074 = vld [vmem:[%s351 + $0x1360] sm:$0xff]
        %v1075 = vld [vmem:[%s351 + $0x1368] sm:$0xff]
        %v1076 = vld [vmem:[%s351 + $0x1370] sm:$0xff]
        %v1077 = vld [vmem:[%s351 + $0x1378] sm:$0xff]
        %v1078 = vld [vmem:[%s351 + $0x1380] sm:$0xff]
        %v1079 = vld [vmem:[%s351 + $0x1388] sm:$0xff]
        %v1080 = vld [vmem:[%s351 + $0x1390] sm:$0xff]
        %v1081 = vld [vmem:[%s351 + $0x1398] sm:$0xff]
        %v1082 = vld [vmem:[%s351 + $0x13a0] sm:$0xff]
        %v1083 = vld [vmem:[%s351 + $0x13a8] sm:$0xff]
        %v1084 = vld [vmem:[%s351 + $0x13b0] sm:$0xff]
        %v1085 = vld [vmem:[%s351 + $0x13b8] sm:$0xff]
        %v1086 = vld [vmem:[%s351 + $0x13c0] sm:$0xff]
        %v1087 = vld [vmem:[%s351 + $0x13c8] sm:$0xff]
        %v1088 = vld [vmem:[%s351 + $0x13d0] sm:$0xff]
        %v1089 = vld [vmem:[%s351 + $0x13d8] sm:$0xff]
        %v1090 = vld [vmem:[%s351 + $0x13e0] sm:$0xff]
        %v1091 = vld [vmem:[%s351 + $0x13e8] sm:$0xff]
        %v1092 = vld [vmem:[%s351 + $0x13f0] sm:$0xff]
        %v1093 = vld [vmem:[%s351 + $0x13f8] sm:$0xff]
        %v1094 = vld [vmem:[%s351 + $0x1400] sm:$0xff]
        %v1095 = vld [vmem:[%s351 + $0x1408] sm:$0xff]
        %v1096 = vld [vmem:[%s351 + $0x1410] sm:$0xff]
        %v1097 = vld [vmem:[%s351 + $0x1418] sm:$0xff]
        %v1098 = vld [vmem:[%s351 + $0x1420] sm:$0xff]
        %v1099 = vld [vmem:[%s351 + $0x1428] sm:$0xff]
        %v1100 = vld [vmem:[%s351 + $0x1430] sm:$0xff]
        %v1101 = vld [vmem:[%s351 + $0x1438] sm:$0xff]
        %v1102 = vld [vmem:[%s351 + $0x1440] sm:$0xff]
        %v1103 = vld [vmem:[%s351 + $0x1448] sm:$0xff]
        %v1104 = vld [vmem:[%s351 + $0x1450] sm:$0xff]
        %v1105 = vld [vmem:[%s351 + $0x1458] sm:$0xff]
        %v1106 = vld [vmem:[%s351 + $0x1460] sm:$0xff]
        %v1107 = vld [vmem:[%s351 + $0x1468] sm:$0xff]
        %v1108 = vld [vmem:[%s351 + $0x1470] sm:$0xff]
        %v1109 = vld [vmem:[%s351 + $0x1478] sm:$0xff]
        %v1110 = vld [vmem:[%s351 + $0x1480] sm:$0xff]
        %v1111 = vld [vmem:[%s351 + $0x1488] sm:$0xff]
        %v1112 = vld [vmem:[%s351 + $0x1490] sm:$0xff]
        %v1113 = vld [vmem:[%s351 + $0x1498] sm:$0xff]
        %v1114 = vld [vmem:[%s351 + $0x14a0] sm:$0xff]
        %v1115 = vld [vmem:[%s351 + $0x14a8] sm:$0xff]
        %v1116 = vld [vmem:[%s351 + $0x14b0] sm:$0xff]
        %v1117 = vld [vmem:[%s351 + $0x14b8] sm:$0xff]
        %v1118 = vld [vmem:[%s351 + $0x14c0] sm:$0xff]
        %v1119 = vld [vmem:[%s351 + $0x14c8] sm:$0xff]
        %v1120 = vld [vmem:[%s351 + $0x14d0] sm:$0xff]
        %v1121 = vld [vmem:[%s351 + $0x14d8] sm:$0xff]
        %v1122 = vld [vmem:[%s351 + $0x14e0] sm:$0xff]
        %v1123 = vld [vmem:[%s351 + $0x14e8] sm:$0xff]
        %v1124 = vld [vmem:[%s351 + $0x14f0] sm:$0xff]
        %v1125 = vld [vmem:[%s351 + $0x14f8] sm:$0xff]
        %v1126 = vld [vmem:[%s351 + $0x1500] sm:$0xff]
        %v1127 = vld [vmem:[%s351 + $0x1508] sm:$0xff]
        %v1128 = vld [vmem:[%s351 + $0x1510] sm:$0xff]
        %v1129 = vld [vmem:[%s351 + $0x1518] sm:$0xff]
        %v1130 = vld [vmem:[%s351 + $0x1520] sm:$0xff]
        %v1131 = vld [vmem:[%s351 + $0x1528] sm:$0xff]
        %v1132 = vld [vmem:[%s351 + $0x1530] sm:$0xff]
        %v1133 = vld [vmem:[%s351 + $0x1538] sm:$0xff]
        %v1134 = vld [vmem:[%s351 + $0x1540] sm:$0xff]
        %v1135 = vld [vmem:[%s351 + $0x1548] sm:$0xff]
        %v1136 = vld [vmem:[%s351 + $0x1550] sm:$0xff]
        %v1137 = vld [vmem:[%s351 + $0x1558] sm:$0xff]
        %v1138 = vld [vmem:[%s351 + $0x1560] sm:$0xff]
        %v1139 = vld [vmem:[%s351 + $0x1568] sm:$0xff]
        %v1140 = vld [vmem:[%s351 + $0x1570] sm:$0xff]
        %v1141 = vld [vmem:[%s351 + $0x1578] sm:$0xff]
        %v1142 = vld [vmem:[%s351 + $0x1580] sm:$0xff]
        %v1143 = vld [vmem:[%s351 + $0x1588] sm:$0xff]
        %v1144 = vld [vmem:[%s351 + $0x1590] sm:$0xff]
        %v1145 = vld [vmem:[%s351 + $0x1598] sm:$0xff]
        %v1146 = vld [vmem:[%s351 + $0x15a0] sm:$0xff]
        %v1147 = vld [vmem:[%s351 + $0x15a8] sm:$0xff]
        %v1148 = vld [vmem:[%s351 + $0x15b0] sm:$0xff]
        %v1149 = vld [vmem:[%s351 + $0x15b8] sm:$0xff]
        %v1150 = vld [vmem:[%s351 + $0x15c0] sm:$0xff]
        %v1151 = vld [vmem:[%s351 + $0x15c8] sm:$0xff]
        %v1152 = vld [vmem:[%s351 + $0x15d0] sm:$0xff]
        %v1153 = vld [vmem:[%s351 + $0x15d8] sm:$0xff]
        %v1154 = vld [vmem:[%s351 + $0x15e0] sm:$0xff]
        %v1155 = vld [vmem:[%s351 + $0x15e8] sm:$0xff]
        %v1156 = vld [vmem:[%s351 + $0x15f0] sm:$0xff]
        %v1157 = vld [vmem:[%s351 + $0x15f8] sm:$0xff]
        %v1158 = vld [vmem:[%s351 + $0x1600] sm:$0xff]
        %v1159 = vld [vmem:[%s351 + $0x1608] sm:$0xff]
        %v1160 = vld [vmem:[%s351 + $0x1610] sm:$0xff]
        %v1161 = vld [vmem:[%s351 + $0x1618] sm:$0xff]
        %v1162 = vld [vmem:[%s351 + $0x1620] sm:$0xff]
        %v1163 = vld [vmem:[%s351 + $0x1628] sm:$0xff]
        %v1164 = vld [vmem:[%s351 + $0x1630] sm:$0xff]
        %v1165 = vld [vmem:[%s351 + $0x1638] sm:$0xff]
        %v1166 = vld [vmem:[%s351 + $0x1640] sm:$0xff]
        %v1167 = vld [vmem:[%s351 + $0x1648] sm:$0xff]
        %v1168 = vld [vmem:[%s351 + $0x1650] sm:$0xff]
        %v1169 = vld [vmem:[%s351 + $0x1658] sm:$0xff]
        %v1170 = vld [vmem:[%s351 + $0x1660] sm:$0xff]
        %v1171 = vld [vmem:[%s351 + $0x1668] sm:$0xff]
        %v1172 = vld [vmem:[%s351 + $0x1670] sm:$0xff]
        %v1173 = vld [vmem:[%s351 + $0x1678] sm:$0xff]
        %v1174 = vld [vmem:[%s351 + $0x1680] sm:$0xff]
        %v1175 = vld [vmem:[%s351 + $0x1688] sm:$0xff]
        %v1176 = vld [vmem:[%s351 + $0x1690] sm:$0xff]
        %v1177 = vld [vmem:[%s351 + $0x1698] sm:$0xff]
        %v1178 = vld [vmem:[%s351 + $0x16a0] sm:$0xff]
        %v1179 = vld [vmem:[%s351 + $0x16a8] sm:$0xff]
        %v1180 = vld [vmem:[%s351 + $0x16b0] sm:$0xff]
        %v1181 = vld [vmem:[%s351 + $0x16b8] sm:$0xff]
        %v1182 = vld [vmem:[%s351 + $0x16c0] sm:$0xff]
        %v1183 = vld [vmem:[%s351 + $0x16c8] sm:$0xff]
        %v1184 = vld [vmem:[%s351 + $0x16d0] sm:$0xff]
        %v1185 = vld [vmem:[%s351 + $0x16d8] sm:$0xff]
        %v1186 = vld [vmem:[%s351 + $0x16e0] sm:$0xff]
        %v1187 = vld [vmem:[%s351 + $0x16e8] sm:$0xff]
        %v1188 = vld [vmem:[%s351 + $0x16f0] sm:$0xff]
        %v1189 = vld [vmem:[%s351 + $0x16f8] sm:$0xff]
        %v1190 = vld [vmem:[%s351 + $0x1700] sm:$0xff]
        %v1191 = vld [vmem:[%s351 + $0x1708] sm:$0xff]
        %v1192 = vld [vmem:[%s351 + $0x1710] sm:$0xff]
        %v1193 = vld [vmem:[%s351 + $0x1718] sm:$0xff]
        %v1194 = vld [vmem:[%s351 + $0x1720] sm:$0xff]
        %v1195 = vld [vmem:[%s351 + $0x1728] sm:$0xff]
        %v1196 = vld [vmem:[%s351 + $0x1730] sm:$0xff]
        %v1197 = vld [vmem:[%s351 + $0x1738] sm:$0xff]
        %v1198 = vld [vmem:[%s351 + $0x1740] sm:$0xff]
        %v1199 = vld [vmem:[%s351 + $0x1748] sm:$0xff]
        %v1200 = vld [vmem:[%s351 + $0x1750] sm:$0xff]
        %v1201 = vld [vmem:[%s351 + $0x1758] sm:$0xff]
        %v1202 = vld [vmem:[%s351 + $0x1760] sm:$0xff]
        %v1203 = vld [vmem:[%s351 + $0x1768] sm:$0xff]
        %v1204 = vld [vmem:[%s351 + $0x1770] sm:$0xff]
        %v1205 = vld [vmem:[%s351 + $0x1778] sm:$0xff]
        %v1206 = vld [vmem:[%s351 + $0x1780] sm:$0xff]
        %v1207 = vld [vmem:[%s351 + $0x1788] sm:$0xff]
        %v1208 = vld [vmem:[%s351 + $0x1790] sm:$0xff]
        %v1209 = vld [vmem:[%s351 + $0x1798] sm:$0xff]
        %v1210 = vld [vmem:[%s351 + $0x17a0] sm:$0xff]
        %v1211 = vld [vmem:[%s351 + $0x17a8] sm:$0xff]
        %v1212 = vld [vmem:[%s351 + $0x17b0] sm:$0xff]
        %v1213 = vld [vmem:[%s351 + $0x17b8] sm:$0xff]
        %v1214 = vld [vmem:[%s351 + $0x17c0] sm:$0xff]
        %v1215 = vld [vmem:[%s351 + $0x17c8] sm:$0xff]
        %v1216 = vld [vmem:[%s351 + $0x17d0] sm:$0xff]
        %v1217 = vld [vmem:[%s351 + $0x17d8] sm:$0xff]
        %v1218 = vld [vmem:[%s351 + $0x17e0] sm:$0xff]
        %v1219 = vld [vmem:[%s351 + $0x17e8] sm:$0xff]
        %v1220 = vld [vmem:[%s351 + $0x17f0] sm:$0xff]
        %v1221 = vld [vmem:[%s351 + $0x17f8] sm:$0xff]
        %v1222 = vld [vmem:[%s351 + $0x1800] sm:$0xff]
        %v1223 = vld [vmem:[%s351 + $0x1808] sm:$0xff]
        %v1224 = vld [vmem:[%s351 + $0x1810] sm:$0xff]
        %v1225 = vld [vmem:[%s351 + $0x1818] sm:$0xff]
        %v1226 = vld [vmem:[%s351 + $0x1820] sm:$0xff]
        %v1227 = vld [vmem:[%s351 + $0x1828] sm:$0xff]
        %v1228 = vld [vmem:[%s351 + $0x1830] sm:$0xff]
        %v1229 = vld [vmem:[%s351 + $0x1838] sm:$0xff]
        %v1230 = vld [vmem:[%s351 + $0x1840] sm:$0xff]
        %v1231 = vld [vmem:[%s351 + $0x1848] sm:$0xff]
        %v1232 = vld [vmem:[%s351 + $0x1850] sm:$0xff]
        %v1233 = vld [vmem:[%s351 + $0x1858] sm:$0xff]
        %v1234 = vld [vmem:[%s351 + $0x1860] sm:$0xff]
        %v1235 = vld [vmem:[%s351 + $0x1868] sm:$0xff]
        %v1236 = vld [vmem:[%s351 + $0x1870] sm:$0xff]
        %v1237 = vld [vmem:[%s351 + $0x1878] sm:$0xff]
        %v1238 = vld [vmem:[%s351 + $0x1880] sm:$0xff]
        %v1239 = vld [vmem:[%s351 + $0x1888] sm:$0xff]
        %v1240 = vld [vmem:[%s351 + $0x1890] sm:$0xff]
        %v1241 = vld [vmem:[%s351 + $0x1898] sm:$0xff]
        %v1242 = vld [vmem:[%s351 + $0x18a0] sm:$0xff]
        %v1243 = vld [vmem:[%s351 + $0x18a8] sm:$0xff]
        %v1244 = vld [vmem:[%s351 + $0x18b0] sm:$0xff]
        %v1245 = vld [vmem:[%s351 + $0x18b8] sm:$0xff]
        %v1246 = vld [vmem:[%s351 + $0x18c0] sm:$0xff]
        %v1247 = vld [vmem:[%s351 + $0x18c8] sm:$0xff]
        %v1248 = vld [vmem:[%s351 + $0x18d0] sm:$0xff]
        %v1249 = vld [vmem:[%s351 + $0x18d8] sm:$0xff]
        %v1250 = vld [vmem:[%s351 + $0x18e0] sm:$0xff]
        %v1251 = vld [vmem:[%s351 + $0x18e8] sm:$0xff]
        %v1252 = vld [vmem:[%s351 + $0x18f0] sm:$0xff]
        %v1253 = vld [vmem:[%s351 + $0x18f8] sm:$0xff]
        %v1254 = vld [vmem:[%s351 + $0x1900] sm:$0xff]
        %v1255 = vld [vmem:[%s351 + $0x1908] sm:$0xff]
        %v1256 = vld [vmem:[%s351 + $0x1910] sm:$0xff]
        %v1257 = vld [vmem:[%s351 + $0x1918] sm:$0xff]
        %v1258 = vld [vmem:[%s351 + $0x1920] sm:$0xff]
        %v1259 = vld [vmem:[%s351 + $0x1928] sm:$0xff]
        %v1260 = vld [vmem:[%s351 + $0x1930] sm:$0xff]
        %v1261 = vld [vmem:[%s351 + $0x1938] sm:$0xff]
        %v1262 = vld [vmem:[%s351 + $0x1940] sm:$0xff]
        %v1263 = vld [vmem:[%s351 + $0x1948] sm:$0xff]
        %v1264 = vld [vmem:[%s351 + $0x1950] sm:$0xff]
        %v1265 = vld [vmem:[%s351 + $0x1958] sm:$0xff]
        %v1266 = vld [vmem:[%s351 + $0x1960] sm:$0xff]
        %v1267 = vld [vmem:[%s351 + $0x1968] sm:$0xff]
        %v1268 = vld [vmem:[%s351 + $0x1970] sm:$0xff]
        %v1269 = vld [vmem:[%s351 + $0x1978] sm:$0xff]
        %v1270 = vld [vmem:[%s351 + $0x1980] sm:$0xff]
        %v1271 = vld [vmem:[%s351 + $0x1988] sm:$0xff]
        %v1272 = vld [vmem:[%s351 + $0x1990] sm:$0xff]
        %v1273 = vld [vmem:[%s351 + $0x1998] sm:$0xff]
        %v1274 = vld [vmem:[%s351 + $0x19a0] sm:$0xff]
        %v1275 = vld [vmem:[%s351 + $0x19a8] sm:$0xff]
        %v1276 = vld [vmem:[%s351 + $0x19b0] sm:$0xff]
        %v1277 = vld [vmem:[%s351 + $0x19b8] sm:$0xff]
        %v1278 = vld [vmem:[%s351 + $0x19c0] sm:$0xff]
        %v1279 = vld [vmem:[%s351 + $0x19c8] sm:$0xff]
        %v1280 = vld [vmem:[%s351 + $0x19d0] sm:$0xff]
        %v1281 = vld [vmem:[%s351 + $0x19d8] sm:$0xff]
        %v1282 = vld [vmem:[%s351 + $0x19e0] sm:$0xff]
        %v1283 = vld [vmem:[%s351 + $0x19e8] sm:$0xff]
        %v1284 = vld [vmem:[%s351 + $0x19f0] sm:$0xff]
        %v1285 = vld [vmem:[%s351 + $0x19f8] sm:$0xff]
        %v1286 = vld [vmem:[%s351 + $0x1a00] sm:$0xff]
        %v1287 = vld [vmem:[%s351 + $0x1a08] sm:$0xff]
        %v1288 = vld [vmem:[%s351 + $0x1a10] sm:$0xff]
        %v1289 = vld [vmem:[%s351 + $0x1a18] sm:$0xff]
        %v1290 = vld [vmem:[%s351 + $0x1a20] sm:$0xff]
        %v1291 = vld [vmem:[%s351 + $0x1a28] sm:$0xff]
        %v1292 = vld [vmem:[%s351 + $0x1a30] sm:$0xff]
        %v1293 = vld [vmem:[%s351 + $0x1a38] sm:$0xff]
        %v1294 = vld [vmem:[%s351 + $0x1a40] sm:$0xff]
        %v1295 = vld [vmem:[%s351 + $0x1a48] sm:$0xff]
        %v1296 = vld [vmem:[%s351 + $0x1a50] sm:$0xff]
        %v1297 = vld [vmem:[%s351 + $0x1a58] sm:$0xff]
        %v1298 = vld [vmem:[%s351 + $0x1a60] sm:$0xff]
        %v1299 = vld [vmem:[%s351 + $0x1a68] sm:$0xff]
        %v1300 = vld [vmem:[%s351 + $0x1a70] sm:$0xff]
        %v1301 = vld [vmem:[%s351 + $0x1a78] sm:$0xff]
        %v1302 = vld [vmem:[%s351 + $0x1a80] sm:$0xff]
        %v1303 = vld [vmem:[%s351 + $0x1a88] sm:$0xff]
        %v1304 = vld [vmem:[%s351 + $0x1a90] sm:$0xff]
        %v1305 = vld [vmem:[%s351 + $0x1a98] sm:$0xff]
        %v1306 = vld [vmem:[%s351 + $0x1aa0] sm:$0xff]
        %v1307 = vld [vmem:[%s351 + $0x1aa8] sm:$0xff]
        %v1308 = vld [vmem:[%s351 + $0x1ab0] sm:$0xff]
        %v1309 = vld [vmem:[%s351 + $0x1ab8] sm:$0xff]
        %v1310 = vld [vmem:[%s351 + $0x1ac0] sm:$0xff]
        %v1311 = vld [vmem:[%s351 + $0x1ac8] sm:$0xff]
        %v1312 = vld [vmem:[%s351 + $0x1ad0] sm:$0xff]
        %v1313 = vld [vmem:[%s351 + $0x1ad8] sm:$0xff]
        %v1314 = vld [vmem:[%s351 + $0x1ae0] sm:$0xff]
        %v1315 = vld [vmem:[%s351 + $0x1ae8] sm:$0xff]
        %v1316 = vld [vmem:[%s351 + $0x1af0] sm:$0xff]
        %v1317 = vld [vmem:[%s351 + $0x1af8] sm:$0xff]
        %v1318 = vld [vmem:[%s351 + $0x1b00] sm:$0xff]
        %v1319 = vld [vmem:[%s351 + $0x1b08] sm:$0xff]
        %v1320 = vld [vmem:[%s351 + $0x1b10] sm:$0xff]
        %v1321 = vld [vmem:[%s351 + $0x1b18] sm:$0xff]
        %v1322 = vld [vmem:[%s351 + $0x1b20] sm:$0xff]
        %v1323 = vld [vmem:[%s351 + $0x1b28] sm:$0xff]
        %v1324 = vld [vmem:[%s351 + $0x1b30] sm:$0xff]
        %v1325 = vld [vmem:[%s351 + $0x1b38] sm:$0xff]
        %v1326 = vld [vmem:[%s351 + $0x1b40] sm:$0xff]
        %v1327 = vld [vmem:[%s351 + $0x1b48] sm:$0xff]
        %v1328 = vld [vmem:[%s351 + $0x1b50] sm:$0xff]
        %v1329 = vld [vmem:[%s351 + $0x1b58] sm:$0xff]
        %v1330 = vld [vmem:[%s351 + $0x1b60] sm:$0xff]
        %v1331 = vld [vmem:[%s351 + $0x1b68] sm:$0xff]
        %v1332 = vld [vmem:[%s351 + $0x1b70] sm:$0xff]
        %v1333 = vld [vmem:[%s351 + $0x1b78] sm:$0xff]
        %v1334 = vld [vmem:[%s351 + $0x1b80] sm:$0xff]
        %v1335 = vld [vmem:[%s351 + $0x1b88] sm:$0xff]
        %v1336 = vld [vmem:[%s351 + $0x1b90] sm:$0xff]
        %v1337 = vld [vmem:[%s351 + $0x1b98] sm:$0xff]
        %v1338 = vld [vmem:[%s351 + $0x1ba0] sm:$0xff]
        %v1339 = vld [vmem:[%s351 + $0x1ba8] sm:$0xff]
        %v1340 = vld [vmem:[%s351 + $0x1bb0] sm:$0xff]
        %v1341 = vld [vmem:[%s351 + $0x1bb8] sm:$0xff]
        %v1342 = vld [vmem:[%s351 + $0x1bc0] sm:$0xff]
        %v1343 = vld [vmem:[%s351 + $0x1bc8] sm:$0xff]
        %v1344 = vld [vmem:[%s351 + $0x1bd0] sm:$0xff]
        %v1345 = vld [vmem:[%s351 + $0x1bd8] sm:$0xff]
        %v1346 = vld [vmem:[%s351 + $0x1be0] sm:$0xff]
        %v1347 = vld [vmem:[%s351 + $0x1be8] sm:$0xff]
        %v1348 = vld [vmem:[%s351 + $0x1bf0] sm:$0xff]
        %v1349 = vld [vmem:[%s351 + $0x1bf8] sm:$0xff]
        %v1350 = vld [vmem:[%s351 + $0x1c00] sm:$0xff]
        %v1351 = vld [vmem:[%s351 + $0x1c08] sm:$0xff]
        %v1352 = vld [vmem:[%s351 + $0x1c10] sm:$0xff]
        %v1353 = vld [vmem:[%s351 + $0x1c18] sm:$0xff]
        %v1354 = vld [vmem:[%s351 + $0x1c20] sm:$0xff]
        %v1355 = vld [vmem:[%s351 + $0x1c28] sm:$0xff]
        %v1356 = vld [vmem:[%s351 + $0x1c30] sm:$0xff]
        %v1357 = vld [vmem:[%s351 + $0x1c38] sm:$0xff]
        %v1358 = vld [vmem:[%s351 + $0x1c40] sm:$0xff]
        %v1359 = vld [vmem:[%s351 + $0x1c48] sm:$0xff]
        %v1360 = vld [vmem:[%s351 + $0x1c50] sm:$0xff]
        %v1361 = vld [vmem:[%s351 + $0x1c58] sm:$0xff]
        %v1362 = vld [vmem:[%s351 + $0x1c60] sm:$0xff]
        %v1363 = vld [vmem:[%s351 + $0x1c68] sm:$0xff]
        %v1364 = vld [vmem:[%s351 + $0x1c70] sm:$0xff]
        %v1365 = vld [vmem:[%s351 + $0x1c78] sm:$0xff]
        %v1366 = vld [vmem:[%s351 + $0x1c80] sm:$0xff]
        %v1367 = vld [vmem:[%s351 + $0x1c88] sm:$0xff]
        %v1368 = vld [vmem:[%s351 + $0x1c90] sm:$0xff]
        %v1369 = vld [vmem:[%s351 + $0x1c98] sm:$0xff]
        %v1370 = vld [vmem:[%s351 + $0x1ca0] sm:$0xff]
        %v1371 = vld [vmem:[%s351 + $0x1ca8] sm:$0xff]
        %v1372 = vld [vmem:[%s351 + $0x1cb0] sm:$0xff]
        %v1373 = vld [vmem:[%s351 + $0x1cb8] sm:$0xff]
        %v1374 = vld [vmem:[%s351 + $0x1cc0] sm:$0xff]
        %v1375 = vld [vmem:[%s351 + $0x1cc8] sm:$0xff]
        %v1376 = vld [vmem:[%s351 + $0x1cd0] sm:$0xff]
        %v1377 = vld [vmem:[%s351 + $0x1cd8] sm:$0xff]
        %v1378 = vld [vmem:[%s351 + $0x1ce0] sm:$0xff]
        %v1379 = vld [vmem:[%s351 + $0x1ce8] sm:$0xff]
        %v1380 = vld [vmem:[%s351 + $0x1cf0] sm:$0xff]
        %v1381 = vld [vmem:[%s351 + $0x1cf8] sm:$0xff]
        %v1382 = vld [vmem:[%s351 + $0x1d00] sm:$0xff]
        %v1383 = vld [vmem:[%s351 + $0x1d08] sm:$0xff]
        %v1384 = vld [vmem:[%s351 + $0x1d10] sm:$0xff]
        %v1385 = vld [vmem:[%s351 + $0x1d18] sm:$0xff]
        %v1386 = vld [vmem:[%s351 + $0x1d20] sm:$0xff]
        %v1387 = vld [vmem:[%s351 + $0x1d28] sm:$0xff]
        %v1388 = vld [vmem:[%s351 + $0x1d30] sm:$0xff]
        %v1389 = vld [vmem:[%s351 + $0x1d38] sm:$0xff]
        %v1390 = vld [vmem:[%s351 + $0x1d40] sm:$0xff]
        %v1391 = vld [vmem:[%s351 + $0x1d48] sm:$0xff]
        %v1392 = vld [vmem:[%s351 + $0x1d50] sm:$0xff]
        %v1393 = vld [vmem:[%s351 + $0x1d58] sm:$0xff]
        %v1394 = vld [vmem:[%s351 + $0x1d60] sm:$0xff]
        %v1395 = vld [vmem:[%s351 + $0x1d68] sm:$0xff]
        %v1396 = vld [vmem:[%s351 + $0x1d70] sm:$0xff]
        %v1397 = vld [vmem:[%s351 + $0x1d78] sm:$0xff]
        %v1398 = vld [vmem:[%s351 + $0x1d80] sm:$0xff]
        %v1399 = vld [vmem:[%s351 + $0x1d88] sm:$0xff]
        %v1400 = vld [vmem:[%s351 + $0x1d90] sm:$0xff]
        %v1401 = vld [vmem:[%s351 + $0x1d98] sm:$0xff]
        %v1402 = vld [vmem:[%s351 + $0x1da0] sm:$0xff]
        %v1403 = vld [vmem:[%s351 + $0x1da8] sm:$0xff]
        %v1404 = vld [vmem:[%s351 + $0x1db0] sm:$0xff]
        %v1405 = vld [vmem:[%s351 + $0x1db8] sm:$0xff]
        %v1406 = vld [vmem:[%s351 + $0x1dc0] sm:$0xff]
        %v1407 = vld [vmem:[%s351 + $0x1dc8] sm:$0xff]
        %v1408 = vld [vmem:[%s351 + $0x1dd0] sm:$0xff]
        %v1409 = vld [vmem:[%s351 + $0x1dd8] sm:$0xff]
        %v1410 = vld [vmem:[%s351 + $0x1de0] sm:$0xff]
        %v1411 = vld [vmem:[%s351 + $0x1de8] sm:$0xff]
        %v1412 = vld [vmem:[%s351 + $0x1df0] sm:$0xff]
        %v1413 = vld [vmem:[%s351 + $0x1df8] sm:$0xff]
        %v1414 = vld [vmem:[%s351 + $0x1e00] sm:$0xff]
        %v1415 = vld [vmem:[%s351 + $0x1e08] sm:$0xff]
        %v1416 = vld [vmem:[%s351 + $0x1e10] sm:$0xff]
        %v1417 = vld [vmem:[%s351 + $0x1e18] sm:$0xff]
        %v1418 = vld [vmem:[%s351 + $0x1e20] sm:$0xff]
        %v1419 = vld [vmem:[%s351 + $0x1e28] sm:$0xff]
        %v1420 = vld [vmem:[%s351 + $0x1e30] sm:$0xff]
        %v1421 = vld [vmem:[%s351 + $0x1e38] sm:$0xff]
        %v1422 = vld [vmem:[%s351 + $0x1e40] sm:$0xff]
        %v1423 = vld [vmem:[%s351 + $0x1e48] sm:$0xff]
        %v1424 = vld [vmem:[%s351 + $0x1e50] sm:$0xff]
        %v1425 = vld [vmem:[%s351 + $0x1e58] sm:$0xff]
        %v1426 = vld [vmem:[%s351 + $0x1e60] sm:$0xff]
        %v1427 = vld [vmem:[%s351 + $0x1e68] sm:$0xff]
        %v1428 = vld [vmem:[%s351 + $0x1e70] sm:$0xff]
        %v1429 = vld [vmem:[%s351 + $0x1e78] sm:$0xff]
        %v1430 = vld [vmem:[%s351 + $0x1e80] sm:$0xff]
        %v1431 = vld [vmem:[%s351 + $0x1e88] sm:$0xff]
        %v1432 = vld [vmem:[%s351 + $0x1e90] sm:$0xff]
        %v1433 = vld [vmem:[%s351 + $0x1e98] sm:$0xff]
        %v1434 = vld [vmem:[%s351 + $0x1ea0] sm:$0xff]
        %v1435 = vld [vmem:[%s351 + $0x1ea8] sm:$0xff]
        %v1436 = vld [vmem:[%s351 + $0x1eb0] sm:$0xff]
        %v1437 = vld [vmem:[%s351 + $0x1eb8] sm:$0xff]
        %v1438 = vld [vmem:[%s351 + $0x1ec0] sm:$0xff]
        %v1439 = vld [vmem:[%s351 + $0x1ec8] sm:$0xff]
        %v1440 = vld [vmem:[%s351 + $0x1ed0] sm:$0xff]
        %v1441 = vld [vmem:[%s351 + $0x1ed8] sm:$0xff]
        %v1442 = vld [vmem:[%s351 + $0x1ee0] sm:$0xff]
        %v1443 = vld [vmem:[%s351 + $0x1ee8] sm:$0xff]
        %v1444 = vld [vmem:[%s351 + $0x1ef0] sm:$0xff]
        %v1445 = vld [vmem:[%s351 + $0x1ef8] sm:$0xff]
        %v1446 = vld [vmem:[%s351 + $0x1f00] sm:$0xff]
        %v1447 = vld [vmem:[%s351 + $0x1f08] sm:$0xff]
        %v1448 = vld [vmem:[%s351 + $0x1f10] sm:$0xff]
        %v1449 = vld [vmem:[%s351 + $0x1f18] sm:$0xff]
        %v1450 = vld [vmem:[%s351 + $0x1f20] sm:$0xff]
        %v1451 = vld [vmem:[%s351 + $0x1f28] sm:$0xff]
        %v1452 = vld [vmem:[%s351 + $0x1f30] sm:$0xff]
        %v1453 = vld [vmem:[%s351 + $0x1f38] sm:$0xff]
        %v1454 = vld [vmem:[%s351 + $0x1f40] sm:$0xff]
        %v1455 = vld [vmem:[%s351 + $0x1f48] sm:$0xff]
        %v1456 = vld [vmem:[%s351 + $0x1f50] sm:$0xff]
        %v1457 = vld [vmem:[%s351 + $0x1f58] sm:$0xff]
        %v1458 = vld [vmem:[%s351 + $0x1f60] sm:$0xff]
        %v1459 = vld [vmem:[%s351 + $0x1f68] sm:$0xff]
        %v1460 = vld [vmem:[%s351 + $0x1f70] sm:$0xff]
        %v1461 = vld [vmem:[%s351 + $0x1f78] sm:$0xff]
        %v1462 = vld [vmem:[%s351 + $0x1f80] sm:$0xff]
        %v1463 = vld [vmem:[%s351 + $0x1f88] sm:$0xff]
        %v1464 = vld [vmem:[%s351 + $0x1f90] sm:$0xff]
        %v1465 = vld [vmem:[%s351 + $0x1f98] sm:$0xff]
        %v1466 = vld [vmem:[%s351 + $0x1fa0] sm:$0xff]
        %v1467 = vld [vmem:[%s351 + $0x1fa8] sm:$0xff]
        %v1468 = vld [vmem:[%s351 + $0x1fb0] sm:$0xff]
        %v1469 = vld [vmem:[%s351 + $0x1fb8] sm:$0xff]
        %v1470 = vld [vmem:[%s351 + $0x1fc0] sm:$0xff]
        %v1471 = vld [vmem:[%s351 + $0x1fc8] sm:$0xff]
        %v1472 = vld [vmem:[%s351 + $0x1fd0] sm:$0xff]
        %v1473 = vld [vmem:[%s351 + $0x1fd8] sm:$0xff]
        %v1474 = vld [vmem:[%s351 + $0x1fe0] sm:$0xff]
        %v1475 = vld [vmem:[%s351 + $0x1fe8] sm:$0xff]
        %v1476 = vld [vmem:[%s351 + $0x1ff0] sm:$0xff]
        %v1477 = vld [vmem:[%s351 + $0x1ff8] sm:$0xff]
        %v1482 = vcombine.high %v450, %v450
        %v1484 = vunpack.c.l.s4 1983009808
        %v1485 = vunpack.c.0.s8 %v1484
        %v1486 = vlaneseq
        %v1487 = vshrl.u32 %v1486, 7
        %v1488 = vsub.s32 %v1485, %v1487
        %v1489 = vrot.slane %v450, %v1488
        %v1491 = vunpack.c.l.s4 1983009808
        %v1492 = vunpack.c.0.s8 %v1491
        %v1493 = vlaneseq
        %v1494 = vshrl.u32 %v1493, 7
        %v1495 = vsub.s32 %v1492, %v1494
        %v1496 = vrot.slane %v1482, %v1495
        %v1497 = vcombine.high %v1489, %v1489
        %v1498 = vcombine.high %v1496, %v1496
        %v1499 = vcombine.high %v451, %v451
        %v1501 = vunpack.c.l.s4 1983009808
        %v1502 = vunpack.c.0.s8 %v1501
        %v1503 = vlaneseq
        %v1504 = vshrl.u32 %v1503, 7
        %v1505 = vsub.s32 %v1502, %v1504
        %v1506 = vrot.slane %v451, %v1505
        %v1508 = vunpack.c.l.s4 1983009808
        %v1509 = vunpack.c.0.s8 %v1508
        %v1510 = vlaneseq
        %v1511 = vshrl.u32 %v1510, 7
        %v1512 = vsub.s32 %v1509, %v1511
        %v1513 = vrot.slane %v1499, %v1512
        %v1514 = vcombine.high %v1506, %v1506
        %v1515 = vcombine.high %v1513, %v1513
        %v1516 = vcombine.high %v452, %v452
        %v1518 = vunpack.c.l.s4 1983009808
        %v1519 = vunpack.c.0.s8 %v1518
        %v1520 = vlaneseq
        %v1521 = vshrl.u32 %v1520, 7
        %v1522 = vsub.s32 %v1519, %v1521
        %v1523 = vrot.slane %v452, %v1522
        %v1525 = vunpack.c.l.s4 1983009808
        %v1526 = vunpack.c.0.s8 %v1525
        %v1527 = vlaneseq
        %v1528 = vshrl.u32 %v1527, 7
        %v1529 = vsub.s32 %v1526, %v1528
        %v1530 = vrot.slane %v1516, %v1529
        %v1531 = vcombine.high %v1523, %v1523
        %v1532 = vcombine.high %v1530, %v1530
        %v1533 = vcombine.high %v453, %v453
        %v1535 = vunpack.c.l.s4 1983009808
        %v1536 = vunpack.c.0.s8 %v1535
        %v1537 = vlaneseq
        %v1538 = vshrl.u32 %v1537, 7
        %v1539 = vsub.s32 %v1536, %v1538
        %v1540 = vrot.slane %v453, %v1539
        %v1542 = vunpack.c.l.s4 1983009808
        %v1543 = vunpack.c.0.s8 %v1542
        %v1544 = vlaneseq
        %v1545 = vshrl.u32 %v1544, 7
        %v1546 = vsub.s32 %v1543, %v1545
        %v1547 = vrot.slane %v1533, %v1546
        %v1548 = vcombine.high %v1540, %v1540
        %v1549 = vcombine.high %v1547, %v1547
        %1566 = vmatprep.subr.mxu0 %v515
        %1567 = vmatpush1.msra.mxu0 %v514
        %1568 = vmatprep.subr.mxu0 %v511
        %1569 = vmatpush1.msra.mxu0 %v510
        %1570 = vmatprep.subr.mxu0 %v507
        %1571 = vmatpush1.msra.mxu0 %v506
        %1572 = vmatprep.subr.mxu0 %v503
        %1573 = vmatpush1.msra.mxu0 %v502
        %1574 = vmatprep.subr.mxu0 %v499
        %1575 = vmatpush1.msra.mxu0 %v498
        %1576 = vmatprep.subr.mxu0 %v495
        %1577 = vmatpush1.msra.mxu0 %v494
        %1578 = vmatprep.subr.mxu0 %v491
        %1579 = vmatpush1.msra.mxu0 %v490
        %1580 = vmatprep.subr.mxu0 %v487
        %1581 = vmatpush1.msra.mxu0 %v486
        %1582 = vmatprep.subr.mxu0 %v483
        %1583 = vmatpush1.msra.mxu0 %v482
        %1584 = vmatprep.subr.mxu0 %v479
        %1585 = vmatpush1.msra.mxu0 %v478
        %1586 = vmatprep.subr.mxu0 %v475
        %1587 = vmatpush1.msra.mxu0 %v474
        %1588 = vmatprep.subr.mxu0 %v471
        %1589 = vmatpush1.msra.mxu0 %v470
        %1590 = vmatprep.subr.mxu0 %v467
        %1591 = vmatpush1.msra.mxu0 %v466
        %1592 = vmatprep.subr.mxu0 %v463
        %1593 = vmatpush1.msra.mxu0 %v462
        %1594 = vmatprep.subr.mxu0 %v459
        %1595 = vmatpush1.msra.mxu0 %v458
        %1596 = vmatprep.subr.mxu0 %v455
        %1597 = vmatpush1.msra.mxu0 %v454
        %1598 = vmatprep.subr.mxu0 %v579
        %1599 = vmatpush2.msra.mxu0 %v578
        %1600 = vmatprep.subr.mxu0 %v575
        %1601 = vmatpush2.msra.mxu0 %v574
        %1602 = vmatprep.subr.mxu0 %v571
        %1603 = vmatpush2.msra.mxu0 %v570
        %1604 = vmatprep.subr.mxu0 %v567
        %1605 = vmatpush2.msra.mxu0 %v566
        %1606 = vmatprep.subr.mxu0 %v563
        %1607 = vmatpush2.msra.mxu0 %v562
        %1608 = vmatprep.subr.mxu0 %v559
        %1609 = vmatpush2.msra.mxu0 %v558
        %1610 = vmatprep.subr.mxu0 %v555
        %1611 = vmatpush2.msra.mxu0 %v554
        %1612 = vmatprep.subr.mxu0 %v551
        %1613 = vmatpush2.msra.mxu0 %v550
        %1614 = vmatprep.subr.mxu0 %v547
        %1615 = vmatpush2.msra.mxu0 %v546
        %1616 = vmatprep.subr.mxu0 %v543
        %1617 = vmatpush2.msra.mxu0 %v542
        %1618 = vmatprep.subr.mxu0 %v539
        %1619 = vmatpush2.msra.mxu0 %v538
        %1620 = vmatprep.subr.mxu0 %v535
        %1621 = vmatpush2.msra.mxu0 %v534
        %1622 = vmatprep.subr.mxu0 %v531
        %1623 = vmatpush2.msra.mxu0 %v530
        %1624 = vmatprep.subr.mxu0 %v527
        %1625 = vmatpush2.msra.mxu0 %v526
        %1626 = vmatprep.subr.mxu0 %v523
        %1627 = vmatpush2.msra.mxu0 %v522
        %1628 = vmatprep.subr.mxu0 %v519
        %1629 = vmatpush2.msra.mxu0 %v518
        %1630 = vmatprep.mubr.f32.mxu0 %v1497
        %1631 = vmatmul.mubr.f32.gmra.mxu0 %v1489
        %v1632 = vpop.f32.mrf.mxu0
        %v1633 = vadd.f32 0.0, %v1632
        %v1634 = vpop.f32.mrf.mxu0
        %v1635 = vadd.f32 0.0, %v1634
        %1636 = vdwg.mxu0
        %1637 = vmatprep.subr.mxu0 %v643
        %1638 = vmatpush1.msra.mxu0 %v642
        %1639 = vmatprep.subr.mxu0 %v639
        %1640 = vmatpush1.msra.mxu0 %v638
        %1641 = vmatprep.subr.mxu0 %v635
        %1642 = vmatpush1.msra.mxu0 %v634
        %1643 = vmatprep.subr.mxu0 %v631
        %1644 = vmatpush1.msra.mxu0 %v630
        %1645 = vmatprep.subr.mxu0 %v627
        %1646 = vmatpush1.msra.mxu0 %v626
        %1647 = vmatprep.subr.mxu0 %v623
        %1648 = vmatpush1.msra.mxu0 %v622
        %1649 = vmatprep.subr.mxu0 %v619
        %1650 = vmatpush1.msra.mxu0 %v618
        %1651 = vmatprep.subr.mxu0 %v615
        %1652 = vmatpush1.msra.mxu0 %v614
        %1653 = vmatprep.subr.mxu0 %v611
        %1654 = vmatpush1.msra.mxu0 %v610
        %1655 = vmatprep.subr.mxu0 %v607
        %1656 = vmatpush1.msra.mxu0 %v606
        %1657 = vmatprep.subr.mxu0 %v603
        %1658 = vmatpush1.msra.mxu0 %v602
        %1659 = vmatprep.subr.mxu0 %v599
        %1660 = vmatpush1.msra.mxu0 %v598
        %1661 = vmatprep.subr.mxu0 %v595
        %1662 = vmatpush1.msra.mxu0 %v594
        %1663 = vmatprep.subr.mxu0 %v591
        %1664 = vmatpush1.msra.mxu0 %v590
        %1665 = vmatprep.subr.mxu0 %v587
        %1666 = vmatpush1.msra.mxu0 %v586
        %1667 = vmatprep.subr.mxu0 %v583
        %1668 = vmatpush1.msra.mxu0 %v582
        %1669 = vmatprep.subr.mxu0 %v707
        %1670 = vmatpush2.msra.mxu0 %v706
        %1671 = vmatprep.subr.mxu0 %v703
        %1672 = vmatpush2.msra.mxu0 %v702
        %1673 = vmatprep.subr.mxu0 %v699
        %1674 = vmatpush2.msra.mxu0 %v698
        %1675 = vmatprep.subr.mxu0 %v695
        %1676 = vmatpush2.msra.mxu0 %v694
        %1677 = vmatprep.subr.mxu0 %v691
        %1678 = vmatpush2.msra.mxu0 %v690
        %1679 = vmatprep.subr.mxu0 %v687
        %1680 = vmatpush2.msra.mxu0 %v686
        %1681 = vmatprep.subr.mxu0 %v683
        %1682 = vmatpush2.msra.mxu0 %v682
        %1683 = vmatprep.subr.mxu0 %v679
        %1684 = vmatpush2.msra.mxu0 %v678
        %1685 = vmatprep.subr.mxu0 %v675
        %1686 = vmatpush2.msra.mxu0 %v674
        %1687 = vmatprep.subr.mxu0 %v671
        %1688 = vmatpush2.msra.mxu0 %v670
        %1689 = vmatprep.subr.mxu0 %v667
        %1690 = vmatpush2.msra.mxu0 %v666
        %1691 = vmatprep.subr.mxu0 %v663
        %1692 = vmatpush2.msra.mxu0 %v662
        %1693 = vmatprep.subr.mxu0 %v659
        %1694 = vmatpush2.msra.mxu0 %v658
        %1695 = vmatprep.subr.mxu0 %v655
        %1696 = vmatpush2.msra.mxu0 %v654
        %1697 = vmatprep.subr.mxu0 %v651
        %1698 = vmatpush2.msra.mxu0 %v650
        %1699 = vmatprep.subr.mxu0 %v647
        %1700 = vmatpush2.msra.mxu0 %v646
        %1701 = vmatprep.mubr.f32.mxu0 %v1498
        %1702 = vmatmul.mubr.f32.gmra.mxu0 %v1496
        %v1703 = vpop.f32.mrf.mxu0
        %v1704 = vadd.f32 %v1633, %v1703
        %v1705 = vpop.f32.mrf.mxu0
        %v1706 = vadd.f32 %v1635, %v1705
        %1707 = vdwg.mxu0
        %1708 = vmatprep.subr.mxu0 %v771
        %1709 = vmatpush1.msra.mxu0 %v770
        %1710 = vmatprep.subr.mxu0 %v767
        %1711 = vmatpush1.msra.mxu0 %v766
        %1712 = vmatprep.subr.mxu0 %v763
        %1713 = vmatpush1.msra.mxu0 %v762
        %1714 = vmatprep.subr.mxu0 %v759
        %1715 = vmatpush1.msra.mxu0 %v758
        %1716 = vmatprep.subr.mxu0 %v755
        %1717 = vmatpush1.msra.mxu0 %v754
        %1718 = vmatprep.subr.mxu0 %v751
        %1719 = vmatpush1.msra.mxu0 %v750
        %1720 = vmatprep.subr.mxu0 %v747
        %1721 = vmatpush1.msra.mxu0 %v746
        %1722 = vmatprep.subr.mxu0 %v743
        %1723 = vmatpush1.msra.mxu0 %v742
        %1724 = vmatprep.subr.mxu0 %v739
        %1725 = vmatpush1.msra.mxu0 %v738
        %1726 = vmatprep.subr.mxu0 %v735
        %1727 = vmatpush1.msra.mxu0 %v734
        %1728 = vmatprep.subr.mxu0 %v731
        %1729 = vmatpush1.msra.mxu0 %v730
        %1730 = vmatprep.subr.mxu0 %v727
        %1731 = vmatpush1.msra.mxu0 %v726
        %1732 = vmatprep.subr.mxu0 %v723
        %1733 = vmatpush1.msra.mxu0 %v722
        %1734 = vmatprep.subr.mxu0 %v719
        %1735 = vmatpush1.msra.mxu0 %v718
        %1736 = vmatprep.subr.mxu0 %v715
        %1737 = vmatpush1.msra.mxu0 %v714
        %1738 = vmatprep.subr.mxu0 %v711
        %1739 = vmatpush1.msra.mxu0 %v710
        %1740 = vmatprep.subr.mxu0 %v835
        %1741 = vmatpush2.msra.mxu0 %v834
        %1742 = vmatprep.subr.mxu0 %v831
        %1743 = vmatpush2.msra.mxu0 %v830
        %1744 = vmatprep.subr.mxu0 %v827
        %1745 = vmatpush2.msra.mxu0 %v826
        %1746 = vmatprep.subr.mxu0 %v823
        %1747 = vmatpush2.msra.mxu0 %v822
        %1748 = vmatprep.subr.mxu0 %v819
        %1749 = vmatpush2.msra.mxu0 %v818
        %1750 = vmatprep.subr.mxu0 %v815
        %1751 = vmatpush2.msra.mxu0 %v814
        %1752 = vmatprep.subr.mxu0 %v811
        %1753 = vmatpush2.msra.mxu0 %v810
        %1754 = vmatprep.subr.mxu0 %v807
        %1755 = vmatpush2.msra.mxu0 %v806
        %1756 = vmatprep.subr.mxu0 %v803
        %1757 = vmatpush2.msra.mxu0 %v802
        %1758 = vmatprep.subr.mxu0 %v799
        %1759 = vmatpush2.msra.mxu0 %v798
        %1760 = vmatprep.subr.mxu0 %v795
        %1761 = vmatpush2.msra.mxu0 %v794
        %1762 = vmatprep.subr.mxu0 %v791
        %1763 = vmatpush2.msra.mxu0 %v790
        %1764 = vmatprep.subr.mxu0 %v787
        %1765 = vmatpush2.msra.mxu0 %v786
        %1766 = vmatprep.subr.mxu0 %v783
        %1767 = vmatpush2.msra.mxu0 %v782
        %1768 = vmatprep.subr.mxu0 %v779
        %1769 = vmatpush2.msra.mxu0 %v778
        %1770 = vmatprep.subr.mxu0 %v775
        %1771 = vmatpush2.msra.mxu0 %v774
        %1772 = vmatprep.mubr.f32.mxu0 %v1514
        %1773 = vmatmul.mubr.f32.gmra.mxu0 %v1506
        %v1774 = vpop.f32.mrf.mxu0
        %v1775 = vadd.f32 %v1704, %v1774
        %v1776 = vpop.f32.mrf.mxu0
        %v1777 = vadd.f32 %v1706, %v1776
        %1778 = vdwg.mxu0
        %1779 = vmatprep.subr.mxu0 %v899
        %1780 = vmatpush1.msra.mxu0 %v898
        %1781 = vmatprep.subr.mxu0 %v895
        %1782 = vmatpush1.msra.mxu0 %v894
        %1783 = vmatprep.subr.mxu0 %v891
        %1784 = vmatpush1.msra.mxu0 %v890
        %1785 = vmatprep.subr.mxu0 %v887
        %1786 = vmatpush1.msra.mxu0 %v886
        %1787 = vmatprep.subr.mxu0 %v883
        %1788 = vmatpush1.msra.mxu0 %v882
        %1789 = vmatprep.subr.mxu0 %v879
        %1790 = vmatpush1.msra.mxu0 %v878
        %1791 = vmatprep.subr.mxu0 %v875
        %1792 = vmatpush1.msra.mxu0 %v874
        %1793 = vmatprep.subr.mxu0 %v871
        %1794 = vmatpush1.msra.mxu0 %v870
        %1795 = vmatprep.subr.mxu0 %v867
        %1796 = vmatpush1.msra.mxu0 %v866
        %1797 = vmatprep.subr.mxu0 %v863
        %1798 = vmatpush1.msra.mxu0 %v862
        %1799 = vmatprep.subr.mxu0 %v859
        %1800 = vmatpush1.msra.mxu0 %v858
        %1801 = vmatprep.subr.mxu0 %v855
        %1802 = vmatpush1.msra.mxu0 %v854
        %1803 = vmatprep.subr.mxu0 %v851
        %1804 = vmatpush1.msra.mxu0 %v850
        %1805 = vmatprep.subr.mxu0 %v847
        %1806 = vmatpush1.msra.mxu0 %v846
        %1807 = vmatprep.subr.mxu0 %v843
        %1808 = vmatpush1.msra.mxu0 %v842
        %1809 = vmatprep.subr.mxu0 %v839
        %1810 = vmatpush1.msra.mxu0 %v838
        %1811 = vmatprep.subr.mxu0 %v963
        %1812 = vmatpush2.msra.mxu0 %v962
        %1813 = vmatprep.subr.mxu0 %v959
        %1814 = vmatpush2.msra.mxu0 %v958
        %1815 = vmatprep.subr.mxu0 %v955
        %1816 = vmatpush2.msra.mxu0 %v954
        %1817 = vmatprep.subr.mxu0 %v951
        %1818 = vmatpush2.msra.mxu0 %v950
        %1819 = vmatprep.subr.mxu0 %v947
        %1820 = vmatpush2.msra.mxu0 %v946
        %1821 = vmatprep.subr.mxu0 %v943
        %1822 = vmatpush2.msra.mxu0 %v942
        %1823 = vmatprep.subr.mxu0 %v939
        %1824 = vmatpush2.msra.mxu0 %v938
        %1825 = vmatprep.subr.mxu0 %v935
        %1826 = vmatpush2.msra.mxu0 %v934
        %1827 = vmatprep.subr.mxu0 %v931
        %1828 = vmatpush2.msra.mxu0 %v930
        %1829 = vmatprep.subr.mxu0 %v927
        %1830 = vmatpush2.msra.mxu0 %v926
        %1831 = vmatprep.subr.mxu0 %v923
        %1832 = vmatpush2.msra.mxu0 %v922
        %1833 = vmatprep.subr.mxu0 %v919
        %1834 = vmatpush2.msra.mxu0 %v918
        %1835 = vmatprep.subr.mxu0 %v915
        %1836 = vmatpush2.msra.mxu0 %v914
        %1837 = vmatprep.subr.mxu0 %v911
        %1838 = vmatpush2.msra.mxu0 %v910
        %1839 = vmatprep.subr.mxu0 %v907
        %1840 = vmatpush2.msra.mxu0 %v906
        %1841 = vmatprep.subr.mxu0 %v903
        %1842 = vmatpush2.msra.mxu0 %v902
        %1843 = vmatprep.mubr.f32.mxu0 %v1515
        %1844 = vmatmul.mubr.f32.gmra.mxu0 %v1513
        %v1845 = vpop.f32.mrf.mxu0
        %v1846 = vadd.f32 %v1775, %v1845
        %v1847 = vpop.f32.mrf.mxu0
        %v1848 = vadd.f32 %v1777, %v1847
        %1849 = vdwg.mxu0
        %1850 = vmatprep.subr.mxu0 %v1027
        %1851 = vmatpush1.msra.mxu0 %v1026
        %1852 = vmatprep.subr.mxu0 %v1023
        %1853 = vmatpush1.msra.mxu0 %v1022
        %1854 = vmatprep.subr.mxu0 %v1019
        %1855 = vmatpush1.msra.mxu0 %v1018
        %1856 = vmatprep.subr.mxu0 %v1015
        %1857 = vmatpush1.msra.mxu0 %v1014
        %1858 = vmatprep.subr.mxu0 %v1011
        %1859 = vmatpush1.msra.mxu0 %v1010
        %1860 = vmatprep.subr.mxu0 %v1007
        %1861 = vmatpush1.msra.mxu0 %v1006
        %1862 = vmatprep.subr.mxu0 %v1003
        %1863 = vmatpush1.msra.mxu0 %v1002
        %1864 = vmatprep.subr.mxu0 %v999
        %1865 = vmatpush1.msra.mxu0 %v998
        %1866 = vmatprep.subr.mxu0 %v995
        %1867 = vmatpush1.msra.mxu0 %v994
        %1868 = vmatprep.subr.mxu0 %v991
        %1869 = vmatpush1.msra.mxu0 %v990
        %1870 = vmatprep.subr.mxu0 %v987
        %1871 = vmatpush1.msra.mxu0 %v986
        %1872 = vmatprep.subr.mxu0 %v983
        %1873 = vmatpush1.msra.mxu0 %v982
        %1874 = vmatprep.subr.mxu0 %v979
        %1875 = vmatpush1.msra.mxu0 %v978
        %1876 = vmatprep.subr.mxu0 %v975
        %1877 = vmatpush1.msra.mxu0 %v974
        %1878 = vmatprep.subr.mxu0 %v971
        %1879 = vmatpush1.msra.mxu0 %v970
        %1880 = vmatprep.subr.mxu0 %v967
        %1881 = vmatpush1.msra.mxu0 %v966
        %1882 = vmatprep.subr.mxu0 %v1091
        %1883 = vmatpush2.msra.mxu0 %v1090
        %1884 = vmatprep.subr.mxu0 %v1087
        %1885 = vmatpush2.msra.mxu0 %v1086
        %1886 = vmatprep.subr.mxu0 %v1083
        %1887 = vmatpush2.msra.mxu0 %v1082
        %1888 = vmatprep.subr.mxu0 %v1079
        %1889 = vmatpush2.msra.mxu0 %v1078
        %1890 = vmatprep.subr.mxu0 %v1075
        %1891 = vmatpush2.msra.mxu0 %v1074
        %1892 = vmatprep.subr.mxu0 %v1071
        %1893 = vmatpush2.msra.mxu0 %v1070
        %1894 = vmatprep.subr.mxu0 %v1067
        %1895 = vmatpush2.msra.mxu0 %v1066
        %1896 = vmatprep.subr.mxu0 %v1063
        %1897 = vmatpush2.msra.mxu0 %v1062
        %1898 = vmatprep.subr.mxu0 %v1059
        %1899 = vmatpush2.msra.mxu0 %v1058
        %1900 = vmatprep.subr.mxu0 %v1055
        %1901 = vmatpush2.msra.mxu0 %v1054
        %1902 = vmatprep.subr.mxu0 %v1051
        %1903 = vmatpush2.msra.mxu0 %v1050
        %1904 = vmatprep.subr.mxu0 %v1047
        %1905 = vmatpush2.msra.mxu0 %v1046
        %1906 = vmatprep.subr.mxu0 %v1043
        %1907 = vmatpush2.msra.mxu0 %v1042
        %1908 = vmatprep.subr.mxu0 %v1039
        %1909 = vmatpush2.msra.mxu0 %v1038
        %1910 = vmatprep.subr.mxu0 %v1035
        %1911 = vmatpush2.msra.mxu0 %v1034
        %1912 = vmatprep.subr.mxu0 %v1031
        %1913 = vmatpush2.msra.mxu0 %v1030
        %1914 = vmatprep.mubr.f32.mxu0 %v1531
        %1915 = vmatmul.mubr.f32.gmra.mxu0 %v1523
        %v1916 = vpop.f32.mrf.mxu0
        %v1917 = vadd.f32 %v1846, %v1916
        %v1918 = vpop.f32.mrf.mxu0
        %v1919 = vadd.f32 %v1848, %v1918
        %1920 = vdwg.mxu0
        %1921 = vmatprep.subr.mxu0 %v1155
        %1922 = vmatpush1.msra.mxu0 %v1154
        %1923 = vmatprep.subr.mxu0 %v1151
        %1924 = vmatpush1.msra.mxu0 %v1150
        %1925 = vmatprep.subr.mxu0 %v1147
        %1926 = vmatpush1.msra.mxu0 %v1146
        %1927 = vmatprep.subr.mxu0 %v1143
        %1928 = vmatpush1.msra.mxu0 %v1142
        %1929 = vmatprep.subr.mxu0 %v1139
        %1930 = vmatpush1.msra.mxu0 %v1138
        %1931 = vmatprep.subr.mxu0 %v1135
        %1932 = vmatpush1.msra.mxu0 %v1134
        %1933 = vmatprep.subr.mxu0 %v1131
        %1934 = vmatpush1.msra.mxu0 %v1130
        %1935 = vmatprep.subr.mxu0 %v1127
        %1936 = vmatpush1.msra.mxu0 %v1126
        %1937 = vmatprep.subr.mxu0 %v1123
        %1938 = vmatpush1.msra.mxu0 %v1122
        %1939 = vmatprep.subr.mxu0 %v1119
        %1940 = vmatpush1.msra.mxu0 %v1118
        %1941 = vmatprep.subr.mxu0 %v1115
        %1942 = vmatpush1.msra.mxu0 %v1114
        %1943 = vmatprep.subr.mxu0 %v1111
        %1944 = vmatpush1.msra.mxu0 %v1110
        %1945 = vmatprep.subr.mxu0 %v1107
        %1946 = vmatpush1.msra.mxu0 %v1106
        %1947 = vmatprep.subr.mxu0 %v1103
        %1948 = vmatpush1.msra.mxu0 %v1102
        %1949 = vmatprep.subr.mxu0 %v1099
        %1950 = vmatpush1.msra.mxu0 %v1098
        %1951 = vmatprep.subr.mxu0 %v1095
        %1952 = vmatpush1.msra.mxu0 %v1094
        %1953 = vmatprep.subr.mxu0 %v1219
        %1954 = vmatpush2.msra.mxu0 %v1218
        %1955 = vmatprep.subr.mxu0 %v1215
        %1956 = vmatpush2.msra.mxu0 %v1214
        %1957 = vmatprep.subr.mxu0 %v1211
        %1958 = vmatpush2.msra.mxu0 %v1210
        %1959 = vmatprep.subr.mxu0 %v1207
        %1960 = vmatpush2.msra.mxu0 %v1206
        %1961 = vmatprep.subr.mxu0 %v1203
        %1962 = vmatpush2.msra.mxu0 %v1202
        %1963 = vmatprep.subr.mxu0 %v1199
        %1964 = vmatpush2.msra.mxu0 %v1198
        %1965 = vmatprep.subr.mxu0 %v1195
        %1966 = vmatpush2.msra.mxu0 %v1194
        %1967 = vmatprep.subr.mxu0 %v1191
        %1968 = vmatpush2.msra.mxu0 %v1190
        %1969 = vmatprep.subr.mxu0 %v1187
        %1970 = vmatpush2.msra.mxu0 %v1186
        %1971 = vmatprep.subr.mxu0 %v1183
        %1972 = vmatpush2.msra.mxu0 %v1182
        %1973 = vmatprep.subr.mxu0 %v1179
        %1974 = vmatpush2.msra.mxu0 %v1178
        %1975 = vmatprep.subr.mxu0 %v1175
        %1976 = vmatpush2.msra.mxu0 %v1174
        %1977 = vmatprep.subr.mxu0 %v1171
        %1978 = vmatpush2.msra.mxu0 %v1170
        %1979 = vmatprep.subr.mxu0 %v1167
        %1980 = vmatpush2.msra.mxu0 %v1166
        %1981 = vmatprep.subr.mxu0 %v1163
        %1982 = vmatpush2.msra.mxu0 %v1162
        %1983 = vmatprep.subr.mxu0 %v1159
        %1984 = vmatpush2.msra.mxu0 %v1158
        %1985 = vmatprep.mubr.f32.mxu0 %v1532
        %1986 = vmatmul.mubr.f32.gmra.mxu0 %v1530
        %v1987 = vpop.f32.mrf.mxu0
        %v1988 = vadd.f32 %v1917, %v1987
        %v1989 = vpop.f32.mrf.mxu0
        %v1990 = vadd.f32 %v1919, %v1989
        %1991 = vdwg.mxu0
        %1992 = vmatprep.subr.mxu0 %v1283
        %1993 = vmatpush1.msra.mxu0 %v1282
        %1994 = vmatprep.subr.mxu0 %v1279
        %1995 = vmatpush1.msra.mxu0 %v1278
        %1996 = vmatprep.subr.mxu0 %v1275
        %1997 = vmatpush1.msra.mxu0 %v1274
        %1998 = vmatprep.subr.mxu0 %v1271
        %1999 = vmatpush1.msra.mxu0 %v1270
        %2000 = vmatprep.subr.mxu0 %v1267
        %2001 = vmatpush1.msra.mxu0 %v1266
        %2002 = vmatprep.subr.mxu0 %v1263
        %2003 = vmatpush1.msra.mxu0 %v1262
        %2004 = vmatprep.subr.mxu0 %v1259
        %2005 = vmatpush1.msra.mxu0 %v1258
        %2006 = vmatprep.subr.mxu0 %v1255
        %2007 = vmatpush1.msra.mxu0 %v1254
        %2008 = vmatprep.subr.mxu0 %v1251
        %2009 = vmatpush1.msra.mxu0 %v1250
        %2010 = vmatprep.subr.mxu0 %v1247
        %2011 = vmatpush1.msra.mxu0 %v1246
        %2012 = vmatprep.subr.mxu0 %v1243
        %2013 = vmatpush1.msra.mxu0 %v1242
        %2014 = vmatprep.subr.mxu0 %v1239
        %2015 = vmatpush1.msra.mxu0 %v1238
        %2016 = vmatprep.subr.mxu0 %v1235
        %2017 = vmatpush1.msra.mxu0 %v1234
        %2018 = vmatprep.subr.mxu0 %v1231
        %2019 = vmatpush1.msra.mxu0 %v1230
        %2020 = vmatprep.subr.mxu0 %v1227
        %2021 = vmatpush1.msra.mxu0 %v1226
        %2022 = vmatprep.subr.mxu0 %v1223
        %2023 = vmatpush1.msra.mxu0 %v1222
        %2024 = vmatprep.subr.mxu0 %v1347
        %2025 = vmatpush2.msra.mxu0 %v1346
        %2026 = vmatprep.subr.mxu0 %v1343
        %2027 = vmatpush2.msra.mxu0 %v1342
        %2028 = vmatprep.subr.mxu0 %v1339
        %2029 = vmatpush2.msra.mxu0 %v1338
        %2030 = vmatprep.subr.mxu0 %v1335
        %2031 = vmatpush2.msra.mxu0 %v1334
        %2032 = vmatprep.subr.mxu0 %v1331
        %2033 = vmatpush2.msra.mxu0 %v1330
        %2034 = vmatprep.subr.mxu0 %v1327
        %2035 = vmatpush2.msra.mxu0 %v1326
        %2036 = vmatprep.subr.mxu0 %v1323
        %2037 = vmatpush2.msra.mxu0 %v1322
        %2038 = vmatprep.subr.mxu0 %v1319
        %2039 = vmatpush2.msra.mxu0 %v1318
        %2040 = vmatprep.subr.mxu0 %v1315
        %2041 = vmatpush2.msra.mxu0 %v1314
        %2042 = vmatprep.subr.mxu0 %v1311
        %2043 = vmatpush2.msra.mxu0 %v1310
        %2044 = vmatprep.subr.mxu0 %v1307
        %2045 = vmatpush2.msra.mxu0 %v1306
        %2046 = vmatprep.subr.mxu0 %v1303
        %2047 = vmatpush2.msra.mxu0 %v1302
        %2048 = vmatprep.subr.mxu0 %v1299
        %2049 = vmatpush2.msra.mxu0 %v1298
        %2050 = vmatprep.subr.mxu0 %v1295
        %2051 = vmatpush2.msra.mxu0 %v1294
        %2052 = vmatprep.subr.mxu0 %v1291
        %2053 = vmatpush2.msra.mxu0 %v1290
        %2054 = vmatprep.subr.mxu0 %v1287
        %2055 = vmatpush2.msra.mxu0 %v1286
        %2056 = vmatprep.mubr.f32.mxu0 %v1548
        %2057 = vmatmul.mubr.f32.gmra.mxu0 %v1540
        %v2058 = vpop.f32.mrf.mxu0
        %v2059 = vadd.f32 %v1988, %v2058
        %v2060 = vpop.f32.mrf.mxu0
        %v2061 = vadd.f32 %v1990, %v2060
        %2062 = vdwg.mxu0
        %2063 = vmatprep.subr.mxu0 %v1411
        %2064 = vmatpush1.msra.mxu0 %v1410
        %2065 = vmatprep.subr.mxu0 %v1407
        %2066 = vmatpush1.msra.mxu0 %v1406
        %2067 = vmatprep.subr.mxu0 %v1403
        %2068 = vmatpush1.msra.mxu0 %v1402
        %2069 = vmatprep.subr.mxu0 %v1399
        %2070 = vmatpush1.msra.mxu0 %v1398
        %2071 = vmatprep.subr.mxu0 %v1395
        %2072 = vmatpush1.msra.mxu0 %v1394
        %2073 = vmatprep.subr.mxu0 %v1391
        %2074 = vmatpush1.msra.mxu0 %v1390
        %2075 = vmatprep.subr.mxu0 %v1387
        %2076 = vmatpush1.msra.mxu0 %v1386
        %2077 = vmatprep.subr.mxu0 %v1383
        %2078 = vmatpush1.msra.mxu0 %v1382
        %2079 = vmatprep.subr.mxu0 %v1379
        %2080 = vmatpush1.msra.mxu0 %v1378
        %2081 = vmatprep.subr.mxu0 %v1375
        %2082 = vmatpush1.msra.mxu0 %v1374
        %2083 = vmatprep.subr.mxu0 %v1371
        %2084 = vmatpush1.msra.mxu0 %v1370
        %2085 = vmatprep.subr.mxu0 %v1367
        %2086 = vmatpush1.msra.mxu0 %v1366
        %2087 = vmatprep.subr.mxu0 %v1363
        %2088 = vmatpush1.msra.mxu0 %v1362
        %2089 = vmatprep.subr.mxu0 %v1359
        %2090 = vmatpush1.msra.mxu0 %v1358
        %2091 = vmatprep.subr.mxu0 %v1355
        %2092 = vmatpush1.msra.mxu0 %v1354
        %2093 = vmatprep.subr.mxu0 %v1351
        %2094 = vmatpush1.msra.mxu0 %v1350
        %2095 = vmatprep.subr.mxu0 %v1475
        %2096 = vmatpush2.msra.mxu0 %v1474
        %2097 = vmatprep.subr.mxu0 %v1471
        %2098 = vmatpush2.msra.mxu0 %v1470
        %2099 = vmatprep.subr.mxu0 %v1467
        %2100 = vmatpush2.msra.mxu0 %v1466
        %2101 = vmatprep.subr.mxu0 %v1463
        %2102 = vmatpush2.msra.mxu0 %v1462
        %2103 = vmatprep.subr.mxu0 %v1459
        %2104 = vmatpush2.msra.mxu0 %v1458
        %2105 = vmatprep.subr.mxu0 %v1455
        %2106 = vmatpush2.msra.mxu0 %v1454
        %2107 = vmatprep.subr.mxu0 %v1451
        %2108 = vmatpush2.msra.mxu0 %v1450
        %2109 = vmatprep.subr.mxu0 %v1447
        %2110 = vmatpush2.msra.mxu0 %v1446
        %2111 = vmatprep.subr.mxu0 %v1443
        %2112 = vmatpush2.msra.mxu0 %v1442
        %2113 = vmatprep.subr.mxu0 %v1439
        %2114 = vmatpush2.msra.mxu0 %v1438
        %2115 = vmatprep.subr.mxu0 %v1435
        %2116 = vmatpush2.msra.mxu0 %v1434
        %2117 = vmatprep.subr.mxu0 %v1431
        %2118 = vmatpush2.msra.mxu0 %v1430
        %2119 = vmatprep.subr.mxu0 %v1427
        %2120 = vmatpush2.msra.mxu0 %v1426
        %2121 = vmatprep.subr.mxu0 %v1423
        %2122 = vmatpush2.msra.mxu0 %v1422
        %2123 = vmatprep.subr.mxu0 %v1419
        %2124 = vmatpush2.msra.mxu0 %v1418
        %2125 = vmatprep.subr.mxu0 %v1415
        %2126 = vmatpush2.msra.mxu0 %v1414
        %2127 = vmatprep.mubr.f32.mxu0 %v1549
        %2128 = vmatmul.mubr.f32.gmra.mxu0 %v1547
        %v2129 = vpop.f32.mrf.mxu0
        %v2130 = vadd.f32 %v2059, %v2129
        %v2131 = vpop.f32.mrf.mxu0
        %v2132 = vadd.f32 %v2061, %v2131
        %2133 = vdwg.mxu0
        %2134 = vmatprep.subr.mxu0 %v517
        %2135 = vmatpush1.msra.mxu0 %v516
        %2136 = vmatprep.subr.mxu0 %v513
        %2137 = vmatpush1.msra.mxu0 %v512
        %2138 = vmatprep.subr.mxu0 %v509
        %2139 = vmatpush1.msra.mxu0 %v508
        %2140 = vmatprep.subr.mxu0 %v505
        %2141 = vmatpush1.msra.mxu0 %v504
        %2142 = vmatprep.subr.mxu0 %v501
        %2143 = vmatpush1.msra.mxu0 %v500
        %2144 = vmatprep.subr.mxu0 %v497
        %2145 = vmatpush1.msra.mxu0 %v496
        %2146 = vmatprep.subr.mxu0 %v493
        %2147 = vmatpush1.msra.mxu0 %v492
        %2148 = vmatprep.subr.mxu0 %v489
        %2149 = vmatpush1.msra.mxu0 %v488
        %2150 = vmatprep.subr.mxu0 %v485
        %2151 = vmatpush1.msra.mxu0 %v484
        %2152 = vmatprep.subr.mxu0 %v481
        %2153 = vmatpush1.msra.mxu0 %v480
        %2154 = vmatprep.subr.mxu0 %v477
        %2155 = vmatpush1.msra.mxu0 %v476
        %2156 = vmatprep.subr.mxu0 %v473
        %2157 = vmatpush1.msra.mxu0 %v472
        %2158 = vmatprep.subr.mxu0 %v469
        %2159 = vmatpush1.msra.mxu0 %v468
        %2160 = vmatprep.subr.mxu0 %v465
        %2161 = vmatpush1.msra.mxu0 %v464
        %2162 = vmatprep.subr.mxu0 %v461
        %2163 = vmatpush1.msra.mxu0 %v460
        %2164 = vmatprep.subr.mxu0 %v457
        %2165 = vmatpush1.msra.mxu0 %v456
        %2166 = vmatprep.subr.mxu0 %v581
        %2167 = vmatpush2.msra.mxu0 %v580
        %2168 = vmatprep.subr.mxu0 %v577
        %2169 = vmatpush2.msra.mxu0 %v576
        %2170 = vmatprep.subr.mxu0 %v573
        %2171 = vmatpush2.msra.mxu0 %v572
        %2172 = vmatprep.subr.mxu0 %v569
        %2173 = vmatpush2.msra.mxu0 %v568
        %2174 = vmatprep.subr.mxu0 %v565
        %2175 = vmatpush2.msra.mxu0 %v564
        %2176 = vmatprep.subr.mxu0 %v561
        %2177 = vmatpush2.msra.mxu0 %v560
        %2178 = vmatprep.subr.mxu0 %v557
        %2179 = vmatpush2.msra.mxu0 %v556
        %2180 = vmatprep.subr.mxu0 %v553
        %2181 = vmatpush2.msra.mxu0 %v552
        %2182 = vmatprep.subr.mxu0 %v549
        %2183 = vmatpush2.msra.mxu0 %v548
        %2184 = vmatprep.subr.mxu0 %v545
        %2185 = vmatpush2.msra.mxu0 %v544
        %2186 = vmatprep.subr.mxu0 %v541
        %2187 = vmatpush2.msra.mxu0 %v540
        %2188 = vmatprep.subr.mxu0 %v537
        %2189 = vmatpush2.msra.mxu0 %v536
        %2190 = vmatprep.subr.mxu0 %v533
        %2191 = vmatpush2.msra.mxu0 %v532
        %2192 = vmatprep.subr.mxu0 %v529
        %2193 = vmatpush2.msra.mxu0 %v528
        %2194 = vmatprep.subr.mxu0 %v525
        %2195 = vmatpush2.msra.mxu0 %v524
        %2196 = vmatprep.subr.mxu0 %v521
        %2197 = vmatpush2.msra.mxu0 %v520
        %2198 = vmatprep.mubr.f32.mxu0 %v1497
        %2199 = vmatmul.mubr.f32.gmra.mxu0 %v1489
        %v2200 = vpop.f32.mrf.mxu0
        %v2201 = vadd.f32 0.0, %v2200
        %v2202 = vpop.f32.mrf.mxu0
        %v2203 = vadd.f32 0.0, %v2202
        %2204 = vdwg.mxu0
        %2205 = vmatprep.subr.mxu0 %v645
        %2206 = vmatpush1.msra.mxu0 %v644
        %2207 = vmatprep.subr.mxu0 %v641
        %2208 = vmatpush1.msra.mxu0 %v640
        %2209 = vmatprep.subr.mxu0 %v637
        %2210 = vmatpush1.msra.mxu0 %v636
        %2211 = vmatprep.subr.mxu0 %v633
        %2212 = vmatpush1.msra.mxu0 %v632
        %2213 = vmatprep.subr.mxu0 %v629
        %2214 = vmatpush1.msra.mxu0 %v628
        %2215 = vmatprep.subr.mxu0 %v625
        %2216 = vmatpush1.msra.mxu0 %v624
        %2217 = vmatprep.subr.mxu0 %v621
        %2218 = vmatpush1.msra.mxu0 %v620
        %2219 = vmatprep.subr.mxu0 %v617
        %2220 = vmatpush1.msra.mxu0 %v616
        %2221 = vmatprep.subr.mxu0 %v613
        %2222 = vmatpush1.msra.mxu0 %v612
        %2223 = vmatprep.subr.mxu0 %v609
        %2224 = vmatpush1.msra.mxu0 %v608
        %2225 = vmatprep.subr.mxu0 %v605
        %2226 = vmatpush1.msra.mxu0 %v604
        %2227 = vmatprep.subr.mxu0 %v601
        %2228 = vmatpush1.msra.mxu0 %v600
        %2229 = vmatprep.subr.mxu0 %v597
        %2230 = vmatpush1.msra.mxu0 %v596
        %2231 = vmatprep.subr.mxu0 %v593
        %2232 = vmatpush1.msra.mxu0 %v592
        %2233 = vmatprep.subr.mxu0 %v589
        %2234 = vmatpush1.msra.mxu0 %v588
        %2235 = vmatprep.subr.mxu0 %v585
        %2236 = vmatpush1.msra.mxu0 %v584
        %2237 = vmatprep.subr.mxu0 %v709
        %2238 = vmatpush2.msra.mxu0 %v708
        %2239 = vmatprep.subr.mxu0 %v705
        %2240 = vmatpush2.msra.mxu0 %v704
        %2241 = vmatprep.subr.mxu0 %v701
        %2242 = vmatpush2.msra.mxu0 %v700
        %2243 = vmatprep.subr.mxu0 %v697
        %2244 = vmatpush2.msra.mxu0 %v696
        %2245 = vmatprep.subr.mxu0 %v693
        %2246 = vmatpush2.msra.mxu0 %v692
        %2247 = vmatprep.subr.mxu0 %v689
        %2248 = vmatpush2.msra.mxu0 %v688
        %2249 = vmatprep.subr.mxu0 %v685
        %2250 = vmatpush2.msra.mxu0 %v684
        %2251 = vmatprep.subr.mxu0 %v681
        %2252 = vmatpush2.msra.mxu0 %v680
        %2253 = vmatprep.subr.mxu0 %v677
        %2254 = vmatpush2.msra.mxu0 %v676
        %2255 = vmatprep.subr.mxu0 %v673
        %2256 = vmatpush2.msra.mxu0 %v672
        %2257 = vmatprep.subr.mxu0 %v669
        %2258 = vmatpush2.msra.mxu0 %v668
        %2259 = vmatprep.subr.mxu0 %v665
        %2260 = vmatpush2.msra.mxu0 %v664
        %2261 = vmatprep.subr.mxu0 %v661
        %2262 = vmatpush2.msra.mxu0 %v660
        %2263 = vmatprep.subr.mxu0 %v657
        %2264 = vmatpush2.msra.mxu0 %v656
        %2265 = vmatprep.subr.mxu0 %v653
        %2266 = vmatpush2.msra.mxu0 %v652
        %2267 = vmatprep.subr.mxu0 %v649
        %2268 = vmatpush2.msra.mxu0 %v648
        %2269 = vmatprep.mubr.f32.mxu0 %v1498
        %2270 = vmatmul.mubr.f32.gmra.mxu0 %v1496
        %v2271 = vpop.f32.mrf.mxu0
        %v2272 = vadd.f32 %v2201, %v2271
        %v2273 = vpop.f32.mrf.mxu0
        %v2274 = vadd.f32 %v2203, %v2273
        %2275 = vdwg.mxu0
        %2276 = vmatprep.subr.mxu0 %v773
        %2277 = vmatpush1.msra.mxu0 %v772
        %2278 = vmatprep.subr.mxu0 %v769
        %2279 = vmatpush1.msra.mxu0 %v768
        %2280 = vmatprep.subr.mxu0 %v765
        %2281 = vmatpush1.msra.mxu0 %v764
        %2282 = vmatprep.subr.mxu0 %v761
        %2283 = vmatpush1.msra.mxu0 %v760
        %2284 = vmatprep.subr.mxu0 %v757
        %2285 = vmatpush1.msra.mxu0 %v756
        %2286 = vmatprep.subr.mxu0 %v753
        %2287 = vmatpush1.msra.mxu0 %v752
        %2288 = vmatprep.subr.mxu0 %v749
        %2289 = vmatpush1.msra.mxu0 %v748
        %2290 = vmatprep.subr.mxu0 %v745
        %2291 = vmatpush1.msra.mxu0 %v744
        %2292 = vmatprep.subr.mxu0 %v741
        %2293 = vmatpush1.msra.mxu0 %v740
        %2294 = vmatprep.subr.mxu0 %v737
        %2295 = vmatpush1.msra.mxu0 %v736
        %2296 = vmatprep.subr.mxu0 %v733
        %2297 = vmatpush1.msra.mxu0 %v732
        %2298 = vmatprep.subr.mxu0 %v729
        %2299 = vmatpush1.msra.mxu0 %v728
        %2300 = vmatprep.subr.mxu0 %v725
        %2301 = vmatpush1.msra.mxu0 %v724
        %2302 = vmatprep.subr.mxu0 %v721
        %2303 = vmatpush1.msra.mxu0 %v720
        %2304 = vmatprep.subr.mxu0 %v717
        %2305 = vmatpush1.msra.mxu0 %v716
        %2306 = vmatprep.subr.mxu0 %v713
        %2307 = vmatpush1.msra.mxu0 %v712
        %2308 = vmatprep.subr.mxu0 %v837
        %2309 = vmatpush2.msra.mxu0 %v836
        %2310 = vmatprep.subr.mxu0 %v833
        %2311 = vmatpush2.msra.mxu0 %v832
        %2312 = vmatprep.subr.mxu0 %v829
        %2313 = vmatpush2.msra.mxu0 %v828
        %2314 = vmatprep.subr.mxu0 %v825
        %2315 = vmatpush2.msra.mxu0 %v824
        %2316 = vmatprep.subr.mxu0 %v821
        %2317 = vmatpush2.msra.mxu0 %v820
        %2318 = vmatprep.subr.mxu0 %v817
        %2319 = vmatpush2.msra.mxu0 %v816
        %2320 = vmatprep.subr.mxu0 %v813
        %2321 = vmatpush2.msra.mxu0 %v812
        %2322 = vmatprep.subr.mxu0 %v809
        %2323 = vmatpush2.msra.mxu0 %v808
        %2324 = vmatprep.subr.mxu0 %v805
        %2325 = vmatpush2.msra.mxu0 %v804
        %2326 = vmatprep.subr.mxu0 %v801
        %2327 = vmatpush2.msra.mxu0 %v800
        %2328 = vmatprep.subr.mxu0 %v797
        %2329 = vmatpush2.msra.mxu0 %v796
        %2330 = vmatprep.subr.mxu0 %v793
        %2331 = vmatpush2.msra.mxu0 %v792
        %2332 = vmatprep.subr.mxu0 %v789
        %2333 = vmatpush2.msra.mxu0 %v788
        %2334 = vmatprep.subr.mxu0 %v785
        %2335 = vmatpush2.msra.mxu0 %v784
        %2336 = vmatprep.subr.mxu0 %v781
        %2337 = vmatpush2.msra.mxu0 %v780
        %2338 = vmatprep.subr.mxu0 %v777
        %2339 = vmatpush2.msra.mxu0 %v776
        %2340 = vmatprep.mubr.f32.mxu0 %v1514
        %2341 = vmatmul.mubr.f32.gmra.mxu0 %v1506
        %v2342 = vpop.f32.mrf.mxu0
        %v2343 = vadd.f32 %v2272, %v2342
        %v2344 = vpop.f32.mrf.mxu0
        %v2345 = vadd.f32 %v2274, %v2344
        %2346 = vdwg.mxu0
        %2347 = vmatprep.subr.mxu0 %v901
        %2348 = vmatpush1.msra.mxu0 %v900
        %2349 = vmatprep.subr.mxu0 %v897
        %2350 = vmatpush1.msra.mxu0 %v896
        %2351 = vmatprep.subr.mxu0 %v893
        %2352 = vmatpush1.msra.mxu0 %v892
        %2353 = vmatprep.subr.mxu0 %v889
        %2354 = vmatpush1.msra.mxu0 %v888
        %2355 = vmatprep.subr.mxu0 %v885
        %2356 = vmatpush1.msra.mxu0 %v884
        %2357 = vmatprep.subr.mxu0 %v881
        %2358 = vmatpush1.msra.mxu0 %v880
        %2359 = vmatprep.subr.mxu0 %v877
        %2360 = vmatpush1.msra.mxu0 %v876
        %2361 = vmatprep.subr.mxu0 %v873
        %2362 = vmatpush1.msra.mxu0 %v872
        %2363 = vmatprep.subr.mxu0 %v869
        %2364 = vmatpush1.msra.mxu0 %v868
        %2365 = vmatprep.subr.mxu0 %v865
        %2366 = vmatpush1.msra.mxu0 %v864
        %2367 = vmatprep.subr.mxu0 %v861
        %2368 = vmatpush1.msra.mxu0 %v860
        %2369 = vmatprep.subr.mxu0 %v857
        %2370 = vmatpush1.msra.mxu0 %v856
        %2371 = vmatprep.subr.mxu0 %v853
        %2372 = vmatpush1.msra.mxu0 %v852
        %2373 = vmatprep.subr.mxu0 %v849
        %2374 = vmatpush1.msra.mxu0 %v848
        %2375 = vmatprep.subr.mxu0 %v845
        %2376 = vmatpush1.msra.mxu0 %v844
        %2377 = vmatprep.subr.mxu0 %v841
        %2378 = vmatpush1.msra.mxu0 %v840
        %2379 = vmatprep.subr.mxu0 %v965
        %2380 = vmatpush2.msra.mxu0 %v964
        %2381 = vmatprep.subr.mxu0 %v961
        %2382 = vmatpush2.msra.mxu0 %v960
        %2383 = vmatprep.subr.mxu0 %v957
        %2384 = vmatpush2.msra.mxu0 %v956
        %2385 = vmatprep.subr.mxu0 %v953
        %2386 = vmatpush2.msra.mxu0 %v952
        %2387 = vmatprep.subr.mxu0 %v949
        %2388 = vmatpush2.msra.mxu0 %v948
        %2389 = vmatprep.subr.mxu0 %v945
        %2390 = vmatpush2.msra.mxu0 %v944
        %2391 = vmatprep.subr.mxu0 %v941
        %2392 = vmatpush2.msra.mxu0 %v940
        %2393 = vmatprep.subr.mxu0 %v937
        %2394 = vmatpush2.msra.mxu0 %v936
        %2395 = vmatprep.subr.mxu0 %v933
        %2396 = vmatpush2.msra.mxu0 %v932
        %2397 = vmatprep.subr.mxu0 %v929
        %2398 = vmatpush2.msra.mxu0 %v928
        %2399 = vmatprep.subr.mxu0 %v925
        %2400 = vmatpush2.msra.mxu0 %v924
        %2401 = vmatprep.subr.mxu0 %v921
        %2402 = vmatpush2.msra.mxu0 %v920
        %2403 = vmatprep.subr.mxu0 %v917
        %2404 = vmatpush2.msra.mxu0 %v916
        %2405 = vmatprep.subr.mxu0 %v913
        %2406 = vmatpush2.msra.mxu0 %v912
        %2407 = vmatprep.subr.mxu0 %v909
        %2408 = vmatpush2.msra.mxu0 %v908
        %2409 = vmatprep.subr.mxu0 %v905
        %2410 = vmatpush2.msra.mxu0 %v904
        %2411 = vmatprep.mubr.f32.mxu0 %v1515
        %2412 = vmatmul.mubr.f32.gmra.mxu0 %v1513
        %v2413 = vpop.f32.mrf.mxu0
        %v2414 = vadd.f32 %v2343, %v2413
        %v2415 = vpop.f32.mrf.mxu0
        %v2416 = vadd.f32 %v2345, %v2415
        %2417 = vdwg.mxu0
        %2418 = vmatprep.subr.mxu0 %v1029
        %2419 = vmatpush1.msra.mxu0 %v1028
        %2420 = vmatprep.subr.mxu0 %v1025
        %2421 = vmatpush1.msra.mxu0 %v1024
        %2422 = vmatprep.subr.mxu0 %v1021
        %2423 = vmatpush1.msra.mxu0 %v1020
        %2424 = vmatprep.subr.mxu0 %v1017
        %2425 = vmatpush1.msra.mxu0 %v1016
        %2426 = vmatprep.subr.mxu0 %v1013
        %2427 = vmatpush1.msra.mxu0 %v1012
        %2428 = vmatprep.subr.mxu0 %v1009
        %2429 = vmatpush1.msra.mxu0 %v1008
        %2430 = vmatprep.subr.mxu0 %v1005
        %2431 = vmatpush1.msra.mxu0 %v1004
        %2432 = vmatprep.subr.mxu0 %v1001
        %2433 = vmatpush1.msra.mxu0 %v1000
        %2434 = vmatprep.subr.mxu0 %v997
        %2435 = vmatpush1.msra.mxu0 %v996
        %2436 = vmatprep.subr.mxu0 %v993
        %2437 = vmatpush1.msra.mxu0 %v992
        %2438 = vmatprep.subr.mxu0 %v989
        %2439 = vmatpush1.msra.mxu0 %v988
        %2440 = vmatprep.subr.mxu0 %v985
        %2441 = vmatpush1.msra.mxu0 %v984
        %2442 = vmatprep.subr.mxu0 %v981
        %2443 = vmatpush1.msra.mxu0 %v980
        %2444 = vmatprep.subr.mxu0 %v977
        %2445 = vmatpush1.msra.mxu0 %v976
        %2446 = vmatprep.subr.mxu0 %v973
        %2447 = vmatpush1.msra.mxu0 %v972
        %2448 = vmatprep.subr.mxu0 %v969
        %2449 = vmatpush1.msra.mxu0 %v968
        %2450 = vmatprep.subr.mxu0 %v1093
        %2451 = vmatpush2.msra.mxu0 %v1092
        %2452 = vmatprep.subr.mxu0 %v1089
        %2453 = vmatpush2.msra.mxu0 %v1088
        %2454 = vmatprep.subr.mxu0 %v1085
        %2455 = vmatpush2.msra.mxu0 %v1084
        %2456 = vmatprep.subr.mxu0 %v1081
        %2457 = vmatpush2.msra.mxu0 %v1080
        %2458 = vmatprep.subr.mxu0 %v1077
        %2459 = vmatpush2.msra.mxu0 %v1076
        %2460 = vmatprep.subr.mxu0 %v1073
        %2461 = vmatpush2.msra.mxu0 %v1072
        %2462 = vmatprep.subr.mxu0 %v1069
        %2463 = vmatpush2.msra.mxu0 %v1068
        %2464 = vmatprep.subr.mxu0 %v1065
        %2465 = vmatpush2.msra.mxu0 %v1064
        %2466 = vmatprep.subr.mxu0 %v1061
        %2467 = vmatpush2.msra.mxu0 %v1060
        %2468 = vmatprep.subr.mxu0 %v1057
        %2469 = vmatpush2.msra.mxu0 %v1056
        %2470 = vmatprep.subr.mxu0 %v1053
        %2471 = vmatpush2.msra.mxu0 %v1052
        %2472 = vmatprep.subr.mxu0 %v1049
        %2473 = vmatpush2.msra.mxu0 %v1048
        %2474 = vmatprep.subr.mxu0 %v1045
        %2475 = vmatpush2.msra.mxu0 %v1044
        %2476 = vmatprep.subr.mxu0 %v1041
        %2477 = vmatpush2.msra.mxu0 %v1040
        %2478 = vmatprep.subr.mxu0 %v1037
        %2479 = vmatpush2.msra.mxu0 %v1036
        %2480 = vmatprep.subr.mxu0 %v1033
        %2481 = vmatpush2.msra.mxu0 %v1032
        %2482 = vmatprep.mubr.f32.mxu0 %v1531
        %2483 = vmatmul.mubr.f32.gmra.mxu0 %v1523
        %v2484 = vpop.f32.mrf.mxu0
        %v2485 = vadd.f32 %v2414, %v2484
        %v2486 = vpop.f32.mrf.mxu0
        %v2487 = vadd.f32 %v2416, %v2486
        %2488 = vdwg.mxu0
        %2489 = vmatprep.subr.mxu0 %v1157
        %2490 = vmatpush1.msra.mxu0 %v1156
        %2491 = vmatprep.subr.mxu0 %v1153
        %2492 = vmatpush1.msra.mxu0 %v1152
        %2493 = vmatprep.subr.mxu0 %v1149
        %2494 = vmatpush1.msra.mxu0 %v1148
        %2495 = vmatprep.subr.mxu0 %v1145
        %2496 = vmatpush1.msra.mxu0 %v1144
        %2497 = vmatprep.subr.mxu0 %v1141
        %2498 = vmatpush1.msra.mxu0 %v1140
        %2499 = vmatprep.subr.mxu0 %v1137
        %2500 = vmatpush1.msra.mxu0 %v1136
        %2501 = vmatprep.subr.mxu0 %v1133
        %2502 = vmatpush1.msra.mxu0 %v1132
        %2503 = vmatprep.subr.mxu0 %v1129
        %2504 = vmatpush1.msra.mxu0 %v1128
        %2505 = vmatprep.subr.mxu0 %v1125
        %2506 = vmatpush1.msra.mxu0 %v1124
        %2507 = vmatprep.subr.mxu0 %v1121
        %2508 = vmatpush1.msra.mxu0 %v1120
        %2509 = vmatprep.subr.mxu0 %v1117
        %2510 = vmatpush1.msra.mxu0 %v1116
        %2511 = vmatprep.subr.mxu0 %v1113
        %2512 = vmatpush1.msra.mxu0 %v1112
        %2513 = vmatprep.subr.mxu0 %v1109
        %2514 = vmatpush1.msra.mxu0 %v1108
        %2515 = vmatprep.subr.mxu0 %v1105
        %2516 = vmatpush1.msra.mxu0 %v1104
        %2517 = vmatprep.subr.mxu0 %v1101
        %2518 = vmatpush1.msra.mxu0 %v1100
        %2519 = vmatprep.subr.mxu0 %v1097
        %2520 = vmatpush1.msra.mxu0 %v1096
        %2521 = vmatprep.subr.mxu0 %v1221
        %2522 = vmatpush2.msra.mxu0 %v1220
        %2523 = vmatprep.subr.mxu0 %v1217
        %2524 = vmatpush2.msra.mxu0 %v1216
        %2525 = vmatprep.subr.mxu0 %v1213
        %2526 = vmatpush2.msra.mxu0 %v1212
        %2527 = vmatprep.subr.mxu0 %v1209
        %2528 = vmatpush2.msra.mxu0 %v1208
        %2529 = vmatprep.subr.mxu0 %v1205
        %2530 = vmatpush2.msra.mxu0 %v1204
        %2531 = vmatprep.subr.mxu0 %v1201
        %2532 = vmatpush2.msra.mxu0 %v1200
        %2533 = vmatprep.subr.mxu0 %v1197
        %2534 = vmatpush2.msra.mxu0 %v1196
        %2535 = vmatprep.subr.mxu0 %v1193
        %2536 = vmatpush2.msra.mxu0 %v1192
        %2537 = vmatprep.subr.mxu0 %v1189
        %2538 = vmatpush2.msra.mxu0 %v1188
        %2539 = vmatprep.subr.mxu0 %v1185
        %2540 = vmatpush2.msra.mxu0 %v1184
        %2541 = vmatprep.subr.mxu0 %v1181
        %2542 = vmatpush2.msra.mxu0 %v1180
        %2543 = vmatprep.subr.mxu0 %v1177
        %2544 = vmatpush2.msra.mxu0 %v1176
        %2545 = vmatprep.subr.mxu0 %v1173
        %2546 = vmatpush2.msra.mxu0 %v1172
        %2547 = vmatprep.subr.mxu0 %v1169
        %2548 = vmatpush2.msra.mxu0 %v1168
        %2549 = vmatprep.subr.mxu0 %v1165
        %2550 = vmatpush2.msra.mxu0 %v1164
        %2551 = vmatprep.subr.mxu0 %v1161
        %2552 = vmatpush2.msra.mxu0 %v1160
        %2553 = vmatprep.mubr.f32.mxu0 %v1532
        %2554 = vmatmul.mubr.f32.gmra.mxu0 %v1530
        %v2555 = vpop.f32.mrf.mxu0
        %v2556 = vadd.f32 %v2485, %v2555
        %v2557 = vpop.f32.mrf.mxu0
        %v2558 = vadd.f32 %v2487, %v2557
        %2559 = vdwg.mxu0
        %2560 = vmatprep.subr.mxu0 %v1285
        %2561 = vmatpush1.msra.mxu0 %v1284
        %2562 = vmatprep.subr.mxu0 %v1281
        %2563 = vmatpush1.msra.mxu0 %v1280
        %2564 = vmatprep.subr.mxu0 %v1277
        %2565 = vmatpush1.msra.mxu0 %v1276
        %2566 = vmatprep.subr.mxu0 %v1273
        %2567 = vmatpush1.msra.mxu0 %v1272
        %2568 = vmatprep.subr.mxu0 %v1269
        %2569 = vmatpush1.msra.mxu0 %v1268
        %2570 = vmatprep.subr.mxu0 %v1265
        %2571 = vmatpush1.msra.mxu0 %v1264
        %2572 = vmatprep.subr.mxu0 %v1261
        %2573 = vmatpush1.msra.mxu0 %v1260
        %2574 = vmatprep.subr.mxu0 %v1257
        %2575 = vmatpush1.msra.mxu0 %v1256
        %2576 = vmatprep.subr.mxu0 %v1253
        %2577 = vmatpush1.msra.mxu0 %v1252
        %2578 = vmatprep.subr.mxu0 %v1249
        %2579 = vmatpush1.msra.mxu0 %v1248
        %2580 = vmatprep.subr.mxu0 %v1245
        %2581 = vmatpush1.msra.mxu0 %v1244
        %2582 = vmatprep.subr.mxu0 %v1241
        %2583 = vmatpush1.msra.mxu0 %v1240
        %2584 = vmatprep.subr.mxu0 %v1237
        %2585 = vmatpush1.msra.mxu0 %v1236
        %2586 = vmatprep.subr.mxu0 %v1233
        %2587 = vmatpush1.msra.mxu0 %v1232
        %2588 = vmatprep.subr.mxu0 %v1229
        %2589 = vmatpush1.msra.mxu0 %v1228
        %2590 = vmatprep.subr.mxu0 %v1225
        %2591 = vmatpush1.msra.mxu0 %v1224
        %2592 = vmatprep.subr.mxu0 %v1349
        %2593 = vmatpush2.msra.mxu0 %v1348
        %2594 = vmatprep.subr.mxu0 %v1345
        %2595 = vmatpush2.msra.mxu0 %v1344
        %2596 = vmatprep.subr.mxu0 %v1341
        %2597 = vmatpush2.msra.mxu0 %v1340
        %2598 = vmatprep.subr.mxu0 %v1337
        %2599 = vmatpush2.msra.mxu0 %v1336
        %2600 = vmatprep.subr.mxu0 %v1333
        %2601 = vmatpush2.msra.mxu0 %v1332
        %2602 = vmatprep.subr.mxu0 %v1329
        %2603 = vmatpush2.msra.mxu0 %v1328
        %2604 = vmatprep.subr.mxu0 %v1325
        %2605 = vmatpush2.msra.mxu0 %v1324
        %2606 = vmatprep.subr.mxu0 %v1321
        %2607 = vmatpush2.msra.mxu0 %v1320
        %2608 = vmatprep.subr.mxu0 %v1317
        %2609 = vmatpush2.msra.mxu0 %v1316
        %2610 = vmatprep.subr.mxu0 %v1313
        %2611 = vmatpush2.msra.mxu0 %v1312
        %2612 = vmatprep.subr.mxu0 %v1309
        %2613 = vmatpush2.msra.mxu0 %v1308
        %2614 = vmatprep.subr.mxu0 %v1305
        %2615 = vmatpush2.msra.mxu0 %v1304
        %2616 = vmatprep.subr.mxu0 %v1301
        %2617 = vmatpush2.msra.mxu0 %v1300
        %2618 = vmatprep.subr.mxu0 %v1297
        %2619 = vmatpush2.msra.mxu0 %v1296
        %2620 = vmatprep.subr.mxu0 %v1293
        %2621 = vmatpush2.msra.mxu0 %v1292
        %2622 = vmatprep.subr.mxu0 %v1289
        %2623 = vmatpush2.msra.mxu0 %v1288
        %2624 = vmatprep.mubr.f32.mxu0 %v1548
        %2625 = vmatmul.mubr.f32.gmra.mxu0 %v1540
        %v2626 = vpop.f32.mrf.mxu0
        %v2627 = vadd.f32 %v2556, %v2626
        %v2628 = vpop.f32.mrf.mxu0
        %v2629 = vadd.f32 %v2558, %v2628
        %2630 = vdwg.mxu0
        %2631 = vmatprep.subr.mxu0 %v1413
        %2632 = vmatpush1.msra.mxu0 %v1412
        %2633 = vmatprep.subr.mxu0 %v1409
        %2634 = vmatpush1.msra.mxu0 %v1408
        %2635 = vmatprep.subr.mxu0 %v1405
        %2636 = vmatpush1.msra.mxu0 %v1404
        %2637 = vmatprep.subr.mxu0 %v1401
        %2638 = vmatpush1.msra.mxu0 %v1400
        %2639 = vmatprep.subr.mxu0 %v1397
        %2640 = vmatpush1.msra.mxu0 %v1396
        %2641 = vmatprep.subr.mxu0 %v1393
        %2642 = vmatpush1.msra.mxu0 %v1392
        %2643 = vmatprep.subr.mxu0 %v1389
        %2644 = vmatpush1.msra.mxu0 %v1388
        %2645 = vmatprep.subr.mxu0 %v1385
        %2646 = vmatpush1.msra.mxu0 %v1384
        %2647 = vmatprep.subr.mxu0 %v1381
        %2648 = vmatpush1.msra.mxu0 %v1380
        %2649 = vmatprep.subr.mxu0 %v1377
        %2650 = vmatpush1.msra.mxu0 %v1376
        %2651 = vmatprep.subr.mxu0 %v1373
        %2652 = vmatpush1.msra.mxu0 %v1372
        %2653 = vmatprep.subr.mxu0 %v1369
        %2654 = vmatpush1.msra.mxu0 %v1368
        %2655 = vmatprep.subr.mxu0 %v1365
        %2656 = vmatpush1.msra.mxu0 %v1364
        %2657 = vmatprep.subr.mxu0 %v1361
        %2658 = vmatpush1.msra.mxu0 %v1360
        %2659 = vmatprep.subr.mxu0 %v1357
        %2660 = vmatpush1.msra.mxu0 %v1356
        %2661 = vmatprep.subr.mxu0 %v1353
        %2662 = vmatpush1.msra.mxu0 %v1352
        %2663 = vmatprep.subr.mxu0 %v1477
        %2664 = vmatpush2.msra.mxu0 %v1476
        %2665 = vmatprep.subr.mxu0 %v1473
        %2666 = vmatpush2.msra.mxu0 %v1472
        %2667 = vmatprep.subr.mxu0 %v1469
        %2668 = vmatpush2.msra.mxu0 %v1468
        %2669 = vmatprep.subr.mxu0 %v1465
        %2670 = vmatpush2.msra.mxu0 %v1464
        %2671 = vmatprep.subr.mxu0 %v1461
        %2672 = vmatpush2.msra.mxu0 %v1460
        %2673 = vmatprep.subr.mxu0 %v1457
        %2674 = vmatpush2.msra.mxu0 %v1456
        %2675 = vmatprep.subr.mxu0 %v1453
        %2676 = vmatpush2.msra.mxu0 %v1452
        %2677 = vmatprep.subr.mxu0 %v1449
        %2678 = vmatpush2.msra.mxu0 %v1448
        %2679 = vmatprep.subr.mxu0 %v1445
        %2680 = vmatpush2.msra.mxu0 %v1444
        %2681 = vmatprep.subr.mxu0 %v1441
        %2682 = vmatpush2.msra.mxu0 %v1440
        %2683 = vmatprep.subr.mxu0 %v1437
        %2684 = vmatpush2.msra.mxu0 %v1436
        %2685 = vmatprep.subr.mxu0 %v1433
        %2686 = vmatpush2.msra.mxu0 %v1432
        %2687 = vmatprep.subr.mxu0 %v1429
        %2688 = vmatpush2.msra.mxu0 %v1428
        %2689 = vmatprep.subr.mxu0 %v1425
        %2690 = vmatpush2.msra.mxu0 %v1424
        %2691 = vmatprep.subr.mxu0 %v1421
        %2692 = vmatpush2.msra.mxu0 %v1420
        %2693 = vmatprep.subr.mxu0 %v1417
        %2694 = vmatpush2.msra.mxu0 %v1416
        %2695 = vmatprep.mubr.f32.mxu0 %v1549
        %2696 = vmatmul.mubr.f32.gmra.mxu0 %v1547
        %v2697 = vpop.f32.mrf.mxu0
        %v2698 = vadd.f32 %v2627, %v2697
        %v2699 = vpop.f32.mrf.mxu0
        %v2700 = vadd.f32 %v2629, %v2699
        %2701 = vdwg.mxu0
        %v2706 = vcombine.low %v2130, %v2132
        %v2707 = vcombine.low %v2698, %v2700
        %v2709 = vunpack.c.l.s4 1983009808
        %v2710 = vunpack.c.0.s8 %v2709
        %v2711 = vlaneseq
        %v2712 = vshrl.u32 %v2711, 7
        %v2713 = vsub.s32 %v2710, %v2712
        %v2714 = vrot.slane %v2706, %v2713
        %v2716 = vunpack.c.l.s4 1983009808
        %v2717 = vunpack.c.0.s8 %v2716
        %v2718 = vlaneseq
        %v2719 = vshrl.u32 %v2718, 7
        %v2720 = vsub.s32 %v2717, %v2719
        %v2721 = vrot.slane %v2707, %v2720
        %v2722 = vcombine.low %v2714, %v2721
        %v2724 = vadd.f32 %v449, %v2722
        %2725 = vst [vmem:[#allocation2] sm:$0xff] %v2724
        %p2726 = scmp.eq.s32.totalorder %s33, 3
        // Predicated region
        $region77: #{tpu_custom_call.1} parent=47 // pred_check
          %p2727 = pneg %p2726
        $region78: #{tpu_custom_call.1} parent=47 // pred_check_branch
          %2729 = sbr.rel (%p2727) target = $region80
        $region79: #{tpu_custom_call.1} parent=47 // pred_region
          %v2730 = vld [vmem:[#allocation2] sm:$0xff]
          %v2731 = vmax.f32 %v2730, 0.0
          %v2732 = vld [vmem:[#allocation9] sm:$0xff]
          %v2733 = vld [vmem:[#allocation9 + $0x8] sm:$0xff]
          %v2734 = vld [vmem:[#allocation9 + $0x10] sm:$0xff]
          %v2735 = vld [vmem:[#allocation9 + $0x18] sm:$0xff]
          %v2736 = vld [vmem:[#allocation9 + $0x20] sm:$0xff]
          %v2737 = vld [vmem:[#allocation9 + $0x28] sm:$0xff]
          %v2738 = vld [vmem:[#allocation9 + $0x30] sm:$0xff]
          %v2739 = vld [vmem:[#allocation9 + $0x38] sm:$0xff]
          %v2740 = vld [vmem:[#allocation9 + $0x40] sm:$0xff]
          %v2741 = vld [vmem:[#allocation9 + $0x48] sm:$0xff]
          %v2742 = vld [vmem:[#allocation9 + $0x50] sm:$0xff]
          %v2743 = vld [vmem:[#allocation9 + $0x58] sm:$0xff]
          %v2744 = vld [vmem:[#allocation9 + $0x60] sm:$0xff]
          %v2745 = vld [vmem:[#allocation9 + $0x68] sm:$0xff]
          %v2746 = vld [vmem:[#allocation9 + $0x70] sm:$0xff]
          %v2747 = vld [vmem:[#allocation9 + $0x78] sm:$0xff]
          %v2748 = vld [vmem:[#allocation9 + $0x80] sm:$0xff]
          %v2749 = vld [vmem:[#allocation9 + $0x88] sm:$0xff]
          %v2750 = vld [vmem:[#allocation9 + $0x90] sm:$0xff]
          %v2751 = vld [vmem:[#allocation9 + $0x98] sm:$0xff]
          %v2752 = vld [vmem:[#allocation9 + $0xa0] sm:$0xff]
          %v2753 = vld [vmem:[#allocation9 + $0xa8] sm:$0xff]
          %v2754 = vld [vmem:[#allocation9 + $0xb0] sm:$0xff]
          %v2755 = vld [vmem:[#allocation9 + $0xb8] sm:$0xff]
          %v2756 = vld [vmem:[#allocation9 + $0xc0] sm:$0xff]
          %v2757 = vld [vmem:[#allocation9 + $0xc8] sm:$0xff]
          %v2758 = vld [vmem:[#allocation9 + $0xd0] sm:$0xff]
          %v2759 = vld [vmem:[#allocation9 + $0xd8] sm:$0xff]
          %v2760 = vld [vmem:[#allocation9 + $0xe0] sm:$0xff]
          %v2761 = vld [vmem:[#allocation9 + $0xe8] sm:$0xff]
          %v2762 = vld [vmem:[#allocation9 + $0xf0] sm:$0xff]
          %v2763 = vld [vmem:[#allocation9 + $0xf8] sm:$0xff]
          %v2764 = vld [vmem:[#allocation9 + $0x100] sm:$0xff]
          %v2765 = vld [vmem:[#allocation9 + $0x108] sm:$0xff]
          %v2766 = vld [vmem:[#allocation9 + $0x110] sm:$0xff]
          %v2767 = vld [vmem:[#allocation9 + $0x118] sm:$0xff]
          %v2768 = vld [vmem:[#allocation9 + $0x120] sm:$0xff]
          %v2769 = vld [vmem:[#allocation9 + $0x128] sm:$0xff]
          %v2770 = vld [vmem:[#allocation9 + $0x130] sm:$0xff]
          %v2771 = vld [vmem:[#allocation9 + $0x138] sm:$0xff]
          %v2772 = vld [vmem:[#allocation9 + $0x140] sm:$0xff]
          %v2773 = vld [vmem:[#allocation9 + $0x148] sm:$0xff]
          %v2774 = vld [vmem:[#allocation9 + $0x150] sm:$0xff]
          %v2775 = vld [vmem:[#allocation9 + $0x158] sm:$0xff]
          %v2776 = vld [vmem:[#allocation9 + $0x160] sm:$0xff]
          %v2777 = vld [vmem:[#allocation9 + $0x168] sm:$0xff]
          %v2778 = vld [vmem:[#allocation9 + $0x170] sm:$0xff]
          %v2779 = vld [vmem:[#allocation9 + $0x178] sm:$0xff]
          %v2780 = vld [vmem:[#allocation9 + $0x180] sm:$0xff]
          %v2781 = vld [vmem:[#allocation9 + $0x188] sm:$0xff]
          %v2782 = vld [vmem:[#allocation9 + $0x190] sm:$0xff]
          %v2783 = vld [vmem:[#allocation9 + $0x198] sm:$0xff]
          %v2784 = vld [vmem:[#allocation9 + $0x1a0] sm:$0xff]
          %v2785 = vld [vmem:[#allocation9 + $0x1a8] sm:$0xff]
          %v2786 = vld [vmem:[#allocation9 + $0x1b0] sm:$0xff]
          %v2787 = vld [vmem:[#allocation9 + $0x1b8] sm:$0xff]
          %v2788 = vld [vmem:[#allocation9 + $0x1c0] sm:$0xff]
          %v2789 = vld [vmem:[#allocation9 + $0x1c8] sm:$0xff]
          %v2790 = vld [vmem:[#allocation9 + $0x1d0] sm:$0xff]
          %v2791 = vld [vmem:[#allocation9 + $0x1d8] sm:$0xff]
          %v2792 = vld [vmem:[#allocation9 + $0x1e0] sm:$0xff]
          %v2793 = vld [vmem:[#allocation9 + $0x1e8] sm:$0xff]
          %v2794 = vld [vmem:[#allocation9 + $0x1f0] sm:$0xff]
          %v2795 = vld [vmem:[#allocation9 + $0x1f8] sm:$0xff]
          %v2796 = vld [vmem:[#allocation9 + $0x200] sm:$0xff]
          %v2797 = vld [vmem:[#allocation9 + $0x208] sm:$0xff]
          %v2798 = vld [vmem:[#allocation9 + $0x210] sm:$0xff]
          %v2799 = vld [vmem:[#allocation9 + $0x218] sm:$0xff]
          %v2800 = vld [vmem:[#allocation9 + $0x220] sm:$0xff]
          %v2801 = vld [vmem:[#allocation9 + $0x228] sm:$0xff]
          %v2802 = vld [vmem:[#allocation9 + $0x230] sm:$0xff]
          %v2803 = vld [vmem:[#allocation9 + $0x238] sm:$0xff]
          %v2804 = vld [vmem:[#allocation9 + $0x240] sm:$0xff]
          %v2805 = vld [vmem:[#allocation9 + $0x248] sm:$0xff]
          %v2806 = vld [vmem:[#allocation9 + $0x250] sm:$0xff]
          %v2807 = vld [vmem:[#allocation9 + $0x258] sm:$0xff]
          %v2808 = vld [vmem:[#allocation9 + $0x260] sm:$0xff]
          %v2809 = vld [vmem:[#allocation9 + $0x268] sm:$0xff]
          %v2810 = vld [vmem:[#allocation9 + $0x270] sm:$0xff]
          %v2811 = vld [vmem:[#allocation9 + $0x278] sm:$0xff]
          %v2812 = vld [vmem:[#allocation9 + $0x280] sm:$0xff]
          %v2813 = vld [vmem:[#allocation9 + $0x288] sm:$0xff]
          %v2814 = vld [vmem:[#allocation9 + $0x290] sm:$0xff]
          %v2815 = vld [vmem:[#allocation9 + $0x298] sm:$0xff]
          %v2816 = vld [vmem:[#allocation9 + $0x2a0] sm:$0xff]
          %v2817 = vld [vmem:[#allocation9 + $0x2a8] sm:$0xff]
          %v2818 = vld [vmem:[#allocation9 + $0x2b0] sm:$0xff]
          %v2819 = vld [vmem:[#allocation9 + $0x2b8] sm:$0xff]
          %v2820 = vld [vmem:[#allocation9 + $0x2c0] sm:$0xff]
          %v2821 = vld [vmem:[#allocation9 + $0x2c8] sm:$0xff]
          %v2822 = vld [vmem:[#allocation9 + $0x2d0] sm:$0xff]
          %v2823 = vld [vmem:[#allocation9 + $0x2d8] sm:$0xff]
          %v2824 = vld [vmem:[#allocation9 + $0x2e0] sm:$0xff]
          %v2825 = vld [vmem:[#allocation9 + $0x2e8] sm:$0xff]
          %v2826 = vld [vmem:[#allocation9 + $0x2f0] sm:$0xff]
          %v2827 = vld [vmem:[#allocation9 + $0x2f8] sm:$0xff]
          %v2828 = vld [vmem:[#allocation9 + $0x300] sm:$0xff]
          %v2829 = vld [vmem:[#allocation9 + $0x308] sm:$0xff]
          %v2830 = vld [vmem:[#allocation9 + $0x310] sm:$0xff]
          %v2831 = vld [vmem:[#allocation9 + $0x318] sm:$0xff]
          %v2832 = vld [vmem:[#allocation9 + $0x320] sm:$0xff]
          %v2833 = vld [vmem:[#allocation9 + $0x328] sm:$0xff]
          %v2834 = vld [vmem:[#allocation9 + $0x330] sm:$0xff]
          %v2835 = vld [vmem:[#allocation9 + $0x338] sm:$0xff]
          %v2836 = vld [vmem:[#allocation9 + $0x340] sm:$0xff]
          %v2837 = vld [vmem:[#allocation9 + $0x348] sm:$0xff]
          %v2838 = vld [vmem:[#allocation9 + $0x350] sm:$0xff]
          %v2839 = vld [vmem:[#allocation9 + $0x358] sm:$0xff]
          %v2840 = vld [vmem:[#allocation9 + $0x360] sm:$0xff]
          %v2841 = vld [vmem:[#allocation9 + $0x368] sm:$0xff]
          %v2842 = vld [vmem:[#allocation9 + $0x370] sm:$0xff]
          %v2843 = vld [vmem:[#allocation9 + $0x378] sm:$0xff]
          %v2844 = vld [vmem:[#allocation9 + $0x380] sm:$0xff]
          %v2845 = vld [vmem:[#allocation9 + $0x388] sm:$0xff]
          %v2846 = vld [vmem:[#allocation9 + $0x390] sm:$0xff]
          %v2847 = vld [vmem:[#allocation9 + $0x398] sm:$0xff]
          %v2848 = vld [vmem:[#allocation9 + $0x3a0] sm:$0xff]
          %v2849 = vld [vmem:[#allocation9 + $0x3a8] sm:$0xff]
          %v2850 = vld [vmem:[#allocation9 + $0x3b0] sm:$0xff]
          %v2851 = vld [vmem:[#allocation9 + $0x3b8] sm:$0xff]
          %v2852 = vld [vmem:[#allocation9 + $0x3c0] sm:$0xff]
          %v2853 = vld [vmem:[#allocation9 + $0x3c8] sm:$0xff]
          %v2854 = vld [vmem:[#allocation9 + $0x3d0] sm:$0xff]
          %v2855 = vld [vmem:[#allocation9 + $0x3d8] sm:$0xff]
          %v2856 = vld [vmem:[#allocation9 + $0x3e0] sm:$0xff]
          %v2857 = vld [vmem:[#allocation9 + $0x3e8] sm:$0xff]
          %v2858 = vld [vmem:[#allocation9 + $0x3f0] sm:$0xff]
          %v2859 = vld [vmem:[#allocation9 + $0x3f8] sm:$0xff]
          %v2860 = vld [vmem:[#allocation9 + $0x400] sm:$0xff]
          %v2861 = vld [vmem:[#allocation9 + $0x408] sm:$0xff]
          %v2862 = vld [vmem:[#allocation9 + $0x410] sm:$0xff]
          %v2863 = vld [vmem:[#allocation9 + $0x418] sm:$0xff]
          %v2864 = vld [vmem:[#allocation9 + $0x420] sm:$0xff]
          %v2865 = vld [vmem:[#allocation9 + $0x428] sm:$0xff]
          %v2866 = vld [vmem:[#allocation9 + $0x430] sm:$0xff]
          %v2867 = vld [vmem:[#allocation9 + $0x438] sm:$0xff]
          %v2868 = vld [vmem:[#allocation9 + $0x440] sm:$0xff]
          %v2869 = vld [vmem:[#allocation9 + $0x448] sm:$0xff]
          %v2870 = vld [vmem:[#allocation9 + $0x450] sm:$0xff]
          %v2871 = vld [vmem:[#allocation9 + $0x458] sm:$0xff]
          %v2872 = vld [vmem:[#allocation9 + $0x460] sm:$0xff]
          %v2873 = vld [vmem:[#allocation9 + $0x468] sm:$0xff]
          %v2874 = vld [vmem:[#allocation9 + $0x470] sm:$0xff]
          %v2875 = vld [vmem:[#allocation9 + $0x478] sm:$0xff]
          %v2876 = vld [vmem:[#allocation9 + $0x480] sm:$0xff]
          %v2877 = vld [vmem:[#allocation9 + $0x488] sm:$0xff]
          %v2878 = vld [vmem:[#allocation9 + $0x490] sm:$0xff]
          %v2879 = vld [vmem:[#allocation9 + $0x498] sm:$0xff]
          %v2880 = vld [vmem:[#allocation9 + $0x4a0] sm:$0xff]
          %v2881 = vld [vmem:[#allocation9 + $0x4a8] sm:$0xff]
          %v2882 = vld [vmem:[#allocation9 + $0x4b0] sm:$0xff]
          %v2883 = vld [vmem:[#allocation9 + $0x4b8] sm:$0xff]
          %v2884 = vld [vmem:[#allocation9 + $0x4c0] sm:$0xff]
          %v2885 = vld [vmem:[#allocation9 + $0x4c8] sm:$0xff]
          %v2886 = vld [vmem:[#allocation9 + $0x4d0] sm:$0xff]
          %v2887 = vld [vmem:[#allocation9 + $0x4d8] sm:$0xff]
          %v2888 = vld [vmem:[#allocation9 + $0x4e0] sm:$0xff]
          %v2889 = vld [vmem:[#allocation9 + $0x4e8] sm:$0xff]
          %v2890 = vld [vmem:[#allocation9 + $0x4f0] sm:$0xff]
          %v2891 = vld [vmem:[#allocation9 + $0x4f8] sm:$0xff]
          %v2892 = vld [vmem:[#allocation9 + $0x500] sm:$0xff]
          %v2893 = vld [vmem:[#allocation9 + $0x508] sm:$0xff]
          %v2894 = vld [vmem:[#allocation9 + $0x510] sm:$0xff]
          %v2895 = vld [vmem:[#allocation9 + $0x518] sm:$0xff]
          %v2896 = vld [vmem:[#allocation9 + $0x520] sm:$0xff]
          %v2897 = vld [vmem:[#allocation9 + $0x528] sm:$0xff]
          %v2898 = vld [vmem:[#allocation9 + $0x530] sm:$0xff]
          %v2899 = vld [vmem:[#allocation9 + $0x538] sm:$0xff]
          %v2900 = vld [vmem:[#allocation9 + $0x540] sm:$0xff]
          %v2901 = vld [vmem:[#allocation9 + $0x548] sm:$0xff]
          %v2902 = vld [vmem:[#allocation9 + $0x550] sm:$0xff]
          %v2903 = vld [vmem:[#allocation9 + $0x558] sm:$0xff]
          %v2904 = vld [vmem:[#allocation9 + $0x560] sm:$0xff]
          %v2905 = vld [vmem:[#allocation9 + $0x568] sm:$0xff]
          %v2906 = vld [vmem:[#allocation9 + $0x570] sm:$0xff]
          %v2907 = vld [vmem:[#allocation9 + $0x578] sm:$0xff]
          %v2908 = vld [vmem:[#allocation9 + $0x580] sm:$0xff]
          %v2909 = vld [vmem:[#allocation9 + $0x588] sm:$0xff]
          %v2910 = vld [vmem:[#allocation9 + $0x590] sm:$0xff]
          %v2911 = vld [vmem:[#allocation9 + $0x598] sm:$0xff]
          %v2912 = vld [vmem:[#allocation9 + $0x5a0] sm:$0xff]
          %v2913 = vld [vmem:[#allocation9 + $0x5a8] sm:$0xff]
          %v2914 = vld [vmem:[#allocation9 + $0x5b0] sm:$0xff]
          %v2915 = vld [vmem:[#allocation9 + $0x5b8] sm:$0xff]
          %v2916 = vld [vmem:[#allocation9 + $0x5c0] sm:$0xff]
          %v2917 = vld [vmem:[#allocation9 + $0x5c8] sm:$0xff]
          %v2918 = vld [vmem:[#allocation9 + $0x5d0] sm:$0xff]
          %v2919 = vld [vmem:[#allocation9 + $0x5d8] sm:$0xff]
          %v2920 = vld [vmem:[#allocation9 + $0x5e0] sm:$0xff]
          %v2921 = vld [vmem:[#allocation9 + $0x5e8] sm:$0xff]
          %v2922 = vld [vmem:[#allocation9 + $0x5f0] sm:$0xff]
          %v2923 = vld [vmem:[#allocation9 + $0x5f8] sm:$0xff]
          %v2924 = vld [vmem:[#allocation9 + $0x600] sm:$0xff]
          %v2925 = vld [vmem:[#allocation9 + $0x608] sm:$0xff]
          %v2926 = vld [vmem:[#allocation9 + $0x610] sm:$0xff]
          %v2927 = vld [vmem:[#allocation9 + $0x618] sm:$0xff]
          %v2928 = vld [vmem:[#allocation9 + $0x620] sm:$0xff]
          %v2929 = vld [vmem:[#allocation9 + $0x628] sm:$0xff]
          %v2930 = vld [vmem:[#allocation9 + $0x630] sm:$0xff]
          %v2931 = vld [vmem:[#allocation9 + $0x638] sm:$0xff]
          %v2932 = vld [vmem:[#allocation9 + $0x640] sm:$0xff]
          %v2933 = vld [vmem:[#allocation9 + $0x648] sm:$0xff]
          %v2934 = vld [vmem:[#allocation9 + $0x650] sm:$0xff]
          %v2935 = vld [vmem:[#allocation9 + $0x658] sm:$0xff]
          %v2936 = vld [vmem:[#allocation9 + $0x660] sm:$0xff]
          %v2937 = vld [vmem:[#allocation9 + $0x668] sm:$0xff]
          %v2938 = vld [vmem:[#allocation9 + $0x670] sm:$0xff]
          %v2939 = vld [vmem:[#allocation9 + $0x678] sm:$0xff]
          %v2940 = vld [vmem:[#allocation9 + $0x680] sm:$0xff]
          %v2941 = vld [vmem:[#allocation9 + $0x688] sm:$0xff]
          %v2942 = vld [vmem:[#allocation9 + $0x690] sm:$0xff]
          %v2943 = vld [vmem:[#allocation9 + $0x698] sm:$0xff]
          %v2944 = vld [vmem:[#allocation9 + $0x6a0] sm:$0xff]
          %v2945 = vld [vmem:[#allocation9 + $0x6a8] sm:$0xff]
          %v2946 = vld [vmem:[#allocation9 + $0x6b0] sm:$0xff]
          %v2947 = vld [vmem:[#allocation9 + $0x6b8] sm:$0xff]
          %v2948 = vld [vmem:[#allocation9 + $0x6c0] sm:$0xff]
          %v2949 = vld [vmem:[#allocation9 + $0x6c8] sm:$0xff]
          %v2950 = vld [vmem:[#allocation9 + $0x6d0] sm:$0xff]
          %v2951 = vld [vmem:[#allocation9 + $0x6d8] sm:$0xff]
          %v2952 = vld [vmem:[#allocation9 + $0x6e0] sm:$0xff]
          %v2953 = vld [vmem:[#allocation9 + $0x6e8] sm:$0xff]
          %v2954 = vld [vmem:[#allocation9 + $0x6f0] sm:$0xff]
          %v2955 = vld [vmem:[#allocation9 + $0x6f8] sm:$0xff]
          %v2956 = vld [vmem:[#allocation9 + $0x700] sm:$0xff]
          %v2957 = vld [vmem:[#allocation9 + $0x708] sm:$0xff]
          %v2958 = vld [vmem:[#allocation9 + $0x710] sm:$0xff]
          %v2959 = vld [vmem:[#allocation9 + $0x718] sm:$0xff]
          %v2960 = vld [vmem:[#allocation9 + $0x720] sm:$0xff]
          %v2961 = vld [vmem:[#allocation9 + $0x728] sm:$0xff]
          %v2962 = vld [vmem:[#allocation9 + $0x730] sm:$0xff]
          %v2963 = vld [vmem:[#allocation9 + $0x738] sm:$0xff]
          %v2964 = vld [vmem:[#allocation9 + $0x740] sm:$0xff]
          %v2965 = vld [vmem:[#allocation9 + $0x748] sm:$0xff]
          %v2966 = vld [vmem:[#allocation9 + $0x750] sm:$0xff]
          %v2967 = vld [vmem:[#allocation9 + $0x758] sm:$0xff]
          %v2968 = vld [vmem:[#allocation9 + $0x760] sm:$0xff]
          %v2969 = vld [vmem:[#allocation9 + $0x768] sm:$0xff]
          %v2970 = vld [vmem:[#allocation9 + $0x770] sm:$0xff]
          %v2971 = vld [vmem:[#allocation9 + $0x778] sm:$0xff]
          %v2972 = vld [vmem:[#allocation9 + $0x780] sm:$0xff]
          %v2973 = vld [vmem:[#allocation9 + $0x788] sm:$0xff]
          %v2974 = vld [vmem:[#allocation9 + $0x790] sm:$0xff]
          %v2975 = vld [vmem:[#allocation9 + $0x798] sm:$0xff]
          %v2976 = vld [vmem:[#allocation9 + $0x7a0] sm:$0xff]
          %v2977 = vld [vmem:[#allocation9 + $0x7a8] sm:$0xff]
          %v2978 = vld [vmem:[#allocation9 + $0x7b0] sm:$0xff]
          %v2979 = vld [vmem:[#allocation9 + $0x7b8] sm:$0xff]
          %v2980 = vld [vmem:[#allocation9 + $0x7c0] sm:$0xff]
          %v2981 = vld [vmem:[#allocation9 + $0x7c8] sm:$0xff]
          %v2982 = vld [vmem:[#allocation9 + $0x7d0] sm:$0xff]
          %v2983 = vld [vmem:[#allocation9 + $0x7d8] sm:$0xff]
          %v2984 = vld [vmem:[#allocation9 + $0x7e0] sm:$0xff]
          %v2985 = vld [vmem:[#allocation9 + $0x7e8] sm:$0xff]
          %v2986 = vld [vmem:[#allocation9 + $0x7f0] sm:$0xff]
          %v2987 = vld [vmem:[#allocation9 + $0x7f8] sm:$0xff]
          %v2988 = vld [vmem:[#allocation11] sm:$0xf]
          %v2990 = vlaneseq
          %v2991 = vshrl.u32 %v2990, 7
          %v2992 = vsub.s32 0, %v2991
          %v2993 = vrot.slane %v2988, %v2992
          %v2994 = vlaneseq
          %v2995 = vshrl.u32 %v2994, 7
          %v2996 = vsub.s32 1, %v2995
          %v2997 = vrot.slane %v2988, %v2996
          %v2998 = vlaneseq
          %v2999 = vshrl.u32 %v2998, 7
          %v3000 = vsub.s32 2, %v2999
          %v3001 = vrot.slane %v2988, %v3000
          %v3002 = vlaneseq
          %v3003 = vshrl.u32 %v3002, 7
          %v3004 = vsub.s32 3, %v3003
          %v3005 = vrot.slane %v2988, %v3004
          %v3011 = vcombine.high %v2731, %v2731
          %v3013 = vunpack.c.l.s4 1983009808
          %v3014 = vunpack.c.0.s8 %v3013
          %v3015 = vlaneseq
          %v3016 = vshrl.u32 %v3015, 7
          %v3017 = vsub.s32 %v3014, %v3016
          %v3018 = vrot.slane %v2731, %v3017
          %v3020 = vunpack.c.l.s4 1983009808
          %v3021 = vunpack.c.0.s8 %v3020
          %v3022 = vlaneseq
          %v3023 = vshrl.u32 %v3022, 7
          %v3024 = vsub.s32 %v3021, %v3023
          %v3025 = vrot.slane %v3011, %v3024
          %v3026 = vcombine.high %v3018, %v3018
          %v3027 = vcombine.high %v3025, %v3025
          %3032 = vmatprep.subr.mxu0 %v2793
          %3033 = vmatpush1.msra.mxu0 %v2792
          %3034 = vmatprep.subr.mxu0 %v2789
          %3035 = vmatpush1.msra.mxu0 %v2788
          %3036 = vmatprep.subr.mxu0 %v2785
          %3037 = vmatpush1.msra.mxu0 %v2784
          %3038 = vmatprep.subr.mxu0 %v2781
          %3039 = vmatpush1.msra.mxu0 %v2780
          %3040 = vmatprep.subr.mxu0 %v2777
          %3041 = vmatpush1.msra.mxu0 %v2776
          %3042 = vmatprep.subr.mxu0 %v2773
          %3043 = vmatpush1.msra.mxu0 %v2772
          %3044 = vmatprep.subr.mxu0 %v2769
          %3045 = vmatpush1.msra.mxu0 %v2768
          %3046 = vmatprep.subr.mxu0 %v2765
          %3047 = vmatpush1.msra.mxu0 %v2764
          %3048 = vmatprep.subr.mxu0 %v2761
          %3049 = vmatpush1.msra.mxu0 %v2760
          %3050 = vmatprep.subr.mxu0 %v2757
          %3051 = vmatpush1.msra.mxu0 %v2756
          %3052 = vmatprep.subr.mxu0 %v2753
          %3053 = vmatpush1.msra.mxu0 %v2752
          %3054 = vmatprep.subr.mxu0 %v2749
          %3055 = vmatpush1.msra.mxu0 %v2748
          %3056 = vmatprep.subr.mxu0 %v2745
          %3057 = vmatpush1.msra.mxu0 %v2744
          %3058 = vmatprep.subr.mxu0 %v2741
          %3059 = vmatpush1.msra.mxu0 %v2740
          %3060 = vmatprep.subr.mxu0 %v2737
          %3061 = vmatpush1.msra.mxu0 %v2736
          %3062 = vmatprep.subr.mxu0 %v2733
          %3063 = vmatpush1.msra.mxu0 %v2732
          %3064 = vmatprep.subr.mxu0 %v2857
          %3065 = vmatpush2.msra.mxu0 %v2856
          %3066 = vmatprep.subr.mxu0 %v2853
          %3067 = vmatpush2.msra.mxu0 %v2852
          %3068 = vmatprep.subr.mxu0 %v2849
          %3069 = vmatpush2.msra.mxu0 %v2848
          %3070 = vmatprep.subr.mxu0 %v2845
          %3071 = vmatpush2.msra.mxu0 %v2844
          %3072 = vmatprep.subr.mxu0 %v2841
          %3073 = vmatpush2.msra.mxu0 %v2840
          %3074 = vmatprep.subr.mxu0 %v2837
          %3075 = vmatpush2.msra.mxu0 %v2836
          %3076 = vmatprep.subr.mxu0 %v2833
          %3077 = vmatpush2.msra.mxu0 %v2832
          %3078 = vmatprep.subr.mxu0 %v2829
          %3079 = vmatpush2.msra.mxu0 %v2828
          %3080 = vmatprep.subr.mxu0 %v2825
          %3081 = vmatpush2.msra.mxu0 %v2824
          %3082 = vmatprep.subr.mxu0 %v2821
          %3083 = vmatpush2.msra.mxu0 %v2820
          %3084 = vmatprep.subr.mxu0 %v2817
          %3085 = vmatpush2.msra.mxu0 %v2816
          %3086 = vmatprep.subr.mxu0 %v2813
          %3087 = vmatpush2.msra.mxu0 %v2812
          %3088 = vmatprep.subr.mxu0 %v2809
          %3089 = vmatpush2.msra.mxu0 %v2808
          %3090 = vmatprep.subr.mxu0 %v2805
          %3091 = vmatpush2.msra.mxu0 %v2804
          %3092 = vmatprep.subr.mxu0 %v2801
          %3093 = vmatpush2.msra.mxu0 %v2800
          %3094 = vmatprep.subr.mxu0 %v2797
          %3095 = vmatpush2.msra.mxu0 %v2796
          %3096 = vmatprep.mubr.f32.mxu0 %v3026
          %3097 = vmatmul.mubr.f32.gmra.mxu0 %v3018
          %v3098 = vpop.f32.mrf.mxu0
          %v3099 = vadd.f32 %v2993, %v3098
          %v3100 = vpop.f32.mrf.mxu0
          %v3101 = vadd.f32 %v2997, %v3100
          %3102 = vdwg.mxu0
          %3103 = vmatprep.subr.mxu0 %v2921
          %3104 = vmatpush1.msra.mxu0 %v2920
          %3105 = vmatprep.subr.mxu0 %v2917
          %3106 = vmatpush1.msra.mxu0 %v2916
          %3107 = vmatprep.subr.mxu0 %v2913
          %3108 = vmatpush1.msra.mxu0 %v2912
          %3109 = vmatprep.subr.mxu0 %v2909
          %3110 = vmatpush1.msra.mxu0 %v2908
          %3111 = vmatprep.subr.mxu0 %v2905
          %3112 = vmatpush1.msra.mxu0 %v2904
          %3113 = vmatprep.subr.mxu0 %v2901
          %3114 = vmatpush1.msra.mxu0 %v2900
          %3115 = vmatprep.subr.mxu0 %v2897
          %3116 = vmatpush1.msra.mxu0 %v2896
          %3117 = vmatprep.subr.mxu0 %v2893
          %3118 = vmatpush1.msra.mxu0 %v2892
          %3119 = vmatprep.subr.mxu0 %v2889
          %3120 = vmatpush1.msra.mxu0 %v2888
          %3121 = vmatprep.subr.mxu0 %v2885
          %3122 = vmatpush1.msra.mxu0 %v2884
          %3123 = vmatprep.subr.mxu0 %v2881
          %3124 = vmatpush1.msra.mxu0 %v2880
          %3125 = vmatprep.subr.mxu0 %v2877
          %3126 = vmatpush1.msra.mxu0 %v2876
          %3127 = vmatprep.subr.mxu0 %v2873
          %3128 = vmatpush1.msra.mxu0 %v2872
          %3129 = vmatprep.subr.mxu0 %v2869
          %3130 = vmatpush1.msra.mxu0 %v2868
          %3131 = vmatprep.subr.mxu0 %v2865
          %3132 = vmatpush1.msra.mxu0 %v2864
          %3133 = vmatprep.subr.mxu0 %v2861
          %3134 = vmatpush1.msra.mxu0 %v2860
          %3135 = vmatprep.subr.mxu0 %v2985
          %3136 = vmatpush2.msra.mxu0 %v2984
          %3137 = vmatprep.subr.mxu0 %v2981
          %3138 = vmatpush2.msra.mxu0 %v2980
          %3139 = vmatprep.subr.mxu0 %v2977
          %3140 = vmatpush2.msra.mxu0 %v2976
          %3141 = vmatprep.subr.mxu0 %v2973
          %3142 = vmatpush2.msra.mxu0 %v2972
          %3143 = vmatprep.subr.mxu0 %v2969
          %3144 = vmatpush2.msra.mxu0 %v2968
          %3145 = vmatprep.subr.mxu0 %v2965
          %3146 = vmatpush2.msra.mxu0 %v2964
          %3147 = vmatprep.subr.mxu0 %v2961
          %3148 = vmatpush2.msra.mxu0 %v2960
          %3149 = vmatprep.subr.mxu0 %v2957
          %3150 = vmatpush2.msra.mxu0 %v2956
          %3151 = vmatprep.subr.mxu0 %v2953
          %3152 = vmatpush2.msra.mxu0 %v2952
          %3153 = vmatprep.subr.mxu0 %v2949
          %3154 = vmatpush2.msra.mxu0 %v2948
          %3155 = vmatprep.subr.mxu0 %v2945
          %3156 = vmatpush2.msra.mxu0 %v2944
          %3157 = vmatprep.subr.mxu0 %v2941
          %3158 = vmatpush2.msra.mxu0 %v2940
          %3159 = vmatprep.subr.mxu0 %v2937
          %3160 = vmatpush2.msra.mxu0 %v2936
          %3161 = vmatprep.subr.mxu0 %v2933
          %3162 = vmatpush2.msra.mxu0 %v2932
          %3163 = vmatprep.subr.mxu0 %v2929
          %3164 = vmatpush2.msra.mxu0 %v2928
          %3165 = vmatprep.subr.mxu0 %v2925
          %3166 = vmatpush2.msra.mxu0 %v2924
          %3167 = vmatprep.mubr.f32.mxu0 %v3027
          %3168 = vmatmul.mubr.f32.gmra.mxu0 %v3025
          %v3169 = vpop.f32.mrf.mxu0
          %v3170 = vadd.f32 %v3099, %v3169
          %v3171 = vpop.f32.mrf.mxu0
          %v3172 = vadd.f32 %v3101, %v3171
          %3173 = vdwg.mxu0
          %3174 = vmatprep.subr.mxu0 %v2795
          %3175 = vmatpush1.msra.mxu0 %v2794
          %3176 = vmatprep.subr.mxu0 %v2791
          %3177 = vmatpush1.msra.mxu0 %v2790
          %3178 = vmatprep.subr.mxu0 %v2787
          %3179 = vmatpush1.msra.mxu0 %v2786
          %3180 = vmatprep.subr.mxu0 %v2783
          %3181 = vmatpush1.msra.mxu0 %v2782
          %3182 = vmatprep.subr.mxu0 %v2779
          %3183 = vmatpush1.msra.mxu0 %v2778
          %3184 = vmatprep.subr.mxu0 %v2775
          %3185 = vmatpush1.msra.mxu0 %v2774
          %3186 = vmatprep.subr.mxu0 %v2771
          %3187 = vmatpush1.msra.mxu0 %v2770
          %3188 = vmatprep.subr.mxu0 %v2767
          %3189 = vmatpush1.msra.mxu0 %v2766
          %3190 = vmatprep.subr.mxu0 %v2763
          %3191 = vmatpush1.msra.mxu0 %v2762
          %3192 = vmatprep.subr.mxu0 %v2759
          %3193 = vmatpush1.msra.mxu0 %v2758
          %3194 = vmatprep.subr.mxu0 %v2755
          %3195 = vmatpush1.msra.mxu0 %v2754
          %3196 = vmatprep.subr.mxu0 %v2751
          %3197 = vmatpush1.msra.mxu0 %v2750
          %3198 = vmatprep.subr.mxu0 %v2747
          %3199 = vmatpush1.msra.mxu0 %v2746
          %3200 = vmatprep.subr.mxu0 %v2743
          %3201 = vmatpush1.msra.mxu0 %v2742
          %3202 = vmatprep.subr.mxu0 %v2739
          %3203 = vmatpush1.msra.mxu0 %v2738
          %3204 = vmatprep.subr.mxu0 %v2735
          %3205 = vmatpush1.msra.mxu0 %v2734
          %3206 = vmatprep.subr.mxu0 %v2859
          %3207 = vmatpush2.msra.mxu0 %v2858
          %3208 = vmatprep.subr.mxu0 %v2855
          %3209 = vmatpush2.msra.mxu0 %v2854
          %3210 = vmatprep.subr.mxu0 %v2851
          %3211 = vmatpush2.msra.mxu0 %v2850
          %3212 = vmatprep.subr.mxu0 %v2847
          %3213 = vmatpush2.msra.mxu0 %v2846
          %3214 = vmatprep.subr.mxu0 %v2843
          %3215 = vmatpush2.msra.mxu0 %v2842
          %3216 = vmatprep.subr.mxu0 %v2839
          %3217 = vmatpush2.msra.mxu0 %v2838
          %3218 = vmatprep.subr.mxu0 %v2835
          %3219 = vmatpush2.msra.mxu0 %v2834
          %3220 = vmatprep.subr.mxu0 %v2831
          %3221 = vmatpush2.msra.mxu0 %v2830
          %3222 = vmatprep.subr.mxu0 %v2827
          %3223 = vmatpush2.msra.mxu0 %v2826
          %3224 = vmatprep.subr.mxu0 %v2823
          %3225 = vmatpush2.msra.mxu0 %v2822
          %3226 = vmatprep.subr.mxu0 %v2819
          %3227 = vmatpush2.msra.mxu0 %v2818
          %3228 = vmatprep.subr.mxu0 %v2815
          %3229 = vmatpush2.msra.mxu0 %v2814
          %3230 = vmatprep.subr.mxu0 %v2811
          %3231 = vmatpush2.msra.mxu0 %v2810
          %3232 = vmatprep.subr.mxu0 %v2807
          %3233 = vmatpush2.msra.mxu0 %v2806
          %3234 = vmatprep.subr.mxu0 %v2803
          %3235 = vmatpush2.msra.mxu0 %v2802
          %3236 = vmatprep.subr.mxu0 %v2799
          %3237 = vmatpush2.msra.mxu0 %v2798
          %3238 = vmatprep.mubr.f32.mxu0 %v3026
          %3239 = vmatmul.mubr.f32.gmra.mxu0 %v3018
          %v3240 = vpop.f32.mrf.mxu0
          %v3241 = vadd.f32 %v3001, %v3240
          %v3242 = vpop.f32.mrf.mxu0
          %v3243 = vadd.f32 %v3005, %v3242
          %3244 = vdwg.mxu0
          %3245 = vmatprep.subr.mxu0 %v2923
          %3246 = vmatpush1.msra.mxu0 %v2922
          %3247 = vmatprep.subr.mxu0 %v2919
          %3248 = vmatpush1.msra.mxu0 %v2918
          %3249 = vmatprep.subr.mxu0 %v2915
          %3250 = vmatpush1.msra.mxu0 %v2914
          %3251 = vmatprep.subr.mxu0 %v2911
          %3252 = vmatpush1.msra.mxu0 %v2910
          %3253 = vmatprep.subr.mxu0 %v2907
          %3254 = vmatpush1.msra.mxu0 %v2906
          %3255 = vmatprep.subr.mxu0 %v2903
          %3256 = vmatpush1.msra.mxu0 %v2902
          %3257 = vmatprep.subr.mxu0 %v2899
          %3258 = vmatpush1.msra.mxu0 %v2898
          %3259 = vmatprep.subr.mxu0 %v2895
          %3260 = vmatpush1.msra.mxu0 %v2894
          %3261 = vmatprep.subr.mxu0 %v2891
          %3262 = vmatpush1.msra.mxu0 %v2890
          %3263 = vmatprep.subr.mxu0 %v2887
          %3264 = vmatpush1.msra.mxu0 %v2886
          %3265 = vmatprep.subr.mxu0 %v2883
          %3266 = vmatpush1.msra.mxu0 %v2882
          %3267 = vmatprep.subr.mxu0 %v2879
          %3268 = vmatpush1.msra.mxu0 %v2878
          %3269 = vmatprep.subr.mxu0 %v2875
          %3270 = vmatpush1.msra.mxu0 %v2874
          %3271 = vmatprep.subr.mxu0 %v2871
          %3272 = vmatpush1.msra.mxu0 %v2870
          %3273 = vmatprep.subr.mxu0 %v2867
          %3274 = vmatpush1.msra.mxu0 %v2866
          %3275 = vmatprep.subr.mxu0 %v2863
          %3276 = vmatpush1.msra.mxu0 %v2862
          %3277 = vmatprep.subr.mxu0 %v2987
          %3278 = vmatpush2.msra.mxu0 %v2986
          %3279 = vmatprep.subr.mxu0 %v2983
          %3280 = vmatpush2.msra.mxu0 %v2982
          %3281 = vmatprep.subr.mxu0 %v2979
          %3282 = vmatpush2.msra.mxu0 %v2978
          %3283 = vmatprep.subr.mxu0 %v2975
          %3284 = vmatpush2.msra.mxu0 %v2974
          %3285 = vmatprep.subr.mxu0 %v2971
          %3286 = vmatpush2.msra.mxu0 %v2970
          %3287 = vmatprep.subr.mxu0 %v2967
          %3288 = vmatpush2.msra.mxu0 %v2966
          %3289 = vmatprep.subr.mxu0 %v2963
          %3290 = vmatpush2.msra.mxu0 %v2962
          %3291 = vmatprep.subr.mxu0 %v2959
          %3292 = vmatpush2.msra.mxu0 %v2958
          %3293 = vmatprep.subr.mxu0 %v2955
          %3294 = vmatpush2.msra.mxu0 %v2954
          %3295 = vmatprep.subr.mxu0 %v2951
          %3296 = vmatpush2.msra.mxu0 %v2950
          %3297 = vmatprep.subr.mxu0 %v2947
          %3298 = vmatpush2.msra.mxu0 %v2946
          %3299 = vmatprep.subr.mxu0 %v2943
          %3300 = vmatpush2.msra.mxu0 %v2942
          %3301 = vmatprep.subr.mxu0 %v2939
          %3302 = vmatpush2.msra.mxu0 %v2938
          %3303 = vmatprep.subr.mxu0 %v2935
          %3304 = vmatpush2.msra.mxu0 %v2934
          %3305 = vmatprep.subr.mxu0 %v2931
          %3306 = vmatpush2.msra.mxu0 %v2930
          %3307 = vmatprep.subr.mxu0 %v2927
          %3308 = vmatpush2.msra.mxu0 %v2926
          %3309 = vmatprep.mubr.f32.mxu0 %v3027
          %3310 = vmatmul.mubr.f32.gmra.mxu0 %v3025
          %v3311 = vpop.f32.mrf.mxu0
          %v3312 = vadd.f32 %v3241, %v3311
          %v3313 = vpop.f32.mrf.mxu0
          %v3314 = vadd.f32 %v3243, %v3313
          %3315 = vdwg.mxu0
          %v3316 = vmax.f32 %v3170, 0.0
          %v3317 = vmax.f32 %v3172, 0.0
          %v3318 = vmax.f32 %v3312, 0.0
          %v3319 = vmax.f32 %v3314, 0.0
          %v3320 = vld [vmem:[#allocation12] sm:$0xf]
          %v3322 = vlaneseq
          %v3323 = vshrl.u32 %v3322, 7
          %v3324 = vsub.s32 0, %v3323
          %v3325 = vrot.slane %v3320, %v3324
          %v3326 = vlaneseq
          %v3327 = vshrl.u32 %v3326, 7
          %v3328 = vsub.s32 1, %v3327
          %v3329 = vrot.slane %v3320, %v3328
          %v3330 = vlaneseq
          %v3331 = vshrl.u32 %v3330, 7
          %v3332 = vsub.s32 2, %v3331
          %v3333 = vrot.slane %v3320, %v3332
          %v3334 = vlaneseq
          %v3335 = vshrl.u32 %v3334, 7
          %v3336 = vsub.s32 3, %v3335
          %v3337 = vrot.slane %v3320, %v3336
          %v3342 = vmul.f32 %v3316, %v3325
          %v3343 = vmul.f32 %v3317, %v3329
          %v3344 = vmul.f32 %v3318, %v3333
          %v3345 = vmul.f32 %v3319, %v3337
          %vm3346 = vcmask 1041408
          %v3347 = vsel %vm3346, %v3342, 0.0
          %v3348 = vsel %vm3346, %v3343, 0.0
          %v3349 = vadd.f32 %v3347, %v3348
          %v3350 = vsel %vm3346, %v3344, 0.0
          %v3351 = vadd.f32 %v3349, %v3350
          %v3352 = vsel %vm3346, %v3345, 0.0
          %v3353 = vadd.f32 %v3351, %v3352
          %3354 = vadd.xlane.f32.xlu0 %v3353
          %v3355 = vpop.xlane.xlu0 %3354
          %v3356 = vld [vmem:[#allocation3] sm:$0x1]
          %v3358 = vlaneseq
          %v3359 = vshrl.u32 %v3358, 7
          %v3360 = vsub.s32 0, %v3359
          %v3361 = vrot.slane %v3356, %v3360
          %v3363 = vadd.f32 %v3355, %v3361
          %vm3364 = vcmask 1024
          %3365 = vst.msk [vmem:[%s407] sm:$0x3] %vm3364, %v3363
        $region80: #{tpu_custom_call.1} parent=47 // pred_fallthru
          _
        %p3366 = scmp.lt.s32.totalorder %s32, 0
        %s3367 = scalar_select %p3366, %s32, 0
        %s3368 = smul.addr %s3367, 2
        %s3369 = scalar_lea.vmem %s7, %s3368
        // Predicated region
        $region81: #{tpu_custom_call.1} parent=47 // pred_check
          %p3370 = pneg %p217
        $region82: #{tpu_custom_call.1} parent=47 // pred_check_branch
          %3372 = sbr.rel (%p3370) target = $region84
        $region83: #{tpu_custom_call.1} parent=47 // pred_region
          _
        $region84: #{tpu_custom_call.1} parent=47 // pred_fallthru
          _
        // Predicated region
        $region85: #{tpu_custom_call.1} parent=47 // pred_check
          %p3373 = pneg %p217
        $region86: #{tpu_custom_call.1} parent=47 // pred_check_branch
          %3375 = sbr.rel (%p3373) target = $region88
        $region87: #{tpu_custom_call.1} parent=47 // pred_region
          %p3376 = scmp.lt.s32.totalorder %s32, 0
          %s3377 = scalar_select %p3376, %s32, 0
          %s3378 = smul.addr %s3377, 2
          %s3379 = scalar_lea.vmem %s7, %s3378
        $region88: #{tpu_custom_call.1} parent=47 // pred_fallthru
          _
      $region48: #{tpu_custom_call.1} parent=5 // pred_fallthru
        _
      %p3380 = scmp.le.s32.totalorder 2, %s23
      // Predicated region
      $region89: #{tpu_custom_call.1} parent=5 // pred_check
        %p3381 = pneg %p3380
      $region90: #{tpu_custom_call.1} parent=5 // pred_check_branch
        %3383 = sbr.rel (%p3381) target = $region92
      $region91: #{tpu_custom_call.1} parent=5 // pred_region
        %s3384 = ssub.s32 %s23, 2
      $region92: #{tpu_custom_call.1} parent=5 // pred_fallthru
        _
    $region6: #{tpu_custom_call.1} parent=1 // loop_footer
      %s27 = sadd.s32 1, %s23
    $region7: #{tpu_custom_call.1} parent=1 // loop_footer_branch
      %22 = sbr.rel target = $region3
    $region8: #{tpu_custom_call.1} parent=1 // loop_exit
      _
    %3385 = vsyncpa [#allocation5], 1
    %s3386 = scalar_lea.sflag [#allocation5], 1
    %3387 = vsyncpa %s3386, 1
    %3388 = vsyncpa [#allocation7], 1
    %s3389 = scalar_lea.sflag [#allocation7], 1
    %3390 = vsyncpa %s3389, 1
    %3391 = vsyncpa [#allocation10], 1
    %3392 = vsyncpa [#allocation13], 1

</llo_original>
